<compile_context>
chip_gen: v7x
topology: tpu7x:2x2x1
jax: 0.10.0
libtpu: 0.0.40
codegen_flags: <defaults>
</compile_context>

<pallas_src>
import math

import numpy as np
import jax
import jax.numpy as jnp
from jax import lax
from jax.experimental import pallas as pl
from jax.experimental.pallas import tpu as pltpu

WIN = 11            # SSIM gaussian window size
PAD = WIN // 2      # 5
SIGMA = 1.5
C1 = 0.01 ** 2
C2 = 0.03 ** 2

_g = np.array(
    [math.exp(-((i - WIN // 2) ** 2) / (2.0 * SIGMA ** 2)) for i in range(WIN)],
    dtype=np.float64)
GAUSS = (_g / _g.sum()).astype(np.float32)

# F.conv2d is cross-correlation; both Sobel kernels are separable.
SOBEL_H_X = np.array([-1.0, 0.0, 1.0], np.float32)   # horizontal taps of Kx
SOBEL_V_X = np.array([1.0, 2.0, 1.0], np.float32)    # vertical   taps of Kx
SOBEL_H_Y = np.array([1.0, 2.0, 1.0], np.float32)    # horizontal taps of Ky
SOBEL_V_Y = np.array([1.0, 0.0, -1.0], np.float32)   # vertical   taps of Ky


def _round_up(x, m):
    return (x + m - 1) // m * m


# ----------------------------------------------------------------------------
# Host-side band-matrix construction (zero 'same' padding folded in).
# ----------------------------------------------------------------------------
def _band_matrix_h(w_valid, wp, taps, pad):
    """Right-multiply matrix: out[:, j] = sum_k taps[k] * x[:, j + k - pad].

    Rows q >= w_valid (lane padding) and columns j >= w_valid are zeroed, so
    the output is exactly zero outside the valid W columns."""
    q = np.arange(wp)[:, None]
    j = np.arange(wp)[None, :]
    k = q - j + pad
    t = np.asarray(taps, np.float32)
    m = np.where((k >= 0) & (k < len(t)) & (q < w_valid) & (j < w_valid),
                 t[np.clip(k, 0, len(t) - 1)], 0.0).astype(np.float32)
    return m


def _band_matrix_v(h_valid, hp, taps, pad):
    """Left-multiply matrix: out[i, :] = sum_k taps[k] * x[i + k - pad, :].

    Rows i >= h_valid and columns p >= h_valid are zeroed."""
    i = np.arange(hp)[:, None]
    p = np.arange(hp)[None, :]
    k = p - i + pad
    t = np.asarray(taps, np.float32)
    m = np.where((k >= 0) & (k < len(t)) & (i < h_valid) & (p < h_valid),
                 t[np.clip(k, 0, len(t) - 1)], 0.0).astype(np.float32)
    return m


# ----------------------------------------------------------------------------
# Band tiling: slice the full band matrix into per-output-tile blocks so the
# matmul contraction dim shrinks from Wp/Hp to tile+halo.
# ----------------------------------------------------------------------------
def _tile_h(full, tc):
    kfull, wout = full.shape
    if tc >= wout:
        return full[None], [0]
    k_in = min(kfull, tc + 256)                 # 128-lane halo on each side
    blocks, starts = [], []
    for t in range(wout // tc):
        s = min(max(t * tc - 128, 0), kfull - k_in)
        outside = np.ones(kfull, bool)
        outside[s:s + k_in] = False
        assert not np.any(full[outside][:, t * tc:(t + 1) * tc]), "h halo too small"
        blocks.append(full[s:s + k_in, t * tc:(t + 1) * tc])
        starts.append(s)
    return np.stack(blocks), starts


def _tile_v(full, tr):
    hout, kfull = full.shape
    if tr >= hout:
        return full[None], [0]
    k_in = min(kfull, tr + 16)                  # 8-sublane halo on each side
    blocks, starts = [], []
    for t in range(hout // tr):
        s = min(max(t * tr - 8, 0), kfull - k_in)
        outside = np.ones(kfull, bool)
        outside[s:s + k_in] = False
        assert not np.any(full[t * tr:(t + 1) * tr][:, outside]), "v halo too small"
        blocks.append(full[t * tr:(t + 1) * tr, s:s + k_in])
        starts.append(s)
    return np.stack(blocks), starts


def _pick_col_tile(wp):
    for t in (256, 128):
        if wp % t == 0 and wp >= t + 512:       # only tile when it saves FLOPs
            return t
    return wp


def _pick_row_tile(hp):
    for t in (256, 128, 64):
        if hp % t == 0 and hp >= 2 * t:
            return t
    return hp


def _vmem_limit_bytes():
    try:
        cap = getattr(pltpu.get_tpu_info(), "vmem_capacity_bytes", None)
        if cap:
            return int(cap) * 3 // 4            # ~96 MiB v5e/v6e, ~48 MiB v7x
    except Exception:
        pass
    return 48 * 1024 * 1024


def _pick_images_per_step(n, hp, wp, vmem_budget):
    per_img = 40 * hp * wp * 4                  # rough live-VMEM per image in-kernel
    g_cap = max(1, int(vmem_budget * 0.6) // per_img)
    if n >= 2:
        g_cap = min(g_cap, n // 2)              # keep >=2 grid steps for megacore
    g_cap = max(1, min(g_cap, 8, n))
    for g in range(g_cap, 0, -1):
        if n % g == 0:
            return g
    return 1


# ----------------------------------------------------------------------------
# Kernel
# ----------------------------------------------------------------------------
def _make_kernel(H, W, Hp, Wp, G, h_starts, v_starts):
    n_ct, n_rt = len(h_starts), len(v_starts)

    def mm(a, b):
        return jnp.dot(a, b, preferred_element_type=jnp.float32)

    def kernel(a_ref, b_ref, f_ref,
               gh_ref, gv_ref, sxh_ref, sxv_ref, syh_ref, syv_ref,
               out_ref):
        gh = gh_ref[...]     # (n_ct, Kh, tc)   gaussian horizontal band blocks
        gv = gv_ref[...]     # (n_rt, tr, Kv)   gaussian vertical   band blocks
        sxh = sxh_ref[...]
        syh = syh_ref[...]
        sxv = sxv_ref[...]
        syv = syv_ref[...]
        kh = gh.shape[1]
        kv = gv.shape[2]

        def hconv(x, blocks):        # (R, Wp) -> (R, Wp), tiled over output cols
            if n_ct == 1:
                return mm(x, blocks[0])
            outs = []
            for t in range(n_ct):
                s = h_starts[t]
                outs.append(mm(x[:, s:s + kh], blocks[t]))
            return jnp.concatenate(outs, axis=1)

        def vconv(blocks, x):        # (Hp, C) -> (Hp, C), tiled over output rows
            if n_rt == 1:
                return mm(blocks[0], x)
            outs = []
            for t in range(n_rt):
                s = v_starts[t]
                outs.append(mm(blocks[t], x[s:s + kv, :]))
            return jnp.concatenate(outs, axis=0)

        a = a_ref[...]      # (G, Hp, Wp)
        b = b_ref[...]
        f = f_ref[...]

        # --------- Sobel |grad| sums (horizontal pass batched over 2G images) ----
        ab_rows = jnp.concatenate(
            [a.reshape(G * Hp, Wp), b.reshape(G * Hp, Wp)], axis=0)   # (2G*Hp, Wp)
        hx = hconv(ab_rows, sxh)
        hy = hconv(ab_rows, syh)
        sob = []
        for s_img in range(2 * G):
            r0 = s_img * Hp
            gx = vconv(sxv, hx[r0:r0 + Hp, :])
            gy = vconv(syv, hy[r0:r0 + Hp, :])
            # band matrices zero everything outside the valid HxW region, so a
            # plain sum is exact.
            sob.append(jnp.sum(jnp.abs(gx) + jnp.abs(gy)))
        sob_a = sum(sob[:G])
        sob_b = sum(sob[G:])

        # --------- Gaussian local statistics (vertical first, moments lane-stacked)
        mom_parts = [[] for _ in range(8)]
        for g in range(G):
            ag, bg, fg = a[g], b[g], f[g]
            mg = jnp.concatenate(
                [fg, fg * fg, ag, ag * ag, ag * fg, bg, bg * bg, bg * fg],
                axis=1)                                  # (Hp, 8*Wp)
            vg = vconv(gv, mg)                           # one matmul per image
            for m in range(8):
                mom_parts[m].append(vg[:, m * Wp:(m + 1) * Wp])
        mom = []
        for m in range(8):                               # one matmul per moment
            xm = mom_parts[m][0] if G == 1 else jnp.concatenate(mom_parts[m], axis=0)
            mom.append(hconv(xm, gh))                    # (G*Hp, Wp)
        mu_f, e_ff, mu_a, e_aa, e_af, mu_b, e_bb, e_bf = mom

        mu_f2 = mu_f * mu_f
        sigma_f = e_ff - mu_f2

        valid = None
        if Wp != W:
            c_idx = lax.broadcasted_iota(jnp.int32, (G * Hp, Wp), 1)
            valid = c_idx < W
        if Hp != H:
            r_in = lax.broadcasted_iota(jnp.int32, (G, Hp, Wp), 1).reshape(G * Hp, Wp)
            rm = r_in < H
            valid = rm if valid is None else (valid & rm)

        def ssim_sum(mu_x, e_xx, e_xf):
            mu_x2 = mu_x * mu_x
            mu_xf = mu_x * mu_f
            sigma_x = e_xx - mu_x2
            sigma_xf = e_xf - mu_xf
            num = (2.0 * mu_xf + C1) * (2.0 * sigma_xf + C2)
            den = (mu_x2 + mu_f2 + C1) * (sigma_x + sigma_f + C2)
            r = pl.reciprocal(den, approx=True)
            r = r * (2.0 - den * r)          # one Newton-Raphson step -> exact-ish divide
            smap = num * r
            if valid is not None:
                smap = jnp.where(valid, smap, 0.0)
            return jnp.sum(smap)

        ss_af = ssim_sum(mu_a, e_aa, e_af)
        ss_bf = ssim_sum(mu_b, e_bb, e_bf)

        # Lane-dense partial-sum slab: lanes 0..3 carry the 4 per-step scalars.
        lane = lax.broadcasted_iota(jnp.int32, (8, 128), 1)
        out_ref[...] = jnp.where(lane == 0, sob_a,
                        jnp.where(lane == 1, sob_b,
                         jnp.where(lane == 2, ss_af,
                          jnp.where(lane == 3, ss_bf, 0.0))))

    return kernel


# ----------------------------------------------------------------------------
# Wrapper
# ----------------------------------------------------------------------------
def l_ssim(image_A, image_B, image_fused):
    """JAX/Pallas equivalent of L_SSIM.forward. Inputs: NCHW float32."""
    B, C, H, W = image_A.shape
    assert C == 1, "Sobelxy uses a (1,1,3,3) weight; single-channel images required."
    assert image_B.shape == image_A.shape and image_fused.shape == image_A.shape
    N = B * C

    Hp = _round_up(H, 8)
    Wp = _round_up(W, 128)

    vmem_limit = _vmem_limit_bytes()
    G = _pick_images_per_step(N, Hp, Wp, vmem_limit)
    NB = N // G

    def prep(x):
        x = x.astype(jnp.float32).reshape(N, H, W)
        if Hp != H or Wp != W:
            x = jnp.pad(x, ((0, 0), (0, Hp - H), (0, Wp - W)))
        return x

    ap, bp, fp = prep(image_A), prep(image_B), prep(image_fused)

    tc = _pick_col_tile(Wp)
    tr = _pick_row_tile(Hp)

    gh_b, h_starts = _tile_h(_band_matrix_h(W, Wp, GAUSS, PAD), tc)
    sxh_b, _ = _tile_h(_band_matrix_h(W, Wp, SOBEL_H_X, 1), tc)
    syh_b, _ = _tile_h(_band_matrix_h(W, Wp, SOBEL_H_Y, 1), tc)
    gv_b, v_starts = _tile_v(_band_matrix_v(H, Hp, GAUSS, PAD), tr)
    sxv_b, _ = _tile_v(_band_matrix_v(H, Hp, SOBEL_V_X, 1), tr)
    syv_b, _ = _tile_v(_band_matrix_v(H, Hp, SOBEL_V_Y, 1), tr)

    kernel = _make_kernel(H, W, Hp, Wp, G, h_starts, v_starts)

    img_spec = pl.BlockSpec((G, Hp, Wp), lambda n: (n, 0, 0))

    def build_call(single_buffer_filters):
        def cspec(shape):
            if single_buffer_filters:
                return pl.BlockSpec(shape, lambda n: (0, 0, 0),
                                    pipeline_mode=pl.Buffered(1))
            return pl.BlockSpec(shape, lambda n: (0, 0, 0))

        return pl.pallas_call(
            kernel,
            grid=(NB,),
            out_shape=jax.ShapeDtypeStruct((NB, 8, 128), jnp.float32),
            in_specs=[img_spec, img_spec, img_spec,
                      cspec(gh_b.shape), cspec(gv_b.shape),
                      cspec(sxh_b.shape), cspec(sxv_b.shape),
                      cspec(syh_b.shape), cspec(syv_b.shape)],
            out_specs=pl.BlockSpec((None, 8, 128), lambda n: (n, 0, 0)),
            compiler_params=pltpu.CompilerParams(
                dimension_semantics=("parallel",),
                vmem_limit_bytes=vmem_limit),
        )

    args = (ap, bp, fp,
            jnp.asarray(gh_b), jnp.asarray(gv_b),
            jnp.asarray(sxh_b), jnp.asarray(sxv_b),
            jnp.asarray(syh_b), jnp.asarray(syv_b))
    try:
        partial = build_call(True)(*args)
    except Exception:
        # Fallback: double-buffered constant filters (costs VMEM, still correct).
        partial = build_call(False)(*args)

    # Tiny scalar finalize (identical to the PyTorch epilogue) in plain JAX.
    sums = jnp.sum(partial[:, 0, :4], axis=0)
    scale = 1.0 / float(N * H * W)
    mean_grad_a = sums[0] * scale
    mean_grad_b = sums[1] * scale
    ssim_af = sums[2] * scale
    ssim_bf = sums[3] * scale
    denom = mean_grad_a + mean_grad_b   # PyTorch parity: no epsilon
    weight_a = mean_grad_a / denom
    weight_b = mean_grad_b / denom
    return weight_a * ssim_af + weight_b * ssim_bf


if __name__ == "__main__":
    key = jax.random.PRNGKey(0)
    kA, kB, kF = jax.random.split(key, 3)
    # Sobelxy's (1,1,3,3) weight requires single-channel images.
    shape = (2, 1, 16, 16)
    image_A = jax.random.uniform(kA, shape, dtype=jnp.float32)
    image_B = jax.random.uniform(kB, shape, dtype=jnp.float32)
    image_fused = jax.random.uniform(kF, shape, dtype=jnp.float32)

    loss = jax.block_until_ready(l_ssim(image_A, image_B, image_fused))
    assert loss.shape == () and bool(jnp.isfinite(loss))
    print("KERNEL_OK")
</pallas_src>

<mosaic_0001>
module attributes {stable_mosaic.version = 11 : i64} {
  func.func @kernel(%arg0: i32, %arg1: memref<1x16x128xf32, #tpu.memory_space<vmem>>, %arg2: memref<1x16x128xf32, #tpu.memory_space<vmem>>, %arg3: memref<1x16x128xf32, #tpu.memory_space<vmem>>, %arg4: memref<1x128x128xf32, #tpu.memory_space<vmem>>, %arg5: memref<1x16x16xf32, #tpu.memory_space<vmem>>, %arg6: memref<1x128x128xf32, #tpu.memory_space<vmem>>, %arg7: memref<1x16x16xf32, #tpu.memory_space<vmem>>, %arg8: memref<1x128x128xf32, #tpu.memory_space<vmem>>, %arg9: memref<1x16x16xf32, #tpu.memory_space<vmem>>, %arg10: memref<1x8x128xf32, #tpu.memory_space<vmem>>) attributes {dimension_semantics = [#tpu.dimension_semantics<parallel>], iteration_bounds = array<i64: 2>, scalar_prefetch = 0 : i64, scratch_operands = 0 : i64, tpu.core_type = #tpu.core_type<tc>, window_params = [{transform_indices = @transform_0, window_bounds = array<i64: 1, 16, 128>}, {transform_indices = @transform_1, window_bounds = array<i64: 1, 16, 128>}, {transform_indices = @transform_2, window_bounds = array<i64: 1, 16, 128>}, {pipeline_mode = #tpu.pipeline_mode<synchronous>, transform_indices = @transform_3, window_bounds = array<i64: 1, 128, 128>}, {pipeline_mode = #tpu.pipeline_mode<synchronous>, transform_indices = @transform_4, window_bounds = array<i64: 1, 16, 16>}, {pipeline_mode = #tpu.pipeline_mode<synchronous>, transform_indices = @transform_5, window_bounds = array<i64: 1, 128, 128>}, {pipeline_mode = #tpu.pipeline_mode<synchronous>, transform_indices = @transform_6, window_bounds = array<i64: 1, 16, 16>}, {pipeline_mode = #tpu.pipeline_mode<synchronous>, transform_indices = @transform_7, window_bounds = array<i64: 1, 128, 128>}, {pipeline_mode = #tpu.pipeline_mode<synchronous>, transform_indices = @transform_8, window_bounds = array<i64: 1, 16, 16>}, {transform_indices = @transform_9, window_bounds = array<i64: 1, 8, 128>}]} {
    %c0 = arith.constant 0 : index
    %c0_0 = arith.constant 0 : index
    %c0_1 = arith.constant 0 : index
    %0 = vector.load %arg4[%c0, %c0_0, %c0_1] : memref<1x128x128xf32, #tpu.memory_space<vmem>>, vector<1x128x128xf32>
    %c0_2 = arith.constant 0 : index
    %c0_3 = arith.constant 0 : index
    %c0_4 = arith.constant 0 : index
    %1 = vector.load %arg5[%c0_2, %c0_3, %c0_4] : memref<1x16x16xf32, #tpu.memory_space<vmem>>, vector<1x16x16xf32>
    %c0_5 = arith.constant 0 : index
    %c0_6 = arith.constant 0 : index
    %c0_7 = arith.constant 0 : index
    %2 = vector.load %arg6[%c0_5, %c0_6, %c0_7] : memref<1x128x128xf32, #tpu.memory_space<vmem>>, vector<1x128x128xf32>
    %c0_8 = arith.constant 0 : index
    %c0_9 = arith.constant 0 : index
    %c0_10 = arith.constant 0 : index
    %3 = vector.load %arg8[%c0_8, %c0_9, %c0_10] : memref<1x128x128xf32, #tpu.memory_space<vmem>>, vector<1x128x128xf32>
    %c0_11 = arith.constant 0 : index
    %c0_12 = arith.constant 0 : index
    %c0_13 = arith.constant 0 : index
    %4 = vector.load %arg7[%c0_11, %c0_12, %c0_13] : memref<1x16x16xf32, #tpu.memory_space<vmem>>, vector<1x16x16xf32>
    %c0_14 = arith.constant 0 : index
    %c0_15 = arith.constant 0 : index
    %c0_16 = arith.constant 0 : index
    %5 = vector.load %arg9[%c0_14, %c0_15, %c0_16] : memref<1x16x16xf32, #tpu.memory_space<vmem>>, vector<1x16x16xf32>
    %c0_17 = arith.constant 0 : index
    %c0_18 = arith.constant 0 : index
    %c0_19 = arith.constant 0 : index
    %6 = vector.load %arg1[%c0_17, %c0_18, %c0_19] : memref<1x16x128xf32, #tpu.memory_space<vmem>>, vector<1x16x128xf32>
    %c0_20 = arith.constant 0 : index
    %c0_21 = arith.constant 0 : index
    %c0_22 = arith.constant 0 : index
    %7 = vector.load %arg2[%c0_20, %c0_21, %c0_22] : memref<1x16x128xf32, #tpu.memory_space<vmem>>, vector<1x16x128xf32>
    %c0_23 = arith.constant 0 : index
    %c0_24 = arith.constant 0 : index
    %c0_25 = arith.constant 0 : index
    %8 = vector.load %arg3[%c0_23, %c0_24, %c0_25] : memref<1x16x128xf32, #tpu.memory_space<vmem>>, vector<1x16x128xf32>
    %9 = vector.shape_cast %6 : vector<1x16x128xf32> to vector<16x128xf32>
    %10 = vector.shape_cast %7 : vector<1x16x128xf32> to vector<16x128xf32>
    %11 = tpu.concatenate %9, %10 in 0 : vector<16x128xf32>, vector<16x128xf32> -> vector<32x128xf32>
    %12 = vector.shape_cast %2 : vector<1x128x128xf32> to vector<128x128xf32>
    %cst = arith.constant dense<0.000000e+00> : vector<32x128xf32>
    %13 = tpu.matmul %11, %12, %cst {dimension_numbers = #tpu.dot_dimension_numbers<[1], [0], [0], [1], [0, 0, 1, 1], [], []>} : vector<32x128xf32>, vector<128x128xf32>, vector<32x128xf32> -> vector<32x128xf32>
    %14 = vector.shape_cast %3 : vector<1x128x128xf32> to vector<128x128xf32>
    %cst_26 = arith.constant dense<0.000000e+00> : vector<32x128xf32>
    %15 = tpu.matmul %11, %14, %cst_26 {dimension_numbers = #tpu.dot_dimension_numbers<[1], [0], [0], [1], [0, 0, 1, 1], [], []>} : vector<32x128xf32>, vector<128x128xf32>, vector<32x128xf32> -> vector<32x128xf32>
    %16 = vector.extract_strided_slice %13 {offsets = [0, 0], sizes = [16, 128], strides = [1, 1]} : vector<32x128xf32> to vector<16x128xf32>
    %17 = vector.shape_cast %4 : vector<1x16x16xf32> to vector<16x16xf32>
    %cst_27 = arith.constant dense<0.000000e+00> : vector<16x128xf32>
    %18 = tpu.matmul %17, %16, %cst_27 {dimension_numbers = #tpu.dot_dimension_numbers<[1], [0], [0], [1], [0, 0, 1, 1], [], []>} : vector<16x16xf32>, vector<16x128xf32>, vector<16x128xf32> -> vector<16x128xf32>
    %19 = vector.extract_strided_slice %15 {offsets = [0, 0], sizes = [16, 128], strides = [1, 1]} : vector<32x128xf32> to vector<16x128xf32>
    %20 = vector.shape_cast %5 : vector<1x16x16xf32> to vector<16x16xf32>
    %cst_28 = arith.constant dense<0.000000e+00> : vector<16x128xf32>
    %21 = tpu.matmul %20, %19, %cst_28 {dimension_numbers = #tpu.dot_dimension_numbers<[1], [0], [0], [1], [0, 0, 1, 1], [], []>} : vector<16x16xf32>, vector<16x128xf32>, vector<16x128xf32> -> vector<16x128xf32>
    %22 = math.absf %18 : vector<16x128xf32>
    %23 = math.absf %21 : vector<16x128xf32>
    %24 = arith.addf %22, %23 : vector<16x128xf32>
    %25 = vector.shape_cast %24 : vector<16x128xf32> to vector<1x16x128xf32>
    %cst_29 = arith.constant dense<0.000000e+00> : vector<1xf32>
    %26 = vector.multi_reduction <add>, %25, %cst_29 [1, 2] : vector<1x16x128xf32> to vector<1xf32>
    %27 = vector.shape_cast %26 : vector<1xf32> to vector<1x1x1xf32>
    %28 = vector.extract %27[0, 0, 0] : f32 from vector<1x1x1xf32>
    %29 = vector.extract_strided_slice %13 {offsets = [16, 0], sizes = [16, 128], strides = [1, 1]} : vector<32x128xf32> to vector<16x128xf32>
    %30 = vector.shape_cast %4 : vector<1x16x16xf32> to vector<16x16xf32>
    %cst_30 = arith.constant dense<0.000000e+00> : vector<16x128xf32>
    %31 = tpu.matmul %30, %29, %cst_30 {dimension_numbers = #tpu.dot_dimension_numbers<[1], [0], [0], [1], [0, 0, 1, 1], [], []>} : vector<16x16xf32>, vector<16x128xf32>, vector<16x128xf32> -> vector<16x128xf32>
    %32 = vector.extract_strided_slice %15 {offsets = [16, 0], sizes = [16, 128], strides = [1, 1]} : vector<32x128xf32> to vector<16x128xf32>
    %33 = vector.shape_cast %5 : vector<1x16x16xf32> to vector<16x16xf32>
    %cst_31 = arith.constant dense<0.000000e+00> : vector<16x128xf32>
    %34 = tpu.matmul %33, %32, %cst_31 {dimension_numbers = #tpu.dot_dimension_numbers<[1], [0], [0], [1], [0, 0, 1, 1], [], []>} : vector<16x16xf32>, vector<16x128xf32>, vector<16x128xf32> -> vector<16x128xf32>
    %35 = math.absf %31 : vector<16x128xf32>
    %36 = math.absf %34 : vector<16x128xf32>
    %37 = arith.addf %35, %36 : vector<16x128xf32>
    %38 = vector.shape_cast %37 : vector<16x128xf32> to vector<1x16x128xf32>
    %cst_32 = arith.constant dense<0.000000e+00> : vector<1xf32>
    %39 = vector.multi_reduction <add>, %38, %cst_32 [1, 2] : vector<1x16x128xf32> to vector<1xf32>
    %40 = vector.shape_cast %39 : vector<1xf32> to vector<1x1x1xf32>
    %41 = vector.extract %40[0, 0, 0] : f32 from vector<1x1x1xf32>
    %cst_33 = arith.constant 0.000000e+00 : f32
    %42 = arith.addf %cst_33, %28 : f32
    %cst_34 = arith.constant 0.000000e+00 : f32
    %43 = arith.addf %cst_34, %41 : f32
    %44 = vector.shape_cast %6 : vector<1x16x128xf32> to vector<16x128xf32>
    %45 = vector.shape_cast %7 : vector<1x16x128xf32> to vector<16x128xf32>
    %46 = vector.shape_cast %8 : vector<1x16x128xf32> to vector<16x128xf32>
    %47 = arith.mulf %46, %46 : vector<16x128xf32>
    %48 = arith.mulf %44, %44 : vector<16x128xf32>
    %49 = arith.mulf %44, %46 : vector<16x128xf32>
    %50 = arith.mulf %45, %45 : vector<16x128xf32>
    %51 = arith.mulf %45, %46 : vector<16x128xf32>
    %52 = tpu.concatenate %46, %47, %44, %48, %49, %45, %50, %51 in 1 : vector<16x128xf32>, vector<16x128xf32>, vector<16x128xf32>, vector<16x128xf32>, vector<16x128xf32>, vector<16x128xf32>, vector<16x128xf32>, vector<16x128xf32> -> vector<16x1024xf32>
    %53 = vector.shape_cast %1 : vector<1x16x16xf32> to vector<16x16xf32>
    %cst_35 = arith.constant dense<0.000000e+00> : vector<16x1024xf32>
    %54 = tpu.matmul %53, %52, %cst_35 {dimension_numbers = #tpu.dot_dimension_numbers<[1], [0], [0], [1], [0, 0, 1, 1], [], []>} : vector<16x16xf32>, vector<16x1024xf32>, vector<16x1024xf32> -> vector<16x1024xf32>
    %55 = vector.extract_strided_slice %54 {offsets = [0, 0], sizes = [16, 128], strides = [1, 1]} : vector<16x1024xf32> to vector<16x128xf32>
    %56 = vector.extract_strided_slice %54 {offsets = [0, 128], sizes = [16, 128], strides = [1, 1]} : vector<16x1024xf32> to vector<16x128xf32>
    %57 = vector.extract_strided_slice %54 {offsets = [0, 256], sizes = [16, 128], strides = [1, 1]} : vector<16x1024xf32> to vector<16x128xf32>
    %58 = vector.extract_strided_slice %54 {offsets = [0, 384], sizes = [16, 128], strides = [1, 1]} : vector<16x1024xf32> to vector<16x128xf32>
    %59 = vector.extract_strided_slice %54 {offsets = [0, 512], sizes = [16, 128], strides = [1, 1]} : vector<16x1024xf32> to vector<16x128xf32>
    %60 = vector.extract_strided_slice %54 {offsets = [0, 640], sizes = [16, 128], strides = [1, 1]} : vector<16x1024xf32> to vector<16x128xf32>
    %61 = vector.extract_strided_slice %54 {offsets = [0, 768], sizes = [16, 128], strides = [1, 1]} : vector<16x1024xf32> to vector<16x128xf32>
    %62 = vector.extract_strided_slice %54 {offsets = [0, 896], sizes = [16, 128], strides = [1, 1]} : vector<16x1024xf32> to vector<16x128xf32>
    %63 = vector.shape_cast %0 : vector<1x128x128xf32> to vector<128x128xf32>
    %cst_36 = arith.constant dense<0.000000e+00> : vector<16x128xf32>
    %64 = tpu.matmul %55, %63, %cst_36 {dimension_numbers = #tpu.dot_dimension_numbers<[1], [0], [0], [1], [0, 0, 1, 1], [], []>} : vector<16x128xf32>, vector<128x128xf32>, vector<16x128xf32> -> vector<16x128xf32>
    %65 = vector.shape_cast %0 : vector<1x128x128xf32> to vector<128x128xf32>
    %cst_37 = arith.constant dense<0.000000e+00> : vector<16x128xf32>
    %66 = tpu.matmul %56, %65, %cst_37 {dimension_numbers = #tpu.dot_dimension_numbers<[1], [0], [0], [1], [0, 0, 1, 1], [], []>} : vector<16x128xf32>, vector<128x128xf32>, vector<16x128xf32> -> vector<16x128xf32>
    %67 = vector.shape_cast %0 : vector<1x128x128xf32> to vector<128x128xf32>
    %cst_38 = arith.constant dense<0.000000e+00> : vector<16x128xf32>
    %68 = tpu.matmul %57, %67, %cst_38 {dimension_numbers = #tpu.dot_dimension_numbers<[1], [0], [0], [1], [0, 0, 1, 1], [], []>} : vector<16x128xf32>, vector<128x128xf32>, vector<16x128xf32> -> vector<16x128xf32>
    %69 = vector.shape_cast %0 : vector<1x128x128xf32> to vector<128x128xf32>
    %cst_39 = arith.constant dense<0.000000e+00> : vector<16x128xf32>
    %70 = tpu.matmul %58, %69, %cst_39 {dimension_numbers = #tpu.dot_dimension_numbers<[1], [0], [0], [1], [0, 0, 1, 1], [], []>} : vector<16x128xf32>, vector<128x128xf32>, vector<16x128xf32> -> vector<16x128xf32>
    %71 = vector.shape_cast %0 : vector<1x128x128xf32> to vector<128x128xf32>
    %cst_40 = arith.constant dense<0.000000e+00> : vector<16x128xf32>
    %72 = tpu.matmul %59, %71, %cst_40 {dimension_numbers = #tpu.dot_dimension_numbers<[1], [0], [0], [1], [0, 0, 1, 1], [], []>} : vector<16x128xf32>, vector<128x128xf32>, vector<16x128xf32> -> vector<16x128xf32>
    %73 = vector.shape_cast %0 : vector<1x128x128xf32> to vector<128x128xf32>
    %cst_41 = arith.constant dense<0.000000e+00> : vector<16x128xf32>
    %74 = tpu.matmul %60, %73, %cst_41 {dimension_numbers = #tpu.dot_dimension_numbers<[1], [0], [0], [1], [0, 0, 1, 1], [], []>} : vector<16x128xf32>, vector<128x128xf32>, vector<16x128xf32> -> vector<16x128xf32>
    %75 = vector.shape_cast %0 : vector<1x128x128xf32> to vector<128x128xf32>
    %cst_42 = arith.constant dense<0.000000e+00> : vector<16x128xf32>
    %76 = tpu.matmul %61, %75, %cst_42 {dimension_numbers = #tpu.dot_dimension_numbers<[1], [0], [0], [1], [0, 0, 1, 1], [], []>} : vector<16x128xf32>, vector<128x128xf32>, vector<16x128xf32> -> vector<16x128xf32>
    %77 = vector.shape_cast %0 : vector<1x128x128xf32> to vector<128x128xf32>
    %cst_43 = arith.constant dense<0.000000e+00> : vector<16x128xf32>
    %78 = tpu.matmul %62, %77, %cst_43 {dimension_numbers = #tpu.dot_dimension_numbers<[1], [0], [0], [1], [0, 0, 1, 1], [], []>} : vector<16x128xf32>, vector<128x128xf32>, vector<16x128xf32> -> vector<16x128xf32>
    %79 = arith.mulf %64, %64 : vector<16x128xf32>
    %80 = arith.subf %66, %79 : vector<16x128xf32>
    %81 = tpu.iota {dimensions = array<i32: 1>} : vector<16x128xi32>
    %c16_i32 = arith.constant 16 : i32
    %82 = vector.broadcast %c16_i32 : i32 to vector<16x128xi32>
    %83 = arith.cmpi slt, %81, %82 : vector<16x128xi32>
    %84 = arith.mulf %68, %68 : vector<16x128xf32>
    %85 = arith.mulf %68, %64 : vector<16x128xf32>
    %86 = arith.subf %70, %84 : vector<16x128xf32>
    %87 = arith.subf %72, %85 : vector<16x128xf32>
    %cst_44 = arith.constant 2.000000e+00 : f32
    %88 = vector.broadcast %cst_44 : f32 to vector<16x128xf32>
    %89 = arith.mulf %88, %85 : vector<16x128xf32>
    %cst_45 = arith.constant 9.99999974E-5 : f32
    %90 = vector.broadcast %cst_45 : f32 to vector<16x128xf32>
    %91 = arith.addf %89, %90 : vector<16x128xf32>
    %cst_46 = arith.constant 2.000000e+00 : f32
    %92 = vector.broadcast %cst_46 : f32 to vector<16x128xf32>
    %93 = arith.mulf %92, %87 : vector<16x128xf32>
    %cst_47 = arith.constant 8.99999984E-4 : f32
    %94 = vector.broadcast %cst_47 : f32 to vector<16x128xf32>
    %95 = arith.addf %93, %94 : vector<16x128xf32>
    %96 = arith.mulf %91, %95 : vector<16x128xf32>
    %97 = arith.addf %84, %79 : vector<16x128xf32>
    %cst_48 = arith.constant 9.99999974E-5 : f32
    %98 = vector.broadcast %cst_48 : f32 to vector<16x128xf32>
    %99 = arith.addf %97, %98 : vector<16x128xf32>
    %100 = arith.addf %86, %80 : vector<16x128xf32>
    %cst_49 = arith.constant 8.99999984E-4 : f32
    %101 = vector.broadcast %cst_49 : f32 to vector<16x128xf32>
    %102 = arith.addf %100, %101 : vector<16x128xf32>
    %103 = arith.mulf %99, %102 : vector<16x128xf32>
    %104 = tpu.reciprocal %103 {approx = true} : vector<16x128xf32> -> vector<16x128xf32>
    %105 = arith.mulf %103, %104 : vector<16x128xf32>
    %cst_50 = arith.constant 2.000000e+00 : f32
    %106 = vector.broadcast %cst_50 : f32 to vector<16x128xf32>
    %107 = arith.subf %106, %105 : vector<16x128xf32>
    %108 = arith.mulf %104, %107 : vector<16x128xf32>
    %109 = arith.mulf %96, %108 : vector<16x128xf32>
    %cst_51 = arith.constant 0.000000e+00 : f32
    %110 = vector.broadcast %cst_51 : f32 to vector<16x128xf32>
    %111 = arith.select %83, %109, %110 : vector<16x128xi1>, vector<16x128xf32>
    %112 = vector.shape_cast %111 : vector<16x128xf32> to vector<1x16x128xf32>
    %cst_52 = arith.constant dense<0.000000e+00> : vector<1xf32>
    %113 = vector.multi_reduction <add>, %112, %cst_52 [1, 2] : vector<1x16x128xf32> to vector<1xf32>
    %114 = vector.shape_cast %113 : vector<1xf32> to vector<1x1x1xf32>
    %115 = vector.extract %114[0, 0, 0] : f32 from vector<1x1x1xf32>
    %116 = arith.mulf %74, %74 : vector<16x128xf32>
    %117 = arith.mulf %74, %64 : vector<16x128xf32>
    %118 = arith.subf %76, %116 : vector<16x128xf32>
    %119 = arith.subf %78, %117 : vector<16x128xf32>
    %cst_53 = arith.constant 2.000000e+00 : f32
    %120 = vector.broadcast %cst_53 : f32 to vector<16x128xf32>
    %121 = arith.mulf %120, %117 : vector<16x128xf32>
    %cst_54 = arith.constant 9.99999974E-5 : f32
    %122 = vector.broadcast %cst_54 : f32 to vector<16x128xf32>
    %123 = arith.addf %121, %122 : vector<16x128xf32>
    %cst_55 = arith.constant 2.000000e+00 : f32
    %124 = vector.broadcast %cst_55 : f32 to vector<16x128xf32>
    %125 = arith.mulf %124, %119 : vector<16x128xf32>
    %cst_56 = arith.constant 8.99999984E-4 : f32
    %126 = vector.broadcast %cst_56 : f32 to vector<16x128xf32>
    %127 = arith.addf %125, %126 : vector<16x128xf32>
    %128 = arith.mulf %123, %127 : vector<16x128xf32>
    %129 = arith.addf %116, %79 : vector<16x128xf32>
    %cst_57 = arith.constant 9.99999974E-5 : f32
    %130 = vector.broadcast %cst_57 : f32 to vector<16x128xf32>
    %131 = arith.addf %129, %130 : vector<16x128xf32>
    %132 = arith.addf %118, %80 : vector<16x128xf32>
    %cst_58 = arith.constant 8.99999984E-4 : f32
    %133 = vector.broadcast %cst_58 : f32 to vector<16x128xf32>
    %134 = arith.addf %132, %133 : vector<16x128xf32>
    %135 = arith.mulf %131, %134 : vector<16x128xf32>
    %136 = tpu.reciprocal %135 {approx = true} : vector<16x128xf32> -> vector<16x128xf32>
    %137 = arith.mulf %135, %136 : vector<16x128xf32>
    %cst_59 = arith.constant 2.000000e+00 : f32
    %138 = vector.broadcast %cst_59 : f32 to vector<16x128xf32>
    %139 = arith.subf %138, %137 : vector<16x128xf32>
    %140 = arith.mulf %136, %139 : vector<16x128xf32>
    %141 = arith.mulf %128, %140 : vector<16x128xf32>
    %cst_60 = arith.constant 0.000000e+00 : f32
    %142 = vector.broadcast %cst_60 : f32 to vector<16x128xf32>
    %143 = arith.select %83, %141, %142 : vector<16x128xi1>, vector<16x128xf32>
    %144 = vector.shape_cast %143 : vector<16x128xf32> to vector<1x16x128xf32>
    %cst_61 = arith.constant dense<0.000000e+00> : vector<1xf32>
    %145 = vector.multi_reduction <add>, %144, %cst_61 [1, 2] : vector<1x16x128xf32> to vector<1xf32>
    %146 = vector.shape_cast %145 : vector<1xf32> to vector<1x1x1xf32>
    %147 = vector.extract %146[0, 0, 0] : f32 from vector<1x1x1xf32>
    %148 = tpu.iota {dimensions = array<i32: 1>} : vector<8x128xi32>
    %c0_i32 = arith.constant 0 : i32
    %149 = vector.broadcast %c0_i32 : i32 to vector<8x128xi32>
    %150 = arith.cmpi eq, %148, %149 : vector<8x128xi32>
    %c1_i32 = arith.constant 1 : i32
    %151 = vector.broadcast %c1_i32 : i32 to vector<8x128xi32>
    %152 = arith.cmpi eq, %148, %151 : vector<8x128xi32>
    %c2_i32 = arith.constant 2 : i32
    %153 = vector.broadcast %c2_i32 : i32 to vector<8x128xi32>
    %154 = arith.cmpi eq, %148, %153 : vector<8x128xi32>
    %c3_i32 = arith.constant 3 : i32
    %155 = vector.broadcast %c3_i32 : i32 to vector<8x128xi32>
    %156 = arith.cmpi eq, %148, %155 : vector<8x128xi32>
    %cst_62 = arith.constant 0.000000e+00 : f32
    %157 = vector.broadcast %147 : f32 to vector<8x128xf32>
    %158 = vector.broadcast %cst_62 : f32 to vector<8x128xf32>
    %159 = arith.select %156, %157, %158 : vector<8x128xi1>, vector<8x128xf32>
    %160 = vector.broadcast %115 : f32 to vector<8x128xf32>
    %161 = arith.select %154, %160, %159 : vector<8x128xi1>, vector<8x128xf32>
    %162 = vector.broadcast %43 : f32 to vector<8x128xf32>
    %163 = arith.select %152, %162, %161 : vector<8x128xi1>, vector<8x128xf32>
    %164 = vector.broadcast %42 : f32 to vector<8x128xf32>
    %165 = arith.select %150, %164, %163 : vector<8x128xi1>, vector<8x128xf32>
    %c0_63 = arith.constant 0 : index
    %c0_64 = arith.constant 0 : index
    %c0_65 = arith.constant 0 : index
    %166 = vector.load %arg10[%c0_63, %c0_64, %c0_65] : memref<1x8x128xf32, #tpu.memory_space<vmem>>, vector<1x8x128xf32>
    %167 = vector.shape_cast %166 : vector<1x8x128xf32> to vector<8x128xf32>
    %168 = vector.shape_cast %165 : vector<8x128xf32> to vector<1x8x128xf32>
    tpu.vector_store %arg10[%c0_63, %c0_64, %c0_65], %168 {strides = array<i32>} : memref<1x8x128xf32, #tpu.memory_space<vmem>>, vector<1x8x128xf32>,
    return
  }
  func.func @transform_0(%arg0: i32) -> (i32, i32, i32) {
    %c0_i32 = arith.constant 0 : i32
    %c0_i32_0 = arith.constant 0 : i32
    %c0_i32_1 = arith.constant 0 : i32
    return %arg0, %c0_i32, %c0_i32_0 : i32, i32, i32
  }
  func.func @transform_1(%arg0: i32) -> (i32, i32, i32) {
    %c0_i32 = arith.constant 0 : i32
    %c0_i32_0 = arith.constant 0 : i32
    %c0_i32_1 = arith.constant 0 : i32
    return %arg0, %c0_i32, %c0_i32_0 : i32, i32, i32
  }
  func.func @transform_2(%arg0: i32) -> (i32, i32, i32) {
    %c0_i32 = arith.constant 0 : i32
    %c0_i32_0 = arith.constant 0 : i32
    %c0_i32_1 = arith.constant 0 : i32
    return %arg0, %c0_i32, %c0_i32_0 : i32, i32, i32
  }
  func.func @transform_3(%arg0: i32) -> (i32, i32, i32) {
    %c0_i32 = arith.constant 0 : i32
    %c0_i32_0 = arith.constant 0 : i32
    %c0_i32_1 = arith.constant 0 : i32
    %c0_i32_2 = arith.constant 0 : i32
    return %c0_i32, %c0_i32_0, %c0_i32_1 : i32, i32, i32
  }
  func.func @transform_4(%arg0: i32) -> (i32, i32, i32) {
    %c0_i32 = arith.constant 0 : i32
    %c0_i32_0 = arith.constant 0 : i32
    %c0_i32_1 = arith.constant 0 : i32
    %c0_i32_2 = arith.constant 0 : i32
    return %c0_i32, %c0_i32_0, %c0_i32_1 : i32, i32, i32
  }
  func.func @transform_5(%arg0: i32) -> (i32, i32, i32) {
    %c0_i32 = arith.constant 0 : i32
    %c0_i32_0 = arith.constant 0 : i32
    %c0_i32_1 = arith.constant 0 : i32
    %c0_i32_2 = arith.constant 0 : i32
    return %c0_i32, %c0_i32_0, %c0_i32_1 : i32, i32, i32
  }
  func.func @transform_6(%arg0: i32) -> (i32, i32, i32) {
    %c0_i32 = arith.constant 0 : i32
    %c0_i32_0 = arith.constant 0 : i32
    %c0_i32_1 = arith.constant 0 : i32
    %c0_i32_2 = arith.constant 0 : i32
    return %c0_i32, %c0_i32_0, %c0_i32_1 : i32, i32, i32
  }
  func.func @transform_7(%arg0: i32) -> (i32, i32, i32) {
    %c0_i32 = arith.constant 0 : i32
    %c0_i32_0 = arith.constant 0 : i32
    %c0_i32_1 = arith.constant 0 : i32
    %c0_i32_2 = arith.constant 0 : i32
    return %c0_i32, %c0_i32_0, %c0_i32_1 : i32, i32, i32
  }
  func.func @transform_8(%arg0: i32) -> (i32, i32, i32) {
    %c0_i32 = arith.constant 0 : i32
    %c0_i32_0 = arith.constant 0 : i32
    %c0_i32_1 = arith.constant 0 : i32
    %c0_i32_2 = arith.constant 0 : i32
    return %c0_i32, %c0_i32_0, %c0_i32_1 : i32, i32, i32
  }
  func.func @transform_9(%arg0: i32) -> (i32, i32, i32) {
    %c0_i32 = arith.constant 0 : i32
    %c0_i32_0 = arith.constant 0 : i32
    %c0_i32_1 = arith.constant 0 : i32
    return %arg0, %c0_i32, %c0_i32_0 : i32, i32, i32
  }
}

module attributes {stable_mosaic.version = 11 : i64} {
  func.func @kernel(%arg0: i32, %arg1: memref<1x16x128xf32, #tpu.memory_space<vmem>>, %arg2: memref<1x16x128xf32, #tpu.memory_space<vmem>>, %arg3: memref<1x16x128xf32, #tpu.memory_space<vmem>>, %arg4: memref<1x128x128xf32, #tpu.memory_space<vmem>>, %arg5: memref<1x16x16xf32, #tpu.memory_space<vmem>>, %arg6: memref<1x128x128xf32, #tpu.memory_space<vmem>>, %arg7: memref<1x16x16xf32, #tpu.memory_space<vmem>>, %arg8: memref<1x128x128xf32, #tpu.memory_space<vmem>>, %arg9: memref<1x16x16xf32, #tpu.memory_space<vmem>>, %arg10: memref<1x8x128xf32, #tpu.memory_space<vmem>>) attributes {dimension_semantics = [#tpu.dimension_semantics<parallel>], iteration_bounds = array<i64: 2>, scalar_prefetch = 0 : i64, scratch_operands = 0 : i64, tpu.core_type = #tpu.core_type<tc>, window_params = [{transform_indices = @transform_0, window_bounds = array<i64: 1, 16, 128>}, {transform_indices = @transform_1, window_bounds = array<i64: 1, 16, 128>}, {transform_indices = @transform_2, window_bounds = array<i64: 1, 16, 128>}, {pipeline_mode = #tpu.pipeline_mode<synchronous>, transform_indices = @transform_3, window_bounds = array<i64: 1, 128, 128>}, {pipeline_mode = #tpu.pipeline_mode<synchronous>, transform_indices = @transform_4, window_bounds = array<i64: 1, 16, 16>}, {pipeline_mode = #tpu.pipeline_mode<synchronous>, transform_indices = @transform_5, window_bounds = array<i64: 1, 128, 128>}, {pipeline_mode = #tpu.pipeline_mode<synchronous>, transform_indices = @transform_6, window_bounds = array<i64: 1, 16, 16>}, {pipeline_mode = #tpu.pipeline_mode<synchronous>, transform_indices = @transform_7, window_bounds = array<i64: 1, 128, 128>}, {pipeline_mode = #tpu.pipeline_mode<synchronous>, transform_indices = @transform_8, window_bounds = array<i64: 1, 16, 16>}, {transform_indices = @transform_9, window_bounds = array<i64: 1, 8, 128>}]} {
    %c0 = arith.constant 0 : index
    %c0_0 = arith.constant 0 : index
    %c0_1 = arith.constant 0 : index
    %0 = vector.load %arg4[%c0, %c0_0, %c0_1] : memref<1x128x128xf32, #tpu.memory_space<vmem>>, vector<1x128x128xf32>
    %c0_2 = arith.constant 0 : index
    %c0_3 = arith.constant 0 : index
    %c0_4 = arith.constant 0 : index
    %1 = vector.load %arg5[%c0_2, %c0_3, %c0_4] : memref<1x16x16xf32, #tpu.memory_space<vmem>>, vector<1x16x16xf32>
    %c0_5 = arith.constant 0 : index
    %c0_6 = arith.constant 0 : index
    %c0_7 = arith.constant 0 : index
    %2 = vector.load %arg6[%c0_5, %c0_6, %c0_7] : memref<1x128x128xf32, #tpu.memory_space<vmem>>, vector<1x128x128xf32>
    %c0_8 = arith.constant 0 : index
    %c0_9 = arith.constant 0 : index
    %c0_10 = arith.constant 0 : index
    %3 = vector.load %arg8[%c0_8, %c0_9, %c0_10] : memref<1x128x128xf32, #tpu.memory_space<vmem>>, vector<1x128x128xf32>
    %c0_11 = arith.constant 0 : index
    %c0_12 = arith.constant 0 : index
    %c0_13 = arith.constant 0 : index
    %4 = vector.load %arg7[%c0_11, %c0_12, %c0_13] : memref<1x16x16xf32, #tpu.memory_space<vmem>>, vector<1x16x16xf32>
    %c0_14 = arith.constant 0 : index
    %c0_15 = arith.constant 0 : index
    %c0_16 = arith.constant 0 : index
    %5 = vector.load %arg9[%c0_14, %c0_15, %c0_16] : memref<1x16x16xf32, #tpu.memory_space<vmem>>, vector<1x16x16xf32>
    %c0_17 = arith.constant 0 : index
    %c0_18 = arith.constant 0 : index
    %c0_19 = arith.constant 0 : index
    %6 = vector.load %arg1[%c0_17, %c0_18, %c0_19] : memref<1x16x128xf32, #tpu.memory_space<vmem>>, vector<1x16x128xf32>
    %c0_20 = arith.constant 0 : index
    %c0_21 = arith.constant 0 : index
    %c0_22 = arith.constant 0 : index
    %7 = vector.load %arg2[%c0_20, %c0_21, %c0_22] : memref<1x16x128xf32, #tpu.memory_space<vmem>>, vector<1x16x128xf32>
    %c0_23 = arith.constant 0 : index
    %c0_24 = arith.constant 0 : index
    %c0_25 = arith.constant 0 : index
    %8 = vector.load %arg3[%c0_23, %c0_24, %c0_25] : memref<1x16x128xf32, #tpu.memory_space<vmem>>, vector<1x16x128xf32>
    %9 = vector.shape_cast %6 : vector<1x16x128xf32> to vector<16x128xf32>
    %10 = vector.shape_cast %7 : vector<1x16x128xf32> to vector<16x128xf32>
    %11 = tpu.concatenate %9, %10 in 0 : vector<16x128xf32>, vector<16x128xf32> -> vector<32x128xf32>
    %12 = vector.shape_cast %2 : vector<1x128x128xf32> to vector<128x128xf32>
    %cst = arith.constant dense<0.000000e+00> : vector<32x128xf32>
    %13 = tpu.matmul %11, %12, %cst {dimension_numbers = #tpu.dot_dimension_numbers<[1], [0], [0], [1], [0, 0, 1, 1], [], []>} : vector<32x128xf32>, vector<128x128xf32>, vector<32x128xf32> -> vector<32x128xf32>
    %14 = vector.shape_cast %3 : vector<1x128x128xf32> to vector<128x128xf32>
    %cst_26 = arith.constant dense<0.000000e+00> : vector<32x128xf32>
    %15 = tpu.matmul %11, %14, %cst_26 {dimension_numbers = #tpu.dot_dimension_numbers<[1], [0], [0], [1], [0, 0, 1, 1], [], []>} : vector<32x128xf32>, vector<128x128xf32>, vector<32x128xf32> -> vector<32x128xf32>
    %16 = vector.extract_strided_slice %13 {offsets = [0, 0], sizes = [16, 128], strides = [1, 1]} : vector<32x128xf32> to vector<16x128xf32>
    %17 = vector.shape_cast %4 : vector<1x16x16xf32> to vector<16x16xf32>
    %cst_27 = arith.constant dense<0.000000e+00> : vector<16x128xf32>
    %18 = tpu.matmul %17, %16, %cst_27 {dimension_numbers = #tpu.dot_dimension_numbers<[1], [0], [0], [1], [0, 0, 1, 1], [], []>} : vector<16x16xf32>, vector<16x128xf32>, vector<16x128xf32> -> vector<16x128xf32>
    %19 = vector.extract_strided_slice %15 {offsets = [0, 0], sizes = [16, 128], strides = [1, 1]} : vector<32x128xf32> to vector<16x128xf32>
    %20 = vector.shape_cast %5 : vector<1x16x16xf32> to vector<16x16xf32>
    %cst_28 = arith.constant dense<0.000000e+00> : vector<16x128xf32>
    %21 = tpu.matmul %20, %19, %cst_28 {dimension_numbers = #tpu.dot_dimension_numbers<[1], [0], [0], [1], [0, 0, 1, 1], [], []>} : vector<16x16xf32>, vector<16x128xf32>, vector<16x128xf32> -> vector<16x128xf32>
    %22 = math.absf %18 : vector<16x128xf32>
    %23 = math.absf %21 : vector<16x128xf32>
    %24 = arith.addf %22, %23 : vector<16x128xf32>
    %25 = vector.shape_cast %24 : vector<16x128xf32> to vector<1x16x128xf32>
    %cst_29 = arith.constant dense<0.000000e+00> : vector<1xf32>
    %26 = vector.multi_reduction <add>, %25, %cst_29 [1, 2] : vector<1x16x128xf32> to vector<1xf32>
    %27 = vector.shape_cast %26 : vector<1xf32> to vector<1x1x1xf32>
    %28 = vector.extract %27[0, 0, 0] : f32 from vector<1x1x1xf32>
    %29 = vector.extract_strided_slice %13 {offsets = [16, 0], sizes = [16, 128], strides = [1, 1]} : vector<32x128xf32> to vector<16x128xf32>
    %30 = vector.shape_cast %4 : vector<1x16x16xf32> to vector<16x16xf32>
    %cst_30 = arith.constant dense<0.000000e+00> : vector<16x128xf32>
    %31 = tpu.matmul %30, %29, %cst_30 {dimension_numbers = #tpu.dot_dimension_numbers<[1], [0], [0], [1], [0, 0, 1, 1], [], []>} : vector<16x16xf32>, vector<16x128xf32>, vector<16x128xf32> -> vector<16x128xf32>
    %32 = vector.extract_strided_slice %15 {offsets = [16, 0], sizes = [16, 128], strides = [1, 1]} : vector<32x128xf32> to vector<16x128xf32>
    %33 = vector.shape_cast %5 : vector<1x16x16xf32> to vector<16x16xf32>
    %cst_31 = arith.constant dense<0.000000e+00> : vector<16x128xf32>
    %34 = tpu.matmul %33, %32, %cst_31 {dimension_numbers = #tpu.dot_dimension_numbers<[1], [0], [0], [1], [0, 0, 1, 1], [], []>} : vector<16x16xf32>, vector<16x128xf32>, vector<16x128xf32> -> vector<16x128xf32>
    %35 = math.absf %31 : vector<16x128xf32>
    %36 = math.absf %34 : vector<16x128xf32>
    %37 = arith.addf %35, %36 : vector<16x128xf32>
    %38 = vector.shape_cast %37 : vector<16x128xf32> to vector<1x16x128xf32>
    %cst_32 = arith.constant dense<0.000000e+00> : vector<1xf32>
    %39 = vector.multi_reduction <add>, %38, %cst_32 [1, 2] : vector<1x16x128xf32> to vector<1xf32>
    %40 = vector.shape_cast %39 : vector<1xf32> to vector<1x1x1xf32>
    %41 = vector.extract %40[0, 0, 0] : f32 from vector<1x1x1xf32>
    %cst_33 = arith.constant 0.000000e+00 : f32
    %42 = arith.addf %cst_33, %28 : f32
    %cst_34 = arith.constant 0.000000e+00 : f32
    %43 = arith.addf %cst_34, %41 : f32
    %44 = vector.shape_cast %6 : vector<1x16x128xf32> to vector<16x128xf32>
    %45 = vector.shape_cast %7 : vector<1x16x128xf32> to vector<16x128xf32>
    %46 = vector.shape_cast %8 : vector<1x16x128xf32> to vector<16x128xf32>
    %47 = arith.mulf %46, %46 : vector<16x128xf32>
    %48 = arith.mulf %44, %44 : vector<16x128xf32>
    %49 = arith.mulf %44, %46 : vector<16x128xf32>
    %50 = arith.mulf %45, %45 : vector<16x128xf32>
    %51 = arith.mulf %45, %46 : vector<16x128xf32>
    %52 = tpu.concatenate %46, %47, %44, %48, %49, %45, %50, %51 in 1 : vector<16x128xf32>, vector<16x128xf32>, vector<16x128xf32>, vector<16x128xf32>, vector<16x128xf32>, vector<16x128xf32>, vector<16x128xf32>, vector<16x128xf32> -> vector<16x1024xf32>
    %53 = vector.shape_cast %1 : vector<1x16x16xf32> to vector<16x16xf32>
    %cst_35 = arith.constant dense<0.000000e+00> : vector<16x1024xf32>
    %54 = tpu.matmul %53, %52, %cst_35 {dimension_numbers = #tpu.dot_dimension_numbers<[1], [0], [0], [1], [0, 0, 1, 1], [], []>} : vector<16x16xf32>, vector<16x1024xf32>, vector<16x1024xf32> -> vector<16x1024xf32>
    %55 = vector.extract_strided_slice %54 {offsets = [0, 0], sizes = [16, 128], strides = [1, 1]} : vector<16x1024xf32> to vector<16x128xf32>
    %56 = vector.extract_strided_slice %54 {offsets = [0, 128], sizes = [16, 128], strides = [1, 1]} : vector<16x1024xf32> to vector<16x128xf32>
    %57 = vector.extract_strided_slice %54 {offsets = [0, 256], sizes = [16, 128], strides = [1, 1]} : vector<16x1024xf32> to vector<16x128xf32>
    %58 = vector.extract_strided_slice %54 {offsets = [0, 384], sizes = [16, 128], strides = [1, 1]} : vector<16x1024xf32> to vector<16x128xf32>
    %59 = vector.extract_strided_slice %54 {offsets = [0, 512], sizes = [16, 128], strides = [1, 1]} : vector<16x1024xf32> to vector<16x128xf32>
    %60 = vector.extract_strided_slice %54 {offsets = [0, 640], sizes = [16, 128], strides = [1, 1]} : vector<16x1024xf32> to vector<16x128xf32>
    %61 = vector.extract_strided_slice %54 {offsets = [0, 768], sizes = [16, 128], strides = [1, 1]} : vector<16x1024xf32> to vector<16x128xf32>
    %62 = vector.extract_strided_slice %54 {offsets = [0, 896], sizes = [16, 128], strides = [1, 1]} : vector<16x1024xf32> to vector<16x128xf32>
    %63 = vector.shape_cast %0 : vector<1x128x128xf32> to vector<128x128xf32>
    %cst_36 = arith.constant dense<0.000000e+00> : vector<16x128xf32>
    %64 = tpu.matmul %55, %63, %cst_36 {dimension_numbers = #tpu.dot_dimension_numbers<[1], [0], [0], [1], [0, 0, 1, 1], [], []>} : vector<16x128xf32>, vector<128x128xf32>, vector<16x128xf32> -> vector<16x128xf32>
    %65 = vector.shape_cast %0 : vector<1x128x128xf32> to vector<128x128xf32>
    %cst_37 = arith.constant dense<0.000000e+00> : vector<16x128xf32>
    %66 = tpu.matmul %56, %65, %cst_37 {dimension_numbers = #tpu.dot_dimension_numbers<[1], [0], [0], [1], [0, 0, 1, 1], [], []>} : vector<16x128xf32>, vector<128x128xf32>, vector<16x128xf32> -> vector<16x128xf32>
    %67 = vector.shape_cast %0 : vector<1x128x128xf32> to vector<128x128xf32>
    %cst_38 = arith.constant dense<0.000000e+00> : vector<16x128xf32>
    %68 = tpu.matmul %57, %67, %cst_38 {dimension_numbers = #tpu.dot_dimension_numbers<[1], [0], [0], [1], [0, 0, 1, 1], [], []>} : vector<16x128xf32>, vector<128x128xf32>, vector<16x128xf32> -> vector<16x128xf32>
    %69 = vector.shape_cast %0 : vector<1x128x128xf32> to vector<128x128xf32>
    %cst_39 = arith.constant dense<0.000000e+00> : vector<16x128xf32>
    %70 = tpu.matmul %58, %69, %cst_39 {dimension_numbers = #tpu.dot_dimension_numbers<[1], [0], [0], [1], [0, 0, 1, 1], [], []>} : vector<16x128xf32>, vector<128x128xf32>, vector<16x128xf32> -> vector<16x128xf32>
    %71 = vector.shape_cast %0 : vector<1x128x128xf32> to vector<128x128xf32>
    %cst_40 = arith.constant dense<0.000000e+00> : vector<16x128xf32>
    %72 = tpu.matmul %59, %71, %cst_40 {dimension_numbers = #tpu.dot_dimension_numbers<[1], [0], [0], [1], [0, 0, 1, 1], [], []>} : vector<16x128xf32>, vector<128x128xf32>, vector<16x128xf32> -> vector<16x128xf32>
    %73 = vector.shape_cast %0 : vector<1x128x128xf32> to vector<128x128xf32>
    %cst_41 = arith.constant dense<0.000000e+00> : vector<16x128xf32>
    %74 = tpu.matmul %60, %73, %cst_41 {dimension_numbers = #tpu.dot_dimension_numbers<[1], [0], [0], [1], [0, 0, 1, 1], [], []>} : vector<16x128xf32>, vector<128x128xf32>, vector<16x128xf32> -> vector<16x128xf32>
    %75 = vector.shape_cast %0 : vector<1x128x128xf32> to vector<128x128xf32>
    %cst_42 = arith.constant dense<0.000000e+00> : vector<16x128xf32>
    %76 = tpu.matmul %61, %75, %cst_42 {dimension_numbers = #tpu.dot_dimension_numbers<[1], [0], [0], [1], [0, 0, 1, 1], [], []>} : vector<16x128xf32>, vector<128x128xf32>, vector<16x128xf32> -> vector<16x128xf32>
    %77 = vector.shape_cast %0 : vector<1x128x128xf32> to vector<128x128xf32>
    %cst_43 = arith.constant dense<0.000000e+00> : vector<16x128xf32>
    %78 = tpu.matmul %62, %77, %cst_43 {dimension_numbers = #tpu.dot_dimension_numbers<[1], [0], [0], [1], [0, 0, 1, 1], [], []>} : vector<16x128xf32>, vector<128x128xf32>, vector<16x128xf32> -> vector<16x128xf32>
    %79 = arith.mulf %64, %64 : vector<16x128xf32>
    %80 = arith.subf %66, %79 : vector<16x128xf32>
    %81 = tpu.iota {dimensions = array<i32: 1>} : vector<16x128xi32>
    %c16_i32 = arith.constant 16 : i32
    %82 = vector.broadcast %c16_i32 : i32 to vector<16x128xi32>
    %83 = arith.cmpi slt, %81, %82 : vector<16x128xi32>
    %84 = arith.mulf %68, %68 : vector<16x128xf32>
    %85 = arith.mulf %68, %64 : vector<16x128xf32>
    %86 = arith.subf %70, %84 : vector<16x128xf32>
    %87 = arith.subf %72, %85 : vector<16x128xf32>
    %cst_44 = arith.constant 2.000000e+00 : f32
    %88 = vector.broadcast %cst_44 : f32 to vector<16x128xf32>
    %89 = arith.mulf %88, %85 : vector<16x128xf32>
    %cst_45 = arith.constant 9.99999974E-5 : f32
    %90 = vector.broadcast %cst_45 : f32 to vector<16x128xf32>
    %91 = arith.addf %89, %90 : vector<16x128xf32>
    %cst_46 = arith.constant 2.000000e+00 : f32
    %92 = vector.broadcast %cst_46 : f32 to vector<16x128xf32>
    %93 = arith.mulf %92, %87 : vector<16x128xf32>
    %cst_47 = arith.constant 8.99999984E-4 : f32
    %94 = vector.broadcast %cst_47 : f32 to vector<16x128xf32>
    %95 = arith.addf %93, %94 : vector<16x128xf32>
    %96 = arith.mulf %91, %95 : vector<16x128xf32>
    %97 = arith.addf %84, %79 : vector<16x128xf32>
    %cst_48 = arith.constant 9.99999974E-5 : f32
    %98 = vector.broadcast %cst_48 : f32 to vector<16x128xf32>
    %99 = arith.addf %97, %98 : vector<16x128xf32>
    %100 = arith.addf %86, %80 : vector<16x128xf32>
    %cst_49 = arith.constant 8.99999984E-4 : f32
    %101 = vector.broadcast %cst_49 : f32 to vector<16x128xf32>
    %102 = arith.addf %100, %101 : vector<16x128xf32>
    %103 = arith.mulf %99, %102 : vector<16x128xf32>
    %104 = tpu.reciprocal %103 {approx = true} : vector<16x128xf32> -> vector<16x128xf32>
    %105 = arith.mulf %103, %104 : vector<16x128xf32>
    %cst_50 = arith.constant 2.000000e+00 : f32
    %106 = vector.broadcast %cst_50 : f32 to vector<16x128xf32>
    %107 = arith.subf %106, %105 : vector<16x128xf32>
    %108 = arith.mulf %104, %107 : vector<16x128xf32>
    %109 = arith.mulf %96, %108 : vector<16x128xf32>
    %cst_51 = arith.constant 0.000000e+00 : f32
    %110 = vector.broadcast %cst_51 : f32 to vector<16x128xf32>
    %111 = arith.select %83, %109, %110 : vector<16x128xi1>, vector<16x128xf32>
    %112 = vector.shape_cast %111 : vector<16x128xf32> to vector<1x16x128xf32>
    %cst_52 = arith.constant dense<0.000000e+00> : vector<1xf32>
    %113 = vector.multi_reduction <add>, %112, %cst_52 [1, 2] : vector<1x16x128xf32> to vector<1xf32>
    %114 = vector.shape_cast %113 : vector<1xf32> to vector<1x1x1xf32>
    %115 = vector.extract %114[0, 0, 0] : f32 from vector<1x1x1xf32>
    %116 = arith.mulf %74, %74 : vector<16x128xf32>
    %117 = arith.mulf %74, %64 : vector<16x128xf32>
    %118 = arith.subf %76, %116 : vector<16x128xf32>
    %119 = arith.subf %78, %117 : vector<16x128xf32>
    %cst_53 = arith.constant 2.000000e+00 : f32
    %120 = vector.broadcast %cst_53 : f32 to vector<16x128xf32>
    %121 = arith.mulf %120, %117 : vector<16x128xf32>
    %cst_54 = arith.constant 9.99999974E-5 : f32
    %122 = vector.broadcast %cst_54 : f32 to vector<16x128xf32>
    %123 = arith.addf %121, %122 : vector<16x128xf32>
    %cst_55 = arith.constant 2.000000e+00 : f32
    %124 = vector.broadcast %cst_55 : f32 to vector<16x128xf32>
    %125 = arith.mulf %124, %119 : vector<16x128xf32>
    %cst_56 = arith.constant 8.99999984E-4 : f32
    %126 = vector.broadcast %cst_56 : f32 to vector<16x128xf32>
    %127 = arith.addf %125, %126 : vector<16x128xf32>
    %128 = arith.mulf %123, %127 : vector<16x128xf32>
    %129 = arith.addf %116, %79 : vector<16x128xf32>
    %cst_57 = arith.constant 9.99999974E-5 : f32
    %130 = vector.broadcast %cst_57 : f32 to vector<16x128xf32>
    %131 = arith.addf %129, %130 : vector<16x128xf32>
    %132 = arith.addf %118, %80 : vector<16x128xf32>
    %cst_58 = arith.constant 8.99999984E-4 : f32
    %133 = vector.broadcast %cst_58 : f32 to vector<16x128xf32>
    %134 = arith.addf %132, %133 : vector<16x128xf32>
    %135 = arith.mulf %131, %134 : vector<16x128xf32>
    %136 = tpu.reciprocal %135 {approx = true} : vector<16x128xf32> -> vector<16x128xf32>
    %137 = arith.mulf %135, %136 : vector<16x128xf32>
    %cst_59 = arith.constant 2.000000e+00 : f32
    %138 = vector.broadcast %cst_59 : f32 to vector<16x128xf32>
    %139 = arith.subf %138, %137 : vector<16x128xf32>
    %140 = arith.mulf %136, %139 : vector<16x128xf32>
    %141 = arith.mulf %128, %140 : vector<16x128xf32>
    %cst_60 = arith.constant 0.000000e+00 : f32
    %142 = vector.broadcast %cst_60 : f32 to vector<16x128xf32>
    %143 = arith.select %83, %141, %142 : vector<16x128xi1>, vector<16x128xf32>
    %144 = vector.shape_cast %143 : vector<16x128xf32> to vector<1x16x128xf32>
    %cst_61 = arith.constant dense<0.000000e+00> : vector<1xf32>
    %145 = vector.multi_reduction <add>, %144, %cst_61 [1, 2] : vector<1x16x128xf32> to vector<1xf32>
    %146 = vector.shape_cast %145 : vector<1xf32> to vector<1x1x1xf32>
    %147 = vector.extract %146[0, 0, 0] : f32 from vector<1x1x1xf32>
    %148 = tpu.iota {dimensions = array<i32: 1>} : vector<8x128xi32>
    %c0_i32 = arith.constant 0 : i32
    %149 = vector.broadcast %c0_i32 : i32 to vector<8x128xi32>
    %150 = arith.cmpi eq, %148, %149 : vector<8x128xi32>
    %c1_i32 = arith.constant 1 : i32
    %151 = vector.broadcast %c1_i32 : i32 to vector<8x128xi32>
    %152 = arith.cmpi eq, %148, %151 : vector<8x128xi32>
    %c2_i32 = arith.constant 2 : i32
    %153 = vector.broadcast %c2_i32 : i32 to vector<8x128xi32>
    %154 = arith.cmpi eq, %148, %153 : vector<8x128xi32>
    %c3_i32 = arith.constant 3 : i32
    %155 = vector.broadcast %c3_i32 : i32 to vector<8x128xi32>
    %156 = arith.cmpi eq, %148, %155 : vector<8x128xi32>
    %cst_62 = arith.constant 0.000000e+00 : f32
    %157 = vector.broadcast %147 : f32 to vector<8x128xf32>
    %158 = vector.broadcast %cst_62 : f32 to vector<8x128xf32>
    %159 = arith.select %156, %157, %158 : vector<8x128xi1>, vector<8x128xf32>
    %160 = vector.broadcast %115 : f32 to vector<8x128xf32>
    %161 = arith.select %154, %160, %159 : vector<8x128xi1>, vector<8x128xf32>
    %162 = vector.broadcast %43 : f32 to vector<8x128xf32>
    %163 = arith.select %152, %162, %161 : vector<8x128xi1>, vector<8x128xf32>
    %164 = vector.broadcast %42 : f32 to vector<8x128xf32>
    %165 = arith.select %150, %164, %163 : vector<8x128xi1>, vector<8x128xf32>
    %c0_63 = arith.constant 0 : index
    %c0_64 = arith.constant 0 : index
    %c0_65 = arith.constant 0 : index
    %166 = vector.load %arg10[%c0_63, %c0_64, %c0_65] : memref<1x8x128xf32, #tpu.memory_space<vmem>>, vector<1x8x128xf32>
    %167 = vector.shape_cast %166 : vector<1x8x128xf32> to vector<8x128xf32>
    %168 = vector.shape_cast %165 : vector<8x128xf32> to vector<1x8x128xf32>
    tpu.vector_store %arg10[%c0_63, %c0_64, %c0_65], %168 {strides = array<i32>} : memref<1x8x128xf32, #tpu.memory_space<vmem>>, vector<1x8x128xf32>,
    return
  }
  func.func @transform_0(%arg0: i32) -> (i32, i32, i32) {
    %c0_i32 = arith.constant 0 : i32
    %c0_i32_0 = arith.constant 0 : i32
    %c0_i32_1 = arith.constant 0 : i32
    return %arg0, %c0_i32, %c0_i32_0 : i32, i32, i32
  }
  func.func @transform_1(%arg0: i32) -> (i32, i32, i32) {
    %c0_i32 = arith.constant 0 : i32
    %c0_i32_0 = arith.constant 0 : i32
    %c0_i32_1 = arith.constant 0 : i32
    return %arg0, %c0_i32, %c0_i32_0 : i32, i32, i32
  }
  func.func @transform_2(%arg0: i32) -> (i32, i32, i32) {
    %c0_i32 = arith.constant 0 : i32
    %c0_i32_0 = arith.constant 0 : i32
    %c0_i32_1 = arith.constant 0 : i32
    return %arg0, %c0_i32, %c0_i32_0 : i32, i32, i32
  }
  func.func @transform_3(%arg0: i32) -> (i32, i32, i32) {
    %c0_i32 = arith.constant 0 : i32
    %c0_i32_0 = arith.constant 0 : i32
    %c0_i32_1 = arith.constant 0 : i32
    %c0_i32_2 = arith.constant 0 : i32
    return %c0_i32, %c0_i32_0, %c0_i32_1 : i32, i32, i32
  }
  func.func @transform_4(%arg0: i32) -> (i32, i32, i32) {
    %c0_i32 = arith.constant 0 : i32
    %c0_i32_0 = arith.constant 0 : i32
    %c0_i32_1 = arith.constant 0 : i32
    %c0_i32_2 = arith.constant 0 : i32
    return %c0_i32, %c0_i32_0, %c0_i32_1 : i32, i32, i32
  }
  func.func @transform_5(%arg0: i32) -> (i32, i32, i32) {
    %c0_i32 = arith.constant 0 : i32
    %c0_i32_0 = arith.constant 0 : i32
    %c0_i32_1 = arith.constant 0 : i32
    %c0_i32_2 = arith.constant 0 : i32
    return %c0_i32, %c0_i32_0, %c0_i32_1 : i32, i32, i32
  }
  func.func @transform_6(%arg0: i32) -> (i32, i32, i32) {
    %c0_i32 = arith.constant 0 : i32
    %c0_i32_0 = arith.constant 0 : i32
    %c0_i32_1 = arith.constant 0 : i32
    %c0_i32_2 = arith.constant 0 : i32
    return %c0_i32, %c0_i32_0, %c0_i32_1 : i32, i32, i32
  }
  func.func @transform_7(%arg0: i32) -> (i32, i32, i32) {
    %c0_i32 = arith.constant 0 : i32
    %c0_i32_0 = arith.constant 0 : i32
    %c0_i32_1 = arith.constant 0 : i32
    %c0_i32_2 = arith.constant 0 : i32
    return %c0_i32, %c0_i32_0, %c0_i32_1 : i32, i32, i32
  }
  func.func @transform_8(%arg0: i32) -> (i32, i32, i32) {
    %c0_i32 = arith.constant 0 : i32
    %c0_i32_0 = arith.constant 0 : i32
    %c0_i32_1 = arith.constant 0 : i32
    %c0_i32_2 = arith.constant 0 : i32
    return %c0_i32, %c0_i32_0, %c0_i32_1 : i32, i32, i32
  }
  func.func @transform_9(%arg0: i32) -> (i32, i32, i32) {
    %c0_i32 = arith.constant 0 : i32
    %c0_i32_0 = arith.constant 0 : i32
    %c0_i32_1 = arith.constant 0 : i32
    return %arg0, %c0_i32, %c0_i32_0 : i32, i32, i32
  }
}

</mosaic_0001>

<llo_original>
// kernel: tpu_custom_call.1
$region0: #{tpu_custom_call.1}
  #allocation0 [shape = 'u32[]', space=smem, size = 0x4, offset = 0x4, fixed_abs, tag = 'smem constant byte address 0x4 - core index']
  #allocation1 [shape = 'u32[144,128]{1,0:T(1,128)}', space=vmem, size = 0x12000, scoped, tag = 'internal scratch']
  %s0 = inlined_call_operand.hbm [shape: f32[2,16,128], index: 0, kind: input, shape index: {}]
  %s1 = inlined_call_operand.hbm [shape: f32[2,16,128], index: 1, kind: input, shape index: {}]
  %s2 = inlined_call_operand.hbm [shape: f32[2,16,128], index: 2, kind: input, shape index: {}]
  %s3 = inlined_call_operand.hbm [shape: f32[1,128,128], index: 3, kind: input, shape index: {}]
  %s4 = inlined_call_operand.hbm [shape: f32[1,16,16], index: 4, kind: input, shape index: {}]
  %s5 = inlined_call_operand.hbm [shape: f32[1,128,128], index: 5, kind: input, shape index: {}]
  %s6 = inlined_call_operand.vmem [shape: f32[1,16,16], index: 6, kind: input, shape index: {}]
  %s7 = inlined_call_operand.hbm [shape: f32[1,128,128], index: 7, kind: input, shape index: {}]
  %s8 = inlined_call_operand.hbm [shape: f32[1,16,16], index: 8, kind: input, shape index: {}]
  %s9 = inlined_call_operand.hbm [shape: f32[2,8,128], index: 9, kind: output, shape index: {}]
  %s10 = sld [smem:[#allocation0]]
  $region101: #{tpu_custom_call.1} parent=0
    _
  %s12 = ssub.s32 1, %s10
  %s13 = scalar_select 0, %s12, %s10
  $region1: #{tpu_custom_call.1} parent=0
    #allocation2 [shape = 'u8[16384]{0}', space=vmem, size = 0x4000, scoped, tag = 'input window, operand 0']
    #allocation3 [shape = 's32[2]{0}', space=sflag, size = 0x8, scoped, tag = 'scoped memory for tpu_custom_call.1']
    #allocation4 [shape = 's32[2]{0}', space=sflag, size = 0x8, scoped, tag = 'scoped memory for tpu_custom_call.1']
    #allocation5 [shape = 'u8[16384]{0}', space=vmem, size = 0x4000, scoped, tag = 'input window, operand 1']
    #allocation6 [shape = 's32[2]{0}', space=sflag, size = 0x8, scoped, tag = 'scoped memory for tpu_custom_call.1']
    #allocation7 [shape = 'u8[16384]{0}', space=vmem, size = 0x4000, scoped, tag = 'input window, operand 2']
    #allocation8 [shape = 'u8[65536]{0}', space=vmem, size = 0x10000, scoped, tag = 'input window, operand 3, single buffered']
    #allocation9 [shape = 's32[1]{0}', space=sflag, size = 0x4, scoped, tag = 'scoped memory for tpu_custom_call.1']
    #allocation10 [shape = 'u8[8192]{0}', space=vmem, size = 0x2000, scoped, tag = 'input window, operand 4, single buffered']
    #allocation11 [shape = 'u8[65536]{0}', space=vmem, size = 0x10000, scoped, tag = 'input window, operand 5, single buffered']
    #allocation12 [shape = 's32[1]{0}', space=sflag, size = 0x4, scoped, tag = 'scoped memory for tpu_custom_call.1']
    #allocation13 [shape = 'u8[65536]{0}', space=vmem, size = 0x10000, scoped, tag = 'input window, operand 7, single buffered']
    #allocation14 [shape = 'u8[8192]{0}', space=vmem, size = 0x2000, scoped, tag = 'input window, operand 8, single buffered']
    #allocation15 [shape = 's32[1]{0}', space=sflag, size = 0x4, scoped, tag = 'scoped memory for tpu_custom_call.1']
    #allocation16 [shape = 'u8[8192]{0}', space=vmem, size = 0x2000, scoped, tag = 'output window, operand 0']
    %14 = vsyncpa [#allocation3], 0
    %s15 = scalar_lea.sflag [#allocation3], 1
    %16 = vsyncpa %s15, 0
    %17 = vsyncpa [#allocation6], 0
    %s18 = scalar_lea.sflag [#allocation6], 1
    %19 = vsyncpa %s18, 0
    %20 = vsyncpa [#allocation9], 0
    %21 = vsyncpa [#allocation12], 0
    %22 = vsyncpa [#allocation15], 0
    %23 = vsyncpa [#allocation4], 0
    %s24 = scalar_lea.sflag [#allocation4], 1
    %25 = vsyncpa %s24, 0
    loop: start=0, step=1, limit=4
    $region2: #{tpu_custom_call.1} parent=1 // loop_pre_header
      _
    $region3: #{tpu_custom_call.1} parent=1 // loop_header
      %s27 = sphi 0, %s31
      %p28 = scmp.ge.s32.totalorder %s27, 4
      %s37 = sphi 0, %s39
      %s40 = sphi 0, %s37
      %s41 = sphi 0, %s40
      %s57 = sphi 0, %s41
      %s63 = sphi 0, %s65
      %s66 = sphi 0, %s63
      %s67 = sphi 0, %s66
      %s83 = sphi 0, %s67
      %s89 = sphi 0, %s91
      %s92 = sphi 0, %s89
      %s93 = sphi 0, %s92
      %s109 = sphi 0, %s93
      %s113 = sphi 0, %s113
      %s115 = sphi 0, %s113
      %s116 = sphi 0, %s115
      %s130 = sphi 0, %s116
      %s134 = sphi 0, %s134
      %s136 = sphi 0, %s134
      %s137 = sphi 0, %s136
      %s151 = sphi 0, %s137
      %s155 = sphi 0, %s155
      %s157 = sphi 0, %s155
      %s158 = sphi 0, %s157
      %s172 = sphi 0, %s158
      %s176 = sphi 0, %s176
      %s178 = sphi 0, %s176
      %s179 = sphi 0, %s178
      %s193 = sphi 0, %s179
      %s197 = sphi 0, %s197
      %s199 = sphi 0, %s197
      %s200 = sphi 0, %s199
      %s214 = sphi 0, %s200
      %s218 = sphi 0, %s218
      %s220 = sphi 0, %s218
      %s221 = sphi 0, %s220
      %s235 = sphi 0, %s221
      %s241 = sphi 0, %s243
      %s244 = sphi 0, %s241
      %s245 = sphi 0, %s244
      %s261 = sphi 0, %s245
    $region4: #{tpu_custom_call.1} parent=1 // loop_header_branch
      %30 = sbr.rel (%p28) target = $region8
    $region5: #{tpu_custom_call.1} parent=1 // loop_body
      %s32 = ssub.s32 %s27, 1
      %s33 = ssub.s32 %s27, 2
      %s34 = sadd.s32 %s27, 1
      %s35 = ssub.s32 %s27, %s34
      %p36 = scmp.eq.s32.totalorder %s35, 0
      %s38 = sadd.s32 %s37, 1
      %s39 = scalar_select %p36, %s37, %s38
      %p42 = pneg %p36
      %p43 = scmp.eq.s32.totalorder %s27, 1
      %p44 = por %p42, %p43
      %p45 = scmp.ne.s32.totalorder %s37, %s40
      %p46 = scmp.eq.s32.totalorder %s27, 0
      %p47 = por %p45, %p46
      %p48 = scmp.ne.s32.totalorder %s37, %s40
      %p49 = scmp.eq.s32.totalorder %s32, 1
      %p50 = por %p48, %p49
      %p51 = scmp.ne.s32.totalorder %s40, %s41
      %p52 = scmp.eq.s32.totalorder %s32, 0
      %p53 = por %p51, %p52
      %p54 = scmp.ne.s32.totalorder %s40, %s41
      %p55 = scmp.eq.s32.totalorder %s33, 1
      %p56 = por %p54, %p55
      %p58 = scmp.ne.s32.totalorder %s41, %s57
      %p59 = scmp.eq.s32.totalorder %s33, 0
      %p60 = por %p58, %p59
      %s61 = ssub.s32 %s27, %s34
      %p62 = scmp.eq.s32.totalorder %s61, 0
      %s64 = sadd.s32 %s63, 1
      %s65 = scalar_select %p62, %s63, %s64
      %p68 = pneg %p62
      %p69 = scmp.eq.s32.totalorder %s27, 1
      %p70 = por %p68, %p69
      %p71 = scmp.ne.s32.totalorder %s63, %s66
      %p72 = scmp.eq.s32.totalorder %s27, 0
      %p73 = por %p71, %p72
      %p74 = scmp.ne.s32.totalorder %s63, %s66
      %p75 = scmp.eq.s32.totalorder %s32, 1
      %p76 = por %p74, %p75
      %p77 = scmp.ne.s32.totalorder %s66, %s67
      %p78 = scmp.eq.s32.totalorder %s32, 0
      %p79 = por %p77, %p78
      %p80 = scmp.ne.s32.totalorder %s66, %s67
      %p81 = scmp.eq.s32.totalorder %s33, 1
      %p82 = por %p80, %p81
      %p84 = scmp.ne.s32.totalorder %s67, %s83
      %p85 = scmp.eq.s32.totalorder %s33, 0
      %p86 = por %p84, %p85
      %s87 = ssub.s32 %s27, %s34
      %p88 = scmp.eq.s32.totalorder %s87, 0
      %s90 = sadd.s32 %s89, 1
      %s91 = scalar_select %p88, %s89, %s90
      %p94 = pneg %p88
      %p95 = scmp.eq.s32.totalorder %s27, 1
      %p96 = por %p94, %p95
      %p97 = scmp.ne.s32.totalorder %s89, %s92
      %p98 = scmp.eq.s32.totalorder %s27, 0
      %p99 = por %p97, %p98
      %p100 = scmp.ne.s32.totalorder %s89, %s92
      %p101 = scmp.eq.s32.totalorder %s32, 1
      %p102 = por %p100, %p101
      %p103 = scmp.ne.s32.totalorder %s92, %s93
      %p104 = scmp.eq.s32.totalorder %s32, 0
      %p105 = por %p103, %p104
      %p106 = scmp.ne.s32.totalorder %s92, %s93
      %p107 = scmp.eq.s32.totalorder %s33, 1
      %p108 = por %p106, %p107
      %p110 = scmp.ne.s32.totalorder %s93, %s109
      %p111 = scmp.eq.s32.totalorder %s33, 0
      %p112 = por %p110, %p111
      %s114 = sadd.s32 %s113, 1
      %p117 = scmp.eq.s32.totalorder %s27, 1
      %p118 = scmp.ne.s32.totalorder %s113, %s115
      %p119 = scmp.eq.s32.totalorder %s27, 0
      %p120 = por %p118, %p119
      %p121 = scmp.ne.s32.totalorder %s113, %s115
      %p122 = scmp.eq.s32.totalorder %s32, 1
      %p123 = por %p121, %p122
      %p124 = scmp.ne.s32.totalorder %s115, %s116
      %p125 = scmp.eq.s32.totalorder %s32, 0
      %p126 = por %p124, %p125
      %p127 = scmp.ne.s32.totalorder %s115, %s116
      %p128 = scmp.eq.s32.totalorder %s33, 1
      %p129 = por %p127, %p128
      %p131 = scmp.ne.s32.totalorder %s116, %s130
      %p132 = scmp.eq.s32.totalorder %s33, 0
      %p133 = por %p131, %p132
      %s135 = sadd.s32 %s134, 1
      %p138 = scmp.eq.s32.totalorder %s27, 1
      %p139 = scmp.ne.s32.totalorder %s134, %s136
      %p140 = scmp.eq.s32.totalorder %s27, 0
      %p141 = por %p139, %p140
      %p142 = scmp.ne.s32.totalorder %s134, %s136
      %p143 = scmp.eq.s32.totalorder %s32, 1
      %p144 = por %p142, %p143
      %p145 = scmp.ne.s32.totalorder %s136, %s137
      %p146 = scmp.eq.s32.totalorder %s32, 0
      %p147 = por %p145, %p146
      %p148 = scmp.ne.s32.totalorder %s136, %s137
      %p149 = scmp.eq.s32.totalorder %s33, 1
      %p150 = por %p148, %p149
      %p152 = scmp.ne.s32.totalorder %s137, %s151
      %p153 = scmp.eq.s32.totalorder %s33, 0
      %p154 = por %p152, %p153
      %s156 = sadd.s32 %s155, 1
      %p159 = scmp.eq.s32.totalorder %s27, 1
      %p160 = scmp.ne.s32.totalorder %s155, %s157
      %p161 = scmp.eq.s32.totalorder %s27, 0
      %p162 = por %p160, %p161
      %p163 = scmp.ne.s32.totalorder %s155, %s157
      %p164 = scmp.eq.s32.totalorder %s32, 1
      %p165 = por %p163, %p164
      %p166 = scmp.ne.s32.totalorder %s157, %s158
      %p167 = scmp.eq.s32.totalorder %s32, 0
      %p168 = por %p166, %p167
      %p169 = scmp.ne.s32.totalorder %s157, %s158
      %p170 = scmp.eq.s32.totalorder %s33, 1
      %p171 = por %p169, %p170
      %p173 = scmp.ne.s32.totalorder %s158, %s172
      %p174 = scmp.eq.s32.totalorder %s33, 0
      %p175 = por %p173, %p174
      %s177 = sadd.s32 %s176, 1
      %p180 = scmp.eq.s32.totalorder %s27, 1
      %p181 = scmp.ne.s32.totalorder %s176, %s178
      %p182 = scmp.eq.s32.totalorder %s27, 0
      %p183 = por %p181, %p182
      %p184 = scmp.ne.s32.totalorder %s176, %s178
      %p185 = scmp.eq.s32.totalorder %s32, 1
      %p186 = por %p184, %p185
      %p187 = scmp.ne.s32.totalorder %s178, %s179
      %p188 = scmp.eq.s32.totalorder %s32, 0
      %p189 = por %p187, %p188
      %p190 = scmp.ne.s32.totalorder %s178, %s179
      %p191 = scmp.eq.s32.totalorder %s33, 1
      %p192 = por %p190, %p191
      %p194 = scmp.ne.s32.totalorder %s179, %s193
      %p195 = scmp.eq.s32.totalorder %s33, 0
      %p196 = por %p194, %p195
      %s198 = sadd.s32 %s197, 1
      %p201 = scmp.eq.s32.totalorder %s27, 1
      %p202 = scmp.ne.s32.totalorder %s197, %s199
      %p203 = scmp.eq.s32.totalorder %s27, 0
      %p204 = por %p202, %p203
      %p205 = scmp.ne.s32.totalorder %s197, %s199
      %p206 = scmp.eq.s32.totalorder %s32, 1
      %p207 = por %p205, %p206
      %p208 = scmp.ne.s32.totalorder %s199, %s200
      %p209 = scmp.eq.s32.totalorder %s32, 0
      %p210 = por %p208, %p209
      %p211 = scmp.ne.s32.totalorder %s199, %s200
      %p212 = scmp.eq.s32.totalorder %s33, 1
      %p213 = por %p211, %p212
      %p215 = scmp.ne.s32.totalorder %s200, %s214
      %p216 = scmp.eq.s32.totalorder %s33, 0
      %p217 = por %p215, %p216
      %s219 = sadd.s32 %s218, 1
      %p222 = scmp.eq.s32.totalorder %s27, 1
      %p223 = scmp.ne.s32.totalorder %s218, %s220
      %p224 = scmp.eq.s32.totalorder %s27, 0
      %p225 = por %p223, %p224
      %p226 = scmp.ne.s32.totalorder %s218, %s220
      %p227 = scmp.eq.s32.totalorder %s32, 1
      %p228 = por %p226, %p227
      %p229 = scmp.ne.s32.totalorder %s220, %s221
      %p230 = scmp.eq.s32.totalorder %s32, 0
      %p231 = por %p229, %p230
      %p232 = scmp.ne.s32.totalorder %s220, %s221
      %p233 = scmp.eq.s32.totalorder %s33, 1
      %p234 = por %p232, %p233
      %p236 = scmp.ne.s32.totalorder %s221, %s235
      %p237 = scmp.eq.s32.totalorder %s33, 0
      %p238 = por %p236, %p237
      %s239 = ssub.s32 %s27, %s34
      %p240 = scmp.eq.s32.totalorder %s239, 0
      %s242 = sadd.s32 %s241, 1
      %s243 = scalar_select %p240, %s241, %s242
      %p246 = pneg %p240
      %p247 = scmp.eq.s32.totalorder %s27, 1
      %p248 = por %p246, %p247
      %p249 = scmp.ne.s32.totalorder %s241, %s244
      %p250 = scmp.eq.s32.totalorder %s27, 0
      %p251 = por %p249, %p250
      %p252 = scmp.ne.s32.totalorder %s241, %s244
      %p253 = scmp.eq.s32.totalorder %s32, 1
      %p254 = por %p252, %p253
      %p255 = scmp.ne.s32.totalorder %s244, %s245
      %p256 = scmp.eq.s32.totalorder %s32, 0
      %p257 = por %p255, %p256
      %p258 = scmp.ne.s32.totalorder %s244, %s245
      %p259 = scmp.eq.s32.totalorder %s33, 1
      %p260 = por %p258, %p259
      %p262 = scmp.ne.s32.totalorder %s245, %s261
      %p263 = scmp.eq.s32.totalorder %s33, 0
      %p264 = por %p262, %p263
      %p265 = scmp.le.s32.totalorder 1, %s27
      %p266 = scmp.lt.s32.totalorder %s27, 3
      %p267 = pnand %p265, %p266
      %p268 = pneg %p267
      // Predicated region
      $region9: #{tpu_custom_call.1} parent=5 // pred_check
        _
      $region10: #{tpu_custom_call.1} parent=5 // pred_check_branch
        %270 = sbr.rel (%p267) target = $region12
      $region11: #{tpu_custom_call.1} parent=5 // pred_region
        %s271 = ssub.s32 %s27, 1
        // Predicated region
        $region13: #{tpu_custom_call.1} parent=11 // pred_check
          %p272 = pneg %p126
        $region14: #{tpu_custom_call.1} parent=11 // pred_check_branch
          %274 = sbr.rel (%p272) target = $region16
        $region15: #{tpu_custom_call.1} parent=11 // pred_region
          %s276 = ssub.s32 2048, 2048
          %277 = vsyncadd [#allocation9], %s276
          %s278 = sshll.u32 [#allocation8], 4
          %s279 = int_to_ptr.vmem [resolvable:$true] %s278
          %284 = dma.hbm_to_vmem [thread:$0]  %s3, 2048, %s279, [#allocation9], 128, 128, 8
        $region16: #{tpu_custom_call.1} parent=11 // pred_fallthru
          _
        // Predicated region
        $region17: #{tpu_custom_call.1} parent=11 // pred_check
          %p285 = pneg %p147
        $region18: #{tpu_custom_call.1} parent=11 // pred_check_branch
          %287 = sbr.rel (%p285) target = $region20
        $region19: #{tpu_custom_call.1} parent=11 // pred_region
          %s289 = ssub.s32 256, 256
          %290 = vsyncadd [#allocation9], %s289
          %s291 = sshll.u32 [#allocation10], 4
          %s292 = int_to_ptr.vmem [resolvable:$true] %s291
          %297 = dma.hbm_to_vmem [thread:$0]  %s4, 256, %s292, [#allocation9], 128, 128, 8
        $region20: #{tpu_custom_call.1} parent=11 // pred_fallthru
          _
        // Predicated region
        $region21: #{tpu_custom_call.1} parent=11 // pred_check
          %p298 = pneg %p168
        $region22: #{tpu_custom_call.1} parent=11 // pred_check_branch
          %300 = sbr.rel (%p298) target = $region24
        $region23: #{tpu_custom_call.1} parent=11 // pred_region
          %s302 = ssub.s32 2048, 2048
          %303 = vsyncadd [#allocation12], %s302
          %s304 = sshll.u32 [#allocation11], 4
          %s305 = int_to_ptr.vmem [resolvable:$true] %s304
          %310 = dma.hbm_to_vmem [thread:$0]  %s5, 2048, %s305, [#allocation12], 128, 128, 8
        $region24: #{tpu_custom_call.1} parent=11 // pred_fallthru
          _
        // Predicated region
        $region25: #{tpu_custom_call.1} parent=11 // pred_check
          %p311 = pneg %p189
        $region26: #{tpu_custom_call.1} parent=11 // pred_check_branch
          %313 = sbr.rel (%p311) target = $region28
        $region27: #{tpu_custom_call.1} parent=11 // pred_region
          _
        $region28: #{tpu_custom_call.1} parent=11 // pred_fallthru
          _
        // Predicated region
        $region29: #{tpu_custom_call.1} parent=11 // pred_check
          %p314 = pneg %p210
        $region30: #{tpu_custom_call.1} parent=11 // pred_check_branch
          %316 = sbr.rel (%p314) target = $region32
        $region31: #{tpu_custom_call.1} parent=11 // pred_region
          %s318 = ssub.s32 2048, 2048
          %319 = vsyncadd [#allocation12], %s318
          %s320 = sshll.u32 [#allocation13], 4
          %s321 = int_to_ptr.vmem [resolvable:$true] %s320
          %326 = dma.hbm_to_vmem [thread:$0]  %s7, 2048, %s321, [#allocation12], 128, 128, 8
        $region32: #{tpu_custom_call.1} parent=11 // pred_fallthru
          _
        // Predicated region
        $region33: #{tpu_custom_call.1} parent=11 // pred_check
          %p327 = pneg %p231
        $region34: #{tpu_custom_call.1} parent=11 // pred_check_branch
          %329 = sbr.rel (%p327) target = $region36
        $region35: #{tpu_custom_call.1} parent=11 // pred_region
          %s331 = ssub.s32 256, 256
          %332 = vsyncadd [#allocation15], %s331
          %s333 = sshll.u32 [#allocation14], 4
          %s334 = int_to_ptr.vmem [resolvable:$true] %s333
          %339 = dma.hbm_to_vmem [thread:$0]  %s8, 256, %s334, [#allocation15], 128, 128, 8
        $region36: #{tpu_custom_call.1} parent=11 // pred_fallthru
          _
      $region12: #{tpu_custom_call.1} parent=5 // pred_fallthru
        _
      %p340 = scmp.lt.s32.totalorder %s27, 2
      // Predicated region
      $region37: #{tpu_custom_call.1} parent=5 // pred_check
        %p341 = pneg %p340
      $region38: #{tpu_custom_call.1} parent=5 // pred_check_branch
        %343 = sbr.rel (%p341) target = $region40
      $region39: #{tpu_custom_call.1} parent=5 // pred_region
        // Predicated region
        $region41: #{tpu_custom_call.1} parent=39 // pred_check
          %p344 = pneg %p47
        $region42: #{tpu_custom_call.1} parent=39 // pred_check_branch
          %346 = sbr.rel (%p344) target = $region44
        $region43: #{tpu_custom_call.1} parent=39 // pred_region
          %s347 = sand.u32 %s37, 1
          %s348 = scalar_lea.sflag [#allocation3], %s347
          %s349 = sand.u32 %s37, 1
          %s350 = smul.addr %s349, 16
          %s351 = scalar_lea.vmem [#allocation2], %s350
          %s353 = ssub.s32 256, 256
          %354 = vsyncadd %s348, %s353
          %s355 = smul.addr %s27, 2
          %s356 = smul.addr %s355, 128
          %s357 = scalar_lea.hbm %s0, %s356
          %s358 = sshll.u32 %s351, 4
          %s359 = int_to_ptr.vmem [resolvable:$true] %s358
          %364 = dma.hbm_to_vmem [thread:$0]  %s357, 256, %s359, %s348, 128, 128, 8
        $region44: #{tpu_custom_call.1} parent=39 // pred_fallthru
          _
        // Predicated region
        $region45: #{tpu_custom_call.1} parent=39 // pred_check
          %p365 = pneg %p73
        $region46: #{tpu_custom_call.1} parent=39 // pred_check_branch
          %367 = sbr.rel (%p365) target = $region48
        $region47: #{tpu_custom_call.1} parent=39 // pred_region
          %s368 = sand.u32 %s27, 1
          %s369 = scalar_lea.sflag [#allocation6], %s368
          %s370 = sand.u32 %s63, 1
          %s371 = smul.addr %s370, 16
          %s372 = scalar_lea.vmem [#allocation5], %s371
          %s374 = ssub.s32 256, 256
          %375 = vsyncadd %s369, %s374
          %s376 = smul.addr %s27, 2
          %s377 = smul.addr %s376, 128
          %s378 = scalar_lea.hbm %s1, %s377
          %s379 = sshll.u32 %s372, 4
          %s380 = int_to_ptr.vmem [resolvable:$true] %s379
          %385 = dma.hbm_to_vmem [thread:$0]  %s378, 256, %s380, %s369, 128, 128, 8
        $region48: #{tpu_custom_call.1} parent=39 // pred_fallthru
          _
        // Predicated region
        $region49: #{tpu_custom_call.1} parent=39 // pred_check
          %p386 = pneg %p99
        $region50: #{tpu_custom_call.1} parent=39 // pred_check_branch
          %388 = sbr.rel (%p386) target = $region52
        $region51: #{tpu_custom_call.1} parent=39 // pred_region
          %s389 = sand.u32 %s27, 1
          %s390 = scalar_lea.sflag [#allocation6], %s389
          %s391 = sand.u32 %s89, 1
          %s392 = smul.addr %s391, 16
          %s393 = scalar_lea.vmem [#allocation7], %s392
          %s395 = ssub.s32 256, 256
          %396 = vsyncadd %s390, %s395
          %s397 = smul.addr %s27, 2
          %s398 = smul.addr %s397, 128
          %s399 = scalar_lea.hbm %s2, %s398
          %s400 = sshll.u32 %s393, 4
          %s401 = int_to_ptr.vmem [resolvable:$true] %s400
          %406 = dma.hbm_to_vmem [thread:$0]  %s399, 256, %s401, %s390, 128, 128, 8
        $region52: #{tpu_custom_call.1} parent=39 // pred_fallthru
          _
      $region40: #{tpu_custom_call.1} parent=5 // pred_fallthru
        _
      %p407 = scmp.le.s32.totalorder 1, %s27
      %p408 = scmp.lt.s32.totalorder %s27, 3
      %p409 = pnand %p407, %p408
      %p410 = pneg %p409
      // Predicated region
      $region53: #{tpu_custom_call.1} parent=5 // pred_check
        _
      $region54: #{tpu_custom_call.1} parent=5 // pred_check_branch
        %412 = sbr.rel (%p409) target = $region56
      $region55: #{tpu_custom_call.1} parent=5 // pred_region
        %s413 = ssub.s32 %s27, 1
        %s414 = sand.u32 %s40, 1
        %s415 = scalar_lea.sflag [#allocation3], %s414
        %s416 = sand.u32 %s40, 1
        %s417 = smul.addr %s416, 16
        %s418 = scalar_lea.vmem [#allocation2], %s417
        // Predicated region
        $region57: #{tpu_custom_call.1} parent=55 // pred_check
          %p419 = pneg %p53
        $region58: #{tpu_custom_call.1} parent=55 // pred_check_branch
          %421 = sbr.rel (%p419) target = $region60
        $region59: #{tpu_custom_call.1} parent=55 // pred_region
          %422 = dma.done %s415, 256
        $region60: #{tpu_custom_call.1} parent=55 // pred_fallthru
          _
        %s423 = sand.u32 %s32, 1
        %s424 = scalar_lea.sflag [#allocation6], %s423
        %s425 = sand.u32 %s66, 1
        %s426 = smul.addr %s425, 16
        %s427 = scalar_lea.vmem [#allocation5], %s426
        // Predicated region
        $region61: #{tpu_custom_call.1} parent=55 // pred_check
          %p428 = pneg %p79
        $region62: #{tpu_custom_call.1} parent=55 // pred_check_branch
          %430 = sbr.rel (%p428) target = $region64
        $region63: #{tpu_custom_call.1} parent=55 // pred_region
          %431 = dma.done %s424, 256
        $region64: #{tpu_custom_call.1} parent=55 // pred_fallthru
          _
        %s432 = sand.u32 %s32, 1
        %s433 = scalar_lea.sflag [#allocation6], %s432
        %s434 = sand.u32 %s92, 1
        %s435 = smul.addr %s434, 16
        %s436 = scalar_lea.vmem [#allocation7], %s435
        // Predicated region
        $region65: #{tpu_custom_call.1} parent=55 // pred_check
          %p437 = pneg %p105
        $region66: #{tpu_custom_call.1} parent=55 // pred_check_branch
          %439 = sbr.rel (%p437) target = $region68
        $region67: #{tpu_custom_call.1} parent=55 // pred_region
          %440 = dma.done %s433, 256
        $region68: #{tpu_custom_call.1} parent=55 // pred_fallthru
          _
        // Predicated region
        $region69: #{tpu_custom_call.1} parent=55 // pred_check
          %p441 = pneg %p126
        $region70: #{tpu_custom_call.1} parent=55 // pred_check_branch
          %443 = sbr.rel (%p441) target = $region72
        $region71: #{tpu_custom_call.1} parent=55 // pred_region
          %444 = dma.done [#allocation9], 2048
        $region72: #{tpu_custom_call.1} parent=55 // pred_fallthru
          _
        // Predicated region
        $region73: #{tpu_custom_call.1} parent=55 // pred_check
          %p445 = pneg %p147
        $region74: #{tpu_custom_call.1} parent=55 // pred_check_branch
          %447 = sbr.rel (%p445) target = $region76
        $region75: #{tpu_custom_call.1} parent=55 // pred_region
          %448 = dma.done [#allocation9], 256
        $region76: #{tpu_custom_call.1} parent=55 // pred_fallthru
          _
        // Predicated region
        $region77: #{tpu_custom_call.1} parent=55 // pred_check
          %p449 = pneg %p168
        $region78: #{tpu_custom_call.1} parent=55 // pred_check_branch
          %451 = sbr.rel (%p449) target = $region80
        $region79: #{tpu_custom_call.1} parent=55 // pred_region
          %452 = dma.done [#allocation12], 2048
        $region80: #{tpu_custom_call.1} parent=55 // pred_fallthru
          _
        // Predicated region
        $region81: #{tpu_custom_call.1} parent=55 // pred_check
          %p453 = pneg %p210
        $region82: #{tpu_custom_call.1} parent=55 // pred_check_branch
          %455 = sbr.rel (%p453) target = $region84
        $region83: #{tpu_custom_call.1} parent=55 // pred_region
          %456 = dma.done [#allocation12], 2048
        $region84: #{tpu_custom_call.1} parent=55 // pred_fallthru
          _
        // Predicated region
        $region85: #{tpu_custom_call.1} parent=55 // pred_check
          %p457 = pneg %p231
        $region86: #{tpu_custom_call.1} parent=55 // pred_check_branch
          %459 = sbr.rel (%p457) target = $region88
        $region87: #{tpu_custom_call.1} parent=55 // pred_region
          %460 = dma.done [#allocation15], 256
        $region88: #{tpu_custom_call.1} parent=55 // pred_fallthru
          _
        %s461 = sand.u32 %s40, 1
        %s462 = scalar_lea.sflag [#allocation3], %s461
        %s463 = sand.u32 %s40, 1
        %s464 = smul.addr %s463, 16
        %s465 = scalar_lea.vmem [#allocation2], %s464
        %p466 = pneg %p53
        %p467 = pneg %p50
        %s468 = sand.u32 %s32, 1
        %s469 = scalar_lea.sflag [#allocation6], %s468
        %s470 = sand.u32 %s66, 1
        %s471 = smul.addr %s470, 16
        %s472 = scalar_lea.vmem [#allocation5], %s471
        %p473 = pneg %p79
        %p474 = pneg %p76
        %s475 = sand.u32 %s32, 1
        %s476 = scalar_lea.sflag [#allocation6], %s475
        %s477 = sand.u32 %s92, 1
        %s478 = smul.addr %s477, 16
        %s479 = scalar_lea.vmem [#allocation7], %s478
        %p480 = pneg %p105
        %p481 = pneg %p102
        %p482 = pneg %p126
        %p483 = pneg %p123
        %p484 = pneg %p147
        %p485 = pneg %p144
        %p486 = pneg %p168
        %p487 = pneg %p165
        %p488 = pneg %p189
        %p489 = pneg %p186
        %p490 = pneg %p210
        %p491 = pneg %p207
        %p492 = pneg %p231
        %p493 = pneg %p228
        %p494 = pneg %p257
        %p495 = pneg %p254
        %s496 = sand.u32 %s244, 1
        %s497 = scalar_lea.sflag [#allocation4], %s496
        %s498 = sand.u32 %s244, 1
        %s499 = smul.addr %s498, 8
        %s500 = scalar_lea.vmem [#allocation16], %s499
        %v501 = vld [vmem:[#allocation8] sm:$0xff]
        %v502 = vld [vmem:[#allocation8 + $0x8] sm:$0xff]
        %v503 = vld [vmem:[#allocation8 + $0x10] sm:$0xff]
        %v504 = vld [vmem:[#allocation8 + $0x18] sm:$0xff]
        %v505 = vld [vmem:[#allocation8 + $0x20] sm:$0xff]
        %v506 = vld [vmem:[#allocation8 + $0x28] sm:$0xff]
        %v507 = vld [vmem:[#allocation8 + $0x30] sm:$0xff]
        %v508 = vld [vmem:[#allocation8 + $0x38] sm:$0xff]
        %v509 = vld [vmem:[#allocation8 + $0x40] sm:$0xff]
        %v510 = vld [vmem:[#allocation8 + $0x48] sm:$0xff]
        %v511 = vld [vmem:[#allocation8 + $0x50] sm:$0xff]
        %v512 = vld [vmem:[#allocation8 + $0x58] sm:$0xff]
        %v513 = vld [vmem:[#allocation8 + $0x60] sm:$0xff]
        %v514 = vld [vmem:[#allocation8 + $0x68] sm:$0xff]
        %v515 = vld [vmem:[#allocation8 + $0x70] sm:$0xff]
        %v516 = vld [vmem:[#allocation8 + $0x78] sm:$0xff]
        %v517 = vld [vmem:[#allocation10] sm:$0xff]
        %v518 = vld [vmem:[#allocation10 + $0x8] sm:$0xff]
        %v519 = vld [vmem:[#allocation11] sm:$0xff]
        %v520 = vld [vmem:[#allocation11 + $0x8] sm:$0xff]
        %v521 = vld [vmem:[#allocation11 + $0x10] sm:$0xff]
        %v522 = vld [vmem:[#allocation11 + $0x18] sm:$0xff]
        %v523 = vld [vmem:[#allocation11 + $0x20] sm:$0xff]
        %v524 = vld [vmem:[#allocation11 + $0x28] sm:$0xff]
        %v525 = vld [vmem:[#allocation11 + $0x30] sm:$0xff]
        %v526 = vld [vmem:[#allocation11 + $0x38] sm:$0xff]
        %v527 = vld [vmem:[#allocation11 + $0x40] sm:$0xff]
        %v528 = vld [vmem:[#allocation11 + $0x48] sm:$0xff]
        %v529 = vld [vmem:[#allocation11 + $0x50] sm:$0xff]
        %v530 = vld [vmem:[#allocation11 + $0x58] sm:$0xff]
        %v531 = vld [vmem:[#allocation11 + $0x60] sm:$0xff]
        %v532 = vld [vmem:[#allocation11 + $0x68] sm:$0xff]
        %v533 = vld [vmem:[#allocation11 + $0x70] sm:$0xff]
        %v534 = vld [vmem:[#allocation11 + $0x78] sm:$0xff]
        %v535 = vld [vmem:[#allocation13] sm:$0xff]
        %v536 = vld [vmem:[#allocation13 + $0x8] sm:$0xff]
        %v537 = vld [vmem:[#allocation13 + $0x10] sm:$0xff]
        %v538 = vld [vmem:[#allocation13 + $0x18] sm:$0xff]
        %v539 = vld [vmem:[#allocation13 + $0x20] sm:$0xff]
        %v540 = vld [vmem:[#allocation13 + $0x28] sm:$0xff]
        %v541 = vld [vmem:[#allocation13 + $0x30] sm:$0xff]
        %v542 = vld [vmem:[#allocation13 + $0x38] sm:$0xff]
        %v543 = vld [vmem:[#allocation13 + $0x40] sm:$0xff]
        %v544 = vld [vmem:[#allocation13 + $0x48] sm:$0xff]
        %v545 = vld [vmem:[#allocation13 + $0x50] sm:$0xff]
        %v546 = vld [vmem:[#allocation13 + $0x58] sm:$0xff]
        %v547 = vld [vmem:[#allocation13 + $0x60] sm:$0xff]
        %v548 = vld [vmem:[#allocation13 + $0x68] sm:$0xff]
        %v549 = vld [vmem:[#allocation13 + $0x70] sm:$0xff]
        %v550 = vld [vmem:[#allocation13 + $0x78] sm:$0xff]
        %v551 = vld [vmem:[%s6] sm:$0xff]
        %v552 = vld [vmem:[%s6 + $0x8] sm:$0xff]
        %v553 = vld [vmem:[#allocation14] sm:$0xff]
        %v554 = vld [vmem:[#allocation14 + $0x8] sm:$0xff]
        %v555 = vld [vmem:[%s418] sm:$0xff]
        %v556 = vld [vmem:[%s418 + $0x8] sm:$0xff]
        %v557 = vld [vmem:[%s427] sm:$0xff]
        %v558 = vld [vmem:[%s427 + $0x8] sm:$0xff]
        %v559 = vld [vmem:[%s436] sm:$0xff]
        %v560 = vld [vmem:[%s436 + $0x8] sm:$0xff]
        %561 = vmatprep.subr.mxu0 0.0
        %562 = vmatpush1.msra.mxu0 %v519
        %563 = vmatprep.subr.mxu0 0.0
        %564 = vmatpush1.msra.mxu0 %v520
        %565 = vmatprep.subr.mxu0 0.0
        %566 = vmatpush1.msra.mxu0 %v521
        %567 = vmatprep.subr.mxu0 0.0
        %568 = vmatpush1.msra.mxu0 %v522
        %569 = vmatprep.subr.mxu0 0.0
        %570 = vmatpush1.msra.mxu0 %v523
        %571 = vmatprep.subr.mxu0 0.0
        %572 = vmatpush1.msra.mxu0 %v524
        %573 = vmatprep.subr.mxu0 0.0
        %574 = vmatpush1.msra.mxu0 %v525
        %575 = vmatprep.subr.mxu0 0.0
        %576 = vmatpush1.msra.mxu0 %v526
        %577 = vmatprep.subr.mxu0 0.0
        %578 = vmatpush1.msra.mxu0 %v527
        %579 = vmatprep.subr.mxu0 0.0
        %580 = vmatpush1.msra.mxu0 %v528
        %581 = vmatprep.subr.mxu0 0.0
        %582 = vmatpush1.msra.mxu0 %v529
        %583 = vmatprep.subr.mxu0 0.0
        %584 = vmatpush1.msra.mxu0 %v530
        %585 = vmatprep.subr.mxu0 0.0
        %586 = vmatpush1.msra.mxu0 %v531
        %587 = vmatprep.subr.mxu0 0.0
        %588 = vmatpush1.msra.mxu0 %v532
        %589 = vmatprep.subr.mxu0 0.0
        %590 = vmatpush1.msra.mxu0 %v533
        %591 = vmatprep.subr.mxu0 0.0
        %592 = vmatpush1.msra.mxu0 %v534
        %593 = vmatprep.subr.mxu0 0.0
        %594 = vmatpush1.msra.mxu0 0.0
        %595 = vmatprep.subr.mxu0 0.0
        %596 = vmatpush1.msra.mxu0 0.0
        %597 = vmatprep.subr.mxu0 0.0
        %598 = vmatpush1.msra.mxu0 0.0
        %599 = vmatprep.subr.mxu0 0.0
        %600 = vmatpush1.msra.mxu0 0.0
        %601 = vmatprep.subr.mxu0 0.0
        %602 = vmatpush1.msra.mxu0 0.0
        %603 = vmatprep.subr.mxu0 0.0
        %604 = vmatpush1.msra.mxu0 0.0
        %605 = vmatprep.subr.mxu0 0.0
        %606 = vmatpush1.msra.mxu0 0.0
        %607 = vmatprep.subr.mxu0 0.0
        %608 = vmatpush1.msra.mxu0 0.0
        %609 = vmatprep.subr.mxu0 0.0
        %610 = vmatpush1.msra.mxu0 0.0
        %611 = vmatprep.subr.mxu0 0.0
        %612 = vmatpush1.msra.mxu0 0.0
        %613 = vmatprep.subr.mxu0 0.0
        %614 = vmatpush1.msra.mxu0 0.0
        %615 = vmatprep.subr.mxu0 0.0
        %616 = vmatpush1.msra.mxu0 0.0
        %617 = vmatprep.subr.mxu0 0.0
        %618 = vmatpush1.msra.mxu0 0.0
        %619 = vmatprep.subr.mxu0 0.0
        %620 = vmatpush1.msra.mxu0 0.0
        %621 = vmatprep.subr.mxu0 0.0
        %622 = vmatpush1.msra.mxu0 0.0
        %623 = vmatprep.subr.mxu0 0.0
        %624 = vmatpush1.msra.mxu0 0.0
        %625 = vmatprep.mubr.f32.mxu0 0.0
        %626 = vmatmul.mubr.f32.gmra.mrb[0].mxu0 %v555
        %v627 = vpop.f32.mrb[0].mxu0
        %v628 = vadd.f32 0.0, %v627
        %v629 = vpop.f32.mrb[0].mxu0
        %630 = vmatprep.mubr.f32.mxu0 0.0
        %631 = vmatmul.mubr.f32.gmra.mrb[0].mxu0 %v556
        %v632 = vpop.f32.mrb[0].mxu0
        %v633 = vadd.f32 0.0, %v632
        %v634 = vpop.f32.mrb[0].mxu0
        %635 = vmatprep.mubr.f32.mxu0 0.0
        %636 = vmatmul.mubr.f32.gmra.mrb[0].mxu0 %v557
        %v637 = vpop.f32.mrb[0].mxu0
        %v638 = vadd.f32 0.0, %v637
        %v639 = vpop.f32.mrb[0].mxu0
        %640 = vmatprep.mubr.f32.mxu0 0.0
        %641 = vmatmul.mubr.f32.gmra.mrb[0].mxu0 %v558
        %v642 = vpop.f32.mrb[0].mxu0
        %v643 = vadd.f32 0.0, %v642
        %v644 = vpop.f32.mrb[0].mxu0
        %645 = vdwg.mxu0
        %646 = vmatprep.subr.mxu0 0.0
        %647 = vmatpush1.msra.mxu0 %v535
        %648 = vmatprep.subr.mxu0 0.0
        %649 = vmatpush1.msra.mxu0 %v536
        %650 = vmatprep.subr.mxu0 0.0
        %651 = vmatpush1.msra.mxu0 %v537
        %652 = vmatprep.subr.mxu0 0.0
        %653 = vmatpush1.msra.mxu0 %v538
        %654 = vmatprep.subr.mxu0 0.0
        %655 = vmatpush1.msra.mxu0 %v539
        %656 = vmatprep.subr.mxu0 0.0
        %657 = vmatpush1.msra.mxu0 %v540
        %658 = vmatprep.subr.mxu0 0.0
        %659 = vmatpush1.msra.mxu0 %v541
        %660 = vmatprep.subr.mxu0 0.0
        %661 = vmatpush1.msra.mxu0 %v542
        %662 = vmatprep.subr.mxu0 0.0
        %663 = vmatpush1.msra.mxu0 %v543
        %664 = vmatprep.subr.mxu0 0.0
        %665 = vmatpush1.msra.mxu0 %v544
        %666 = vmatprep.subr.mxu0 0.0
        %667 = vmatpush1.msra.mxu0 %v545
        %668 = vmatprep.subr.mxu0 0.0
        %669 = vmatpush1.msra.mxu0 %v546
        %670 = vmatprep.subr.mxu0 0.0
        %671 = vmatpush1.msra.mxu0 %v547
        %672 = vmatprep.subr.mxu0 0.0
        %673 = vmatpush1.msra.mxu0 %v548
        %674 = vmatprep.subr.mxu0 0.0
        %675 = vmatpush1.msra.mxu0 %v549
        %676 = vmatprep.subr.mxu0 0.0
        %677 = vmatpush1.msra.mxu0 %v550
        %678 = vmatprep.subr.mxu0 0.0
        %679 = vmatpush1.msra.mxu0 0.0
        %680 = vmatprep.subr.mxu0 0.0
        %681 = vmatpush1.msra.mxu0 0.0
        %682 = vmatprep.subr.mxu0 0.0
        %683 = vmatpush1.msra.mxu0 0.0
        %684 = vmatprep.subr.mxu0 0.0
        %685 = vmatpush1.msra.mxu0 0.0
        %686 = vmatprep.subr.mxu0 0.0
        %687 = vmatpush1.msra.mxu0 0.0
        %688 = vmatprep.subr.mxu0 0.0
        %689 = vmatpush1.msra.mxu0 0.0
        %690 = vmatprep.subr.mxu0 0.0
        %691 = vmatpush1.msra.mxu0 0.0
        %692 = vmatprep.subr.mxu0 0.0
        %693 = vmatpush1.msra.mxu0 0.0
        %694 = vmatprep.subr.mxu0 0.0
        %695 = vmatpush1.msra.mxu0 0.0
        %696 = vmatprep.subr.mxu0 0.0
        %697 = vmatpush1.msra.mxu0 0.0
        %698 = vmatprep.subr.mxu0 0.0
        %699 = vmatpush1.msra.mxu0 0.0
        %700 = vmatprep.subr.mxu0 0.0
        %701 = vmatpush1.msra.mxu0 0.0
        %702 = vmatprep.subr.mxu0 0.0
        %703 = vmatpush1.msra.mxu0 0.0
        %704 = vmatprep.subr.mxu0 0.0
        %705 = vmatpush1.msra.mxu0 0.0
        %706 = vmatprep.subr.mxu0 0.0
        %707 = vmatpush1.msra.mxu0 0.0
        %708 = vmatprep.subr.mxu0 0.0
        %709 = vmatpush1.msra.mxu0 0.0
        %710 = vmatprep.mubr.f32.mxu0 0.0
        %711 = vmatmul.mubr.f32.gmra.mrb[0].mxu0 %v555
        %v712 = vpop.f32.mrb[0].mxu0
        %v713 = vadd.f32 0.0, %v712
        %v714 = vpop.f32.mrb[0].mxu0
        %715 = vmatprep.mubr.f32.mxu0 0.0
        %716 = vmatmul.mubr.f32.gmra.mrb[0].mxu0 %v556
        %v717 = vpop.f32.mrb[0].mxu0
        %v718 = vadd.f32 0.0, %v717
        %v719 = vpop.f32.mrb[0].mxu0
        %720 = vmatprep.mubr.f32.mxu0 0.0
        %721 = vmatmul.mubr.f32.gmra.mrb[0].mxu0 %v557
        %v722 = vpop.f32.mrb[0].mxu0
        %v723 = vadd.f32 0.0, %v722
        %v724 = vpop.f32.mrb[0].mxu0
        %725 = vmatprep.mubr.f32.mxu0 0.0
        %726 = vmatmul.mubr.f32.gmra.mrb[0].mxu0 %v558
        %v727 = vpop.f32.mrb[0].mxu0
        %v728 = vadd.f32 0.0, %v727
        %v729 = vpop.f32.mrb[0].mxu0
        %730 = vdwg.mxu0
        %vm731 = vcmask 130048
        %v733 = vsel %vm731, %v551, 0
        %v736 = vsel %vm731, %v552, 0
        %738 = vmatprep.subr.mxu0 0.0
        %739 = vmatpush1.msra.mxu0 %v628
        %740 = vmatprep.subr.mxu0 0.0
        %741 = vmatpush1.msra.mxu0 %v633
        %742 = vmatprep.subr.mxu0 0.0
        %743 = vmatpush1.msra.mxu0 0.0
        %744 = vmatprep.subr.mxu0 0.0
        %745 = vmatpush1.msra.mxu0 0.0
        %746 = vmatprep.subr.mxu0 0.0
        %747 = vmatpush1.msra.mxu0 0.0
        %748 = vmatprep.subr.mxu0 0.0
        %749 = vmatpush1.msra.mxu0 0.0
        %750 = vmatprep.subr.mxu0 0.0
        %751 = vmatpush1.msra.mxu0 0.0
        %752 = vmatprep.subr.mxu0 0.0
        %753 = vmatpush1.msra.mxu0 0.0
        %754 = vmatprep.subr.mxu0 0.0
        %755 = vmatpush1.msra.mxu0 0.0
        %756 = vmatprep.subr.mxu0 0.0
        %757 = vmatpush1.msra.mxu0 0.0
        %758 = vmatprep.subr.mxu0 0.0
        %759 = vmatpush1.msra.mxu0 0.0
        %760 = vmatprep.subr.mxu0 0.0
        %761 = vmatpush1.msra.mxu0 0.0
        %762 = vmatprep.subr.mxu0 0.0
        %763 = vmatpush1.msra.mxu0 0.0
        %764 = vmatprep.subr.mxu0 0.0
        %765 = vmatpush1.msra.mxu0 0.0
        %766 = vmatprep.subr.mxu0 0.0
        %767 = vmatpush1.msra.mxu0 0.0
        %768 = vmatprep.subr.mxu0 0.0
        %769 = vmatpush1.msra.mxu0 0.0
        %770 = vmatprep.subr.mxu0 0.0
        %771 = vmatpush1.msra.mxu0 0.0
        %772 = vmatprep.subr.mxu0 0.0
        %773 = vmatpush1.msra.mxu0 0.0
        %774 = vmatprep.subr.mxu0 0.0
        %775 = vmatpush1.msra.mxu0 0.0
        %776 = vmatprep.subr.mxu0 0.0
        %777 = vmatpush1.msra.mxu0 0.0
        %778 = vmatprep.subr.mxu0 0.0
        %779 = vmatpush1.msra.mxu0 0.0
        %780 = vmatprep.subr.mxu0 0.0
        %781 = vmatpush1.msra.mxu0 0.0
        %782 = vmatprep.subr.mxu0 0.0
        %783 = vmatpush1.msra.mxu0 0.0
        %784 = vmatprep.subr.mxu0 0.0
        %785 = vmatpush1.msra.mxu0 0.0
        %786 = vmatprep.subr.mxu0 0.0
        %787 = vmatpush1.msra.mxu0 0.0
        %788 = vmatprep.subr.mxu0 0.0
        %789 = vmatpush1.msra.mxu0 0.0
        %790 = vmatprep.subr.mxu0 0.0
        %791 = vmatpush1.msra.mxu0 0.0
        %792 = vmatprep.subr.mxu0 0.0
        %793 = vmatpush1.msra.mxu0 0.0
        %794 = vmatprep.subr.mxu0 0.0
        %795 = vmatpush1.msra.mxu0 0.0
        %796 = vmatprep.subr.mxu0 0.0
        %797 = vmatpush1.msra.mxu0 0.0
        %798 = vmatprep.subr.mxu0 0.0
        %799 = vmatpush1.msra.mxu0 0.0
        %800 = vmatprep.subr.mxu0 0.0
        %801 = vmatpush1.msra.mxu0 0.0
        %802 = vmatprep.mubr.f32.mxu0 0.0
        %803 = vmatmul.mubr.f32.gmra.mrb[0].mxu0 %v733
        %v804 = vpop.f32.mrb[0].mxu0
        %v805 = vadd.f32 0.0, %v804
        %v806 = vpop.f32.mrb[0].mxu0
        %807 = vmatprep.mubr.f32.mxu0 0.0
        %808 = vmatmul.mubr.f32.gmra.mrb[0].mxu0 %v736
        %v809 = vpop.f32.mrb[0].mxu0
        %v810 = vadd.f32 0.0, %v809
        %v811 = vpop.f32.mrb[0].mxu0
        %812 = vdwg.mxu0
        %v814 = vsel %vm731, %v553, 0
        %v817 = vsel %vm731, %v554, 0
        %819 = vmatprep.subr.mxu0 0.0
        %820 = vmatpush1.msra.mxu0 %v713
        %821 = vmatprep.subr.mxu0 0.0
        %822 = vmatpush1.msra.mxu0 %v718
        %823 = vmatprep.subr.mxu0 0.0
        %824 = vmatpush1.msra.mxu0 0.0
        %825 = vmatprep.subr.mxu0 0.0
        %826 = vmatpush1.msra.mxu0 0.0
        %827 = vmatprep.subr.mxu0 0.0
        %828 = vmatpush1.msra.mxu0 0.0
        %829 = vmatprep.subr.mxu0 0.0
        %830 = vmatpush1.msra.mxu0 0.0
        %831 = vmatprep.subr.mxu0 0.0
        %832 = vmatpush1.msra.mxu0 0.0
        %833 = vmatprep.subr.mxu0 0.0
        %834 = vmatpush1.msra.mxu0 0.0
        %835 = vmatprep.subr.mxu0 0.0
        %836 = vmatpush1.msra.mxu0 0.0
        %837 = vmatprep.subr.mxu0 0.0
        %838 = vmatpush1.msra.mxu0 0.0
        %839 = vmatprep.subr.mxu0 0.0
        %840 = vmatpush1.msra.mxu0 0.0
        %841 = vmatprep.subr.mxu0 0.0
        %842 = vmatpush1.msra.mxu0 0.0
        %843 = vmatprep.subr.mxu0 0.0
        %844 = vmatpush1.msra.mxu0 0.0
        %845 = vmatprep.subr.mxu0 0.0
        %846 = vmatpush1.msra.mxu0 0.0
        %847 = vmatprep.subr.mxu0 0.0
        %848 = vmatpush1.msra.mxu0 0.0
        %849 = vmatprep.subr.mxu0 0.0
        %850 = vmatpush1.msra.mxu0 0.0
        %851 = vmatprep.subr.mxu0 0.0
        %852 = vmatpush1.msra.mxu0 0.0
        %853 = vmatprep.subr.mxu0 0.0
        %854 = vmatpush1.msra.mxu0 0.0
        %855 = vmatprep.subr.mxu0 0.0
        %856 = vmatpush1.msra.mxu0 0.0
        %857 = vmatprep.subr.mxu0 0.0
        %858 = vmatpush1.msra.mxu0 0.0
        %859 = vmatprep.subr.mxu0 0.0
        %860 = vmatpush1.msra.mxu0 0.0
        %861 = vmatprep.subr.mxu0 0.0
        %862 = vmatpush1.msra.mxu0 0.0
        %863 = vmatprep.subr.mxu0 0.0
        %864 = vmatpush1.msra.mxu0 0.0
        %865 = vmatprep.subr.mxu0 0.0
        %866 = vmatpush1.msra.mxu0 0.0
        %867 = vmatprep.subr.mxu0 0.0
        %868 = vmatpush1.msra.mxu0 0.0
        %869 = vmatprep.subr.mxu0 0.0
        %870 = vmatpush1.msra.mxu0 0.0
        %871 = vmatprep.subr.mxu0 0.0
        %872 = vmatpush1.msra.mxu0 0.0
        %873 = vmatprep.subr.mxu0 0.0
        %874 = vmatpush1.msra.mxu0 0.0
        %875 = vmatprep.subr.mxu0 0.0
        %876 = vmatpush1.msra.mxu0 0.0
        %877 = vmatprep.subr.mxu0 0.0
        %878 = vmatpush1.msra.mxu0 0.0
        %879 = vmatprep.subr.mxu0 0.0
        %880 = vmatpush1.msra.mxu0 0.0
        %881 = vmatprep.subr.mxu0 0.0
        %882 = vmatpush1.msra.mxu0 0.0
        %883 = vmatprep.mubr.f32.mxu0 0.0
        %884 = vmatmul.mubr.f32.gmra.mrb[0].mxu0 %v814
        %v885 = vpop.f32.mrb[0].mxu0
        %v886 = vadd.f32 0.0, %v885
        %v887 = vpop.f32.mrb[0].mxu0
        %888 = vmatprep.mubr.f32.mxu0 0.0
        %889 = vmatmul.mubr.f32.gmra.mrb[0].mxu0 %v817
        %v890 = vpop.f32.mrb[0].mxu0
        %v891 = vadd.f32 0.0, %v890
        %v892 = vpop.f32.mrb[0].mxu0
        %893 = vdwg.mxu0
        %v894 = vand.u32 2147483647, %v805
        %v895 = vand.u32 2147483647, %v810
        %v896 = vand.u32 2147483647, %v886
        %v897 = vand.u32 2147483647, %v891
        %v898 = vadd.f32 %v894, %v896
        %v899 = vadd.f32 %v895, %v897
        %v900 = vadd.f32 %v898, %v899
        %901 = vadd.xlane.f32.xlu0 %v900
        %v902 = vpop.xlane.xlu0 %901
        %v903 = vrot.slane %v902, 4
        %v904 = vadd.f32 %v902, %v903
        %v905 = vrot.slane %v904, 2
        %v906 = vadd.f32 %v904, %v905
        %v907 = vrot.slane %v906, 1
        %v908 = vadd.f32 %v906, %v907
        %s909 = vtos %v908
        %910 = vmatprep.subr.mxu0 0.0
        %911 = vmatpush1.msra.mxu0 %v638
        %912 = vmatprep.subr.mxu0 0.0
        %913 = vmatpush1.msra.mxu0 %v643
        %914 = vmatprep.subr.mxu0 0.0
        %915 = vmatpush1.msra.mxu0 0.0
        %916 = vmatprep.subr.mxu0 0.0
        %917 = vmatpush1.msra.mxu0 0.0
        %918 = vmatprep.subr.mxu0 0.0
        %919 = vmatpush1.msra.mxu0 0.0
        %920 = vmatprep.subr.mxu0 0.0
        %921 = vmatpush1.msra.mxu0 0.0
        %922 = vmatprep.subr.mxu0 0.0
        %923 = vmatpush1.msra.mxu0 0.0
        %924 = vmatprep.subr.mxu0 0.0
        %925 = vmatpush1.msra.mxu0 0.0
        %926 = vmatprep.subr.mxu0 0.0
        %927 = vmatpush1.msra.mxu0 0.0
        %928 = vmatprep.subr.mxu0 0.0
        %929 = vmatpush1.msra.mxu0 0.0
        %930 = vmatprep.subr.mxu0 0.0
        %931 = vmatpush1.msra.mxu0 0.0
        %932 = vmatprep.subr.mxu0 0.0
        %933 = vmatpush1.msra.mxu0 0.0
        %934 = vmatprep.subr.mxu0 0.0
        %935 = vmatpush1.msra.mxu0 0.0
        %936 = vmatprep.subr.mxu0 0.0
        %937 = vmatpush1.msra.mxu0 0.0
        %938 = vmatprep.subr.mxu0 0.0
        %939 = vmatpush1.msra.mxu0 0.0
        %940 = vmatprep.subr.mxu0 0.0
        %941 = vmatpush1.msra.mxu0 0.0
        %942 = vmatprep.subr.mxu0 0.0
        %943 = vmatpush1.msra.mxu0 0.0
        %944 = vmatprep.subr.mxu0 0.0
        %945 = vmatpush1.msra.mxu0 0.0
        %946 = vmatprep.subr.mxu0 0.0
        %947 = vmatpush1.msra.mxu0 0.0
        %948 = vmatprep.subr.mxu0 0.0
        %949 = vmatpush1.msra.mxu0 0.0
        %950 = vmatprep.subr.mxu0 0.0
        %951 = vmatpush1.msra.mxu0 0.0
        %952 = vmatprep.subr.mxu0 0.0
        %953 = vmatpush1.msra.mxu0 0.0
        %954 = vmatprep.subr.mxu0 0.0
        %955 = vmatpush1.msra.mxu0 0.0
        %956 = vmatprep.subr.mxu0 0.0
        %957 = vmatpush1.msra.mxu0 0.0
        %958 = vmatprep.subr.mxu0 0.0
        %959 = vmatpush1.msra.mxu0 0.0
        %960 = vmatprep.subr.mxu0 0.0
        %961 = vmatpush1.msra.mxu0 0.0
        %962 = vmatprep.subr.mxu0 0.0
        %963 = vmatpush1.msra.mxu0 0.0
        %964 = vmatprep.subr.mxu0 0.0
        %965 = vmatpush1.msra.mxu0 0.0
        %966 = vmatprep.subr.mxu0 0.0
        %967 = vmatpush1.msra.mxu0 0.0
        %968 = vmatprep.subr.mxu0 0.0
        %969 = vmatpush1.msra.mxu0 0.0
        %970 = vmatprep.subr.mxu0 0.0
        %971 = vmatpush1.msra.mxu0 0.0
        %972 = vmatprep.subr.mxu0 0.0
        %973 = vmatpush1.msra.mxu0 0.0
        %974 = vmatprep.mubr.f32.mxu0 0.0
        %975 = vmatmul.mubr.f32.gmra.mrb[0].mxu0 %v733
        %v976 = vpop.f32.mrb[0].mxu0
        %v977 = vadd.f32 0.0, %v976
        %v978 = vpop.f32.mrb[0].mxu0
        %979 = vmatprep.mubr.f32.mxu0 0.0
        %980 = vmatmul.mubr.f32.gmra.mrb[0].mxu0 %v736
        %v981 = vpop.f32.mrb[0].mxu0
        %v982 = vadd.f32 0.0, %v981
        %v983 = vpop.f32.mrb[0].mxu0
        %984 = vdwg.mxu0
        %985 = vmatprep.subr.mxu0 0.0
        %986 = vmatpush1.msra.mxu0 %v723
        %987 = vmatprep.subr.mxu0 0.0
        %988 = vmatpush1.msra.mxu0 %v728
        %989 = vmatprep.subr.mxu0 0.0
        %990 = vmatpush1.msra.mxu0 0.0
        %991 = vmatprep.subr.mxu0 0.0
        %992 = vmatpush1.msra.mxu0 0.0
        %993 = vmatprep.subr.mxu0 0.0
        %994 = vmatpush1.msra.mxu0 0.0
        %995 = vmatprep.subr.mxu0 0.0
        %996 = vmatpush1.msra.mxu0 0.0
        %997 = vmatprep.subr.mxu0 0.0
        %998 = vmatpush1.msra.mxu0 0.0
        %999 = vmatprep.subr.mxu0 0.0
        %1000 = vmatpush1.msra.mxu0 0.0
        %1001 = vmatprep.subr.mxu0 0.0
        %1002 = vmatpush1.msra.mxu0 0.0
        %1003 = vmatprep.subr.mxu0 0.0
        %1004 = vmatpush1.msra.mxu0 0.0
        %1005 = vmatprep.subr.mxu0 0.0
        %1006 = vmatpush1.msra.mxu0 0.0
        %1007 = vmatprep.subr.mxu0 0.0
        %1008 = vmatpush1.msra.mxu0 0.0
        %1009 = vmatprep.subr.mxu0 0.0
        %1010 = vmatpush1.msra.mxu0 0.0
        %1011 = vmatprep.subr.mxu0 0.0
        %1012 = vmatpush1.msra.mxu0 0.0
        %1013 = vmatprep.subr.mxu0 0.0
        %1014 = vmatpush1.msra.mxu0 0.0
        %1015 = vmatprep.subr.mxu0 0.0
        %1016 = vmatpush1.msra.mxu0 0.0
        %1017 = vmatprep.subr.mxu0 0.0
        %1018 = vmatpush1.msra.mxu0 0.0
        %1019 = vmatprep.subr.mxu0 0.0
        %1020 = vmatpush1.msra.mxu0 0.0
        %1021 = vmatprep.subr.mxu0 0.0
        %1022 = vmatpush1.msra.mxu0 0.0
        %1023 = vmatprep.subr.mxu0 0.0
        %1024 = vmatpush1.msra.mxu0 0.0
        %1025 = vmatprep.subr.mxu0 0.0
        %1026 = vmatpush1.msra.mxu0 0.0
        %1027 = vmatprep.subr.mxu0 0.0
        %1028 = vmatpush1.msra.mxu0 0.0
        %1029 = vmatprep.subr.mxu0 0.0
        %1030 = vmatpush1.msra.mxu0 0.0
        %1031 = vmatprep.subr.mxu0 0.0
        %1032 = vmatpush1.msra.mxu0 0.0
        %1033 = vmatprep.subr.mxu0 0.0
        %1034 = vmatpush1.msra.mxu0 0.0
        %1035 = vmatprep.subr.mxu0 0.0
        %1036 = vmatpush1.msra.mxu0 0.0
        %1037 = vmatprep.subr.mxu0 0.0
        %1038 = vmatpush1.msra.mxu0 0.0
        %1039 = vmatprep.subr.mxu0 0.0
        %1040 = vmatpush1.msra.mxu0 0.0
        %1041 = vmatprep.subr.mxu0 0.0
        %1042 = vmatpush1.msra.mxu0 0.0
        %1043 = vmatprep.subr.mxu0 0.0
        %1044 = vmatpush1.msra.mxu0 0.0
        %1045 = vmatprep.subr.mxu0 0.0
        %1046 = vmatpush1.msra.mxu0 0.0
        %1047 = vmatprep.subr.mxu0 0.0
        %1048 = vmatpush1.msra.mxu0 0.0
        %1049 = vmatprep.mubr.f32.mxu0 0.0
        %1050 = vmatmul.mubr.f32.gmra.mrb[0].mxu0 %v814
        %v1051 = vpop.f32.mrb[0].mxu0
        %v1052 = vadd.f32 0.0, %v1051
        %v1053 = vpop.f32.mrb[0].mxu0
        %1054 = vmatprep.mubr.f32.mxu0 0.0
        %1055 = vmatmul.mubr.f32.gmra.mrb[0].mxu0 %v817
        %v1056 = vpop.f32.mrb[0].mxu0
        %v1057 = vadd.f32 0.0, %v1056
        %v1058 = vpop.f32.mrb[0].mxu0
        %1059 = vdwg.mxu0
        %v1060 = vand.u32 2147483647, %v977
        %v1061 = vand.u32 2147483647, %v982
        %v1062 = vand.u32 2147483647, %v1052
        %v1063 = vand.u32 2147483647, %v1057
        %v1064 = vadd.f32 %v1060, %v1062
        %v1065 = vadd.f32 %v1061, %v1063
        %v1066 = vadd.f32 %v1064, %v1065
        %1067 = vadd.xlane.f32.xlu0 %v1066
        %v1068 = vpop.xlane.xlu0 %1067
        %v1069 = vrot.slane %v1068, 4
        %v1070 = vadd.f32 %v1068, %v1069
        %v1071 = vrot.slane %v1070, 2
        %v1072 = vadd.f32 %v1070, %v1071
        %v1073 = vrot.slane %v1072, 1
        %v1074 = vadd.f32 %v1072, %v1073
        %s1075 = vtos %v1074
        %s1076 = sadd.f32 %s909, 0.0
        %s1077 = sadd.f32 %s1075, 0.0
        %v1078 = vmul.f32 %v559, %v559
        %v1079 = vmul.f32 %v560, %v560
        %v1080 = vmul.f32 %v555, %v555
        %v1081 = vmul.f32 %v556, %v556
        %v1082 = vmul.f32 %v555, %v559
        %v1083 = vmul.f32 %v556, %v560
        %v1084 = vmul.f32 %v557, %v557
        %v1085 = vmul.f32 %v558, %v558
        %v1086 = vmul.f32 %v557, %v559
        %v1087 = vmul.f32 %v558, %v560
        %v1089 = vsel %vm731, %v517, 0
        %v1092 = vsel %vm731, %v518, 0
        %1094 = vmatprep.subr.mxu0 %v1078
        %1095 = vmatpush1.msra.mxu0 %v559
        %1096 = vmatprep.subr.mxu0 %v1079
        %1097 = vmatpush1.msra.mxu0 %v560
        %1098 = vmatprep.subr.mxu0 0.0
        %1099 = vmatpush1.msra.mxu0 0.0
        %1100 = vmatprep.subr.mxu0 0.0
        %1101 = vmatpush1.msra.mxu0 0.0
        %1102 = vmatprep.subr.mxu0 0.0
        %1103 = vmatpush1.msra.mxu0 0.0
        %1104 = vmatprep.subr.mxu0 0.0
        %1105 = vmatpush1.msra.mxu0 0.0
        %1106 = vmatprep.subr.mxu0 0.0
        %1107 = vmatpush1.msra.mxu0 0.0
        %1108 = vmatprep.subr.mxu0 0.0
        %1109 = vmatpush1.msra.mxu0 0.0
        %1110 = vmatprep.subr.mxu0 0.0
        %1111 = vmatpush1.msra.mxu0 0.0
        %1112 = vmatprep.subr.mxu0 0.0
        %1113 = vmatpush1.msra.mxu0 0.0
        %1114 = vmatprep.subr.mxu0 0.0
        %1115 = vmatpush1.msra.mxu0 0.0
        %1116 = vmatprep.subr.mxu0 0.0
        %1117 = vmatpush1.msra.mxu0 0.0
        %1118 = vmatprep.subr.mxu0 0.0
        %1119 = vmatpush1.msra.mxu0 0.0
        %1120 = vmatprep.subr.mxu0 0.0
        %1121 = vmatpush1.msra.mxu0 0.0
        %1122 = vmatprep.subr.mxu0 0.0
        %1123 = vmatpush1.msra.mxu0 0.0
        %1124 = vmatprep.subr.mxu0 0.0
        %1125 = vmatpush1.msra.mxu0 0.0
        %1126 = vmatprep.subr.mxu0 0.0
        %1127 = vmatpush1.msra.mxu0 0.0
        %1128 = vmatprep.subr.mxu0 0.0
        %1129 = vmatpush1.msra.mxu0 0.0
        %1130 = vmatprep.subr.mxu0 0.0
        %1131 = vmatpush1.msra.mxu0 0.0
        %1132 = vmatprep.subr.mxu0 0.0
        %1133 = vmatpush1.msra.mxu0 0.0
        %1134 = vmatprep.subr.mxu0 0.0
        %1135 = vmatpush1.msra.mxu0 0.0
        %1136 = vmatprep.subr.mxu0 0.0
        %1137 = vmatpush1.msra.mxu0 0.0
        %1138 = vmatprep.subr.mxu0 0.0
        %1139 = vmatpush1.msra.mxu0 0.0
        %1140 = vmatprep.subr.mxu0 0.0
        %1141 = vmatpush1.msra.mxu0 0.0
        %1142 = vmatprep.subr.mxu0 0.0
        %1143 = vmatpush1.msra.mxu0 0.0
        %1144 = vmatprep.subr.mxu0 0.0
        %1145 = vmatpush1.msra.mxu0 0.0
        %1146 = vmatprep.subr.mxu0 0.0
        %1147 = vmatpush1.msra.mxu0 0.0
        %1148 = vmatprep.subr.mxu0 0.0
        %1149 = vmatpush1.msra.mxu0 0.0
        %1150 = vmatprep.subr.mxu0 0.0
        %1151 = vmatpush1.msra.mxu0 0.0
        %1152 = vmatprep.subr.mxu0 0.0
        %1153 = vmatpush1.msra.mxu0 0.0
        %1154 = vmatprep.subr.mxu0 0.0
        %1155 = vmatpush1.msra.mxu0 0.0
        %1156 = vmatprep.subr.mxu0 0.0
        %1157 = vmatpush1.msra.mxu0 0.0
        %1158 = vmatprep.mubr.f32.mxu0 0.0
        %1159 = vmatmul.mubr.f32.gmra.mrb[0].mxu0 %v1089
        %v1160 = vpop.f32.mrb[0].mxu0
        %v1161 = vadd.f32 0.0, %v1160
        %v1162 = vpop.f32.mrb[0].mxu0
        %v1163 = vadd.f32 0.0, %v1162
        %1164 = vmatprep.mubr.f32.mxu0 0.0
        %1165 = vmatmul.mubr.f32.gmra.mrb[0].mxu0 %v1092
        %v1166 = vpop.f32.mrb[0].mxu0
        %v1167 = vadd.f32 0.0, %v1166
        %v1168 = vpop.f32.mrb[0].mxu0
        %v1169 = vadd.f32 0.0, %v1168
        %1170 = vdwg.mxu0
        %1171 = vmatprep.subr.mxu0 %v1080
        %1172 = vmatpush1.msra.mxu0 %v555
        %1173 = vmatprep.subr.mxu0 %v1081
        %1174 = vmatpush1.msra.mxu0 %v556
        %1175 = vmatprep.subr.mxu0 0.0
        %1176 = vmatpush1.msra.mxu0 0.0
        %1177 = vmatprep.subr.mxu0 0.0
        %1178 = vmatpush1.msra.mxu0 0.0
        %1179 = vmatprep.subr.mxu0 0.0
        %1180 = vmatpush1.msra.mxu0 0.0
        %1181 = vmatprep.subr.mxu0 0.0
        %1182 = vmatpush1.msra.mxu0 0.0
        %1183 = vmatprep.subr.mxu0 0.0
        %1184 = vmatpush1.msra.mxu0 0.0
        %1185 = vmatprep.subr.mxu0 0.0
        %1186 = vmatpush1.msra.mxu0 0.0
        %1187 = vmatprep.subr.mxu0 0.0
        %1188 = vmatpush1.msra.mxu0 0.0
        %1189 = vmatprep.subr.mxu0 0.0
        %1190 = vmatpush1.msra.mxu0 0.0
        %1191 = vmatprep.subr.mxu0 0.0
        %1192 = vmatpush1.msra.mxu0 0.0
        %1193 = vmatprep.subr.mxu0 0.0
        %1194 = vmatpush1.msra.mxu0 0.0
        %1195 = vmatprep.subr.mxu0 0.0
        %1196 = vmatpush1.msra.mxu0 0.0
        %1197 = vmatprep.subr.mxu0 0.0
        %1198 = vmatpush1.msra.mxu0 0.0
        %1199 = vmatprep.subr.mxu0 0.0
        %1200 = vmatpush1.msra.mxu0 0.0
        %1201 = vmatprep.subr.mxu0 0.0
        %1202 = vmatpush1.msra.mxu0 0.0
        %1203 = vmatprep.subr.mxu0 0.0
        %1204 = vmatpush1.msra.mxu0 0.0
        %1205 = vmatprep.subr.mxu0 0.0
        %1206 = vmatpush1.msra.mxu0 0.0
        %1207 = vmatprep.subr.mxu0 0.0
        %1208 = vmatpush1.msra.mxu0 0.0
        %1209 = vmatprep.subr.mxu0 0.0
        %1210 = vmatpush1.msra.mxu0 0.0
        %1211 = vmatprep.subr.mxu0 0.0
        %1212 = vmatpush1.msra.mxu0 0.0
        %1213 = vmatprep.subr.mxu0 0.0
        %1214 = vmatpush1.msra.mxu0 0.0
        %1215 = vmatprep.subr.mxu0 0.0
        %1216 = vmatpush1.msra.mxu0 0.0
        %1217 = vmatprep.subr.mxu0 0.0
        %1218 = vmatpush1.msra.mxu0 0.0
        %1219 = vmatprep.subr.mxu0 0.0
        %1220 = vmatpush1.msra.mxu0 0.0
        %1221 = vmatprep.subr.mxu0 0.0
        %1222 = vmatpush1.msra.mxu0 0.0
        %1223 = vmatprep.subr.mxu0 0.0
        %1224 = vmatpush1.msra.mxu0 0.0
        %1225 = vmatprep.subr.mxu0 0.0
        %1226 = vmatpush1.msra.mxu0 0.0
        %1227 = vmatprep.subr.mxu0 0.0
        %1228 = vmatpush1.msra.mxu0 0.0
        %1229 = vmatprep.subr.mxu0 0.0
        %1230 = vmatpush1.msra.mxu0 0.0
        %1231 = vmatprep.subr.mxu0 0.0
        %1232 = vmatpush1.msra.mxu0 0.0
        %1233 = vmatprep.subr.mxu0 0.0
        %1234 = vmatpush1.msra.mxu0 0.0
        %1235 = vmatprep.mubr.f32.mxu0 0.0
        %1236 = vmatmul.mubr.f32.gmra.mrb[0].mxu0 %v1089
        %v1237 = vpop.f32.mrb[0].mxu0
        %v1238 = vadd.f32 0.0, %v1237
        %v1239 = vpop.f32.mrb[0].mxu0
        %v1240 = vadd.f32 0.0, %v1239
        %1241 = vmatprep.mubr.f32.mxu0 0.0
        %1242 = vmatmul.mubr.f32.gmra.mrb[0].mxu0 %v1092
        %v1243 = vpop.f32.mrb[0].mxu0
        %v1244 = vadd.f32 0.0, %v1243
        %v1245 = vpop.f32.mrb[0].mxu0
        %v1246 = vadd.f32 0.0, %v1245
        %1247 = vdwg.mxu0
        %1248 = vmatprep.subr.mxu0 %v557
        %1249 = vmatpush1.msra.mxu0 %v1082
        %1250 = vmatprep.subr.mxu0 %v558
        %1251 = vmatpush1.msra.mxu0 %v1083
        %1252 = vmatprep.subr.mxu0 0.0
        %1253 = vmatpush1.msra.mxu0 0.0
        %1254 = vmatprep.subr.mxu0 0.0
        %1255 = vmatpush1.msra.mxu0 0.0
        %1256 = vmatprep.subr.mxu0 0.0
        %1257 = vmatpush1.msra.mxu0 0.0
        %1258 = vmatprep.subr.mxu0 0.0
        %1259 = vmatpush1.msra.mxu0 0.0
        %1260 = vmatprep.subr.mxu0 0.0
        %1261 = vmatpush1.msra.mxu0 0.0
        %1262 = vmatprep.subr.mxu0 0.0
        %1263 = vmatpush1.msra.mxu0 0.0
        %1264 = vmatprep.subr.mxu0 0.0
        %1265 = vmatpush1.msra.mxu0 0.0
        %1266 = vmatprep.subr.mxu0 0.0
        %1267 = vmatpush1.msra.mxu0 0.0
        %1268 = vmatprep.subr.mxu0 0.0
        %1269 = vmatpush1.msra.mxu0 0.0
        %1270 = vmatprep.subr.mxu0 0.0
        %1271 = vmatpush1.msra.mxu0 0.0
        %1272 = vmatprep.subr.mxu0 0.0
        %1273 = vmatpush1.msra.mxu0 0.0
        %1274 = vmatprep.subr.mxu0 0.0
        %1275 = vmatpush1.msra.mxu0 0.0
        %1276 = vmatprep.subr.mxu0 0.0
        %1277 = vmatpush1.msra.mxu0 0.0
        %1278 = vmatprep.subr.mxu0 0.0
        %1279 = vmatpush1.msra.mxu0 0.0
        %1280 = vmatprep.subr.mxu0 0.0
        %1281 = vmatpush1.msra.mxu0 0.0
        %1282 = vmatprep.subr.mxu0 0.0
        %1283 = vmatpush1.msra.mxu0 0.0
        %1284 = vmatprep.subr.mxu0 0.0
        %1285 = vmatpush1.msra.mxu0 0.0
        %1286 = vmatprep.subr.mxu0 0.0
        %1287 = vmatpush1.msra.mxu0 0.0
        %1288 = vmatprep.subr.mxu0 0.0
        %1289 = vmatpush1.msra.mxu0 0.0
        %1290 = vmatprep.subr.mxu0 0.0
        %1291 = vmatpush1.msra.mxu0 0.0
        %1292 = vmatprep.subr.mxu0 0.0
        %1293 = vmatpush1.msra.mxu0 0.0
        %1294 = vmatprep.subr.mxu0 0.0
        %1295 = vmatpush1.msra.mxu0 0.0
        %1296 = vmatprep.subr.mxu0 0.0
        %1297 = vmatpush1.msra.mxu0 0.0
        %1298 = vmatprep.subr.mxu0 0.0
        %1299 = vmatpush1.msra.mxu0 0.0
        %1300 = vmatprep.subr.mxu0 0.0
        %1301 = vmatpush1.msra.mxu0 0.0
        %1302 = vmatprep.subr.mxu0 0.0
        %1303 = vmatpush1.msra.mxu0 0.0
        %1304 = vmatprep.subr.mxu0 0.0
        %1305 = vmatpush1.msra.mxu0 0.0
        %1306 = vmatprep.subr.mxu0 0.0
        %1307 = vmatpush1.msra.mxu0 0.0
        %1308 = vmatprep.subr.mxu0 0.0
        %1309 = vmatpush1.msra.mxu0 0.0
        %1310 = vmatprep.subr.mxu0 0.0
        %1311 = vmatpush1.msra.mxu0 0.0
        %1312 = vmatprep.mubr.f32.mxu0 0.0
        %1313 = vmatmul.mubr.f32.gmra.mrb[0].mxu0 %v1089
        %v1314 = vpop.f32.mrb[0].mxu0
        %v1315 = vadd.f32 0.0, %v1314
        %v1316 = vpop.f32.mrb[0].mxu0
        %v1317 = vadd.f32 0.0, %v1316
        %1318 = vmatprep.mubr.f32.mxu0 0.0
        %1319 = vmatmul.mubr.f32.gmra.mrb[0].mxu0 %v1092
        %v1320 = vpop.f32.mrb[0].mxu0
        %v1321 = vadd.f32 0.0, %v1320
        %v1322 = vpop.f32.mrb[0].mxu0
        %v1323 = vadd.f32 0.0, %v1322
        %1324 = vdwg.mxu0
        %1325 = vmatprep.subr.mxu0 %v1086
        %1326 = vmatpush1.msra.mxu0 %v1084
        %1327 = vmatprep.subr.mxu0 %v1087
        %1328 = vmatpush1.msra.mxu0 %v1085
        %1329 = vmatprep.subr.mxu0 0.0
        %1330 = vmatpush1.msra.mxu0 0.0
        %1331 = vmatprep.subr.mxu0 0.0
        %1332 = vmatpush1.msra.mxu0 0.0
        %1333 = vmatprep.subr.mxu0 0.0
        %1334 = vmatpush1.msra.mxu0 0.0
        %1335 = vmatprep.subr.mxu0 0.0
        %1336 = vmatpush1.msra.mxu0 0.0
        %1337 = vmatprep.subr.mxu0 0.0
        %1338 = vmatpush1.msra.mxu0 0.0
        %1339 = vmatprep.subr.mxu0 0.0
        %1340 = vmatpush1.msra.mxu0 0.0
        %1341 = vmatprep.subr.mxu0 0.0
        %1342 = vmatpush1.msra.mxu0 0.0
        %1343 = vmatprep.subr.mxu0 0.0
        %1344 = vmatpush1.msra.mxu0 0.0
        %1345 = vmatprep.subr.mxu0 0.0
        %1346 = vmatpush1.msra.mxu0 0.0
        %1347 = vmatprep.subr.mxu0 0.0
        %1348 = vmatpush1.msra.mxu0 0.0
        %1349 = vmatprep.subr.mxu0 0.0
        %1350 = vmatpush1.msra.mxu0 0.0
        %1351 = vmatprep.subr.mxu0 0.0
        %1352 = vmatpush1.msra.mxu0 0.0
        %1353 = vmatprep.subr.mxu0 0.0
        %1354 = vmatpush1.msra.mxu0 0.0
        %1355 = vmatprep.subr.mxu0 0.0
        %1356 = vmatpush1.msra.mxu0 0.0
        %1357 = vmatprep.subr.mxu0 0.0
        %1358 = vmatpush1.msra.mxu0 0.0
        %1359 = vmatprep.subr.mxu0 0.0
        %1360 = vmatpush1.msra.mxu0 0.0
        %1361 = vmatprep.subr.mxu0 0.0
        %1362 = vmatpush1.msra.mxu0 0.0
        %1363 = vmatprep.subr.mxu0 0.0
        %1364 = vmatpush1.msra.mxu0 0.0
        %1365 = vmatprep.subr.mxu0 0.0
        %1366 = vmatpush1.msra.mxu0 0.0
        %1367 = vmatprep.subr.mxu0 0.0
        %1368 = vmatpush1.msra.mxu0 0.0
        %1369 = vmatprep.subr.mxu0 0.0
        %1370 = vmatpush1.msra.mxu0 0.0
        %1371 = vmatprep.subr.mxu0 0.0
        %1372 = vmatpush1.msra.mxu0 0.0
        %1373 = vmatprep.subr.mxu0 0.0
        %1374 = vmatpush1.msra.mxu0 0.0
        %1375 = vmatprep.subr.mxu0 0.0
        %1376 = vmatpush1.msra.mxu0 0.0
        %1377 = vmatprep.subr.mxu0 0.0
        %1378 = vmatpush1.msra.mxu0 0.0
        %1379 = vmatprep.subr.mxu0 0.0
        %1380 = vmatpush1.msra.mxu0 0.0
        %1381 = vmatprep.subr.mxu0 0.0
        %1382 = vmatpush1.msra.mxu0 0.0
        %1383 = vmatprep.subr.mxu0 0.0
        %1384 = vmatpush1.msra.mxu0 0.0
        %1385 = vmatprep.subr.mxu0 0.0
        %1386 = vmatpush1.msra.mxu0 0.0
        %1387 = vmatprep.subr.mxu0 0.0
        %1388 = vmatpush1.msra.mxu0 0.0
        %1389 = vmatprep.mubr.f32.mxu0 0.0
        %1390 = vmatmul.mubr.f32.gmra.mrb[0].mxu0 %v1089
        %v1391 = vpop.f32.mrb[0].mxu0
        %v1392 = vadd.f32 0.0, %v1391
        %v1393 = vpop.f32.mrb[0].mxu0
        %v1394 = vadd.f32 0.0, %v1393
        %1395 = vmatprep.mubr.f32.mxu0 0.0
        %1396 = vmatmul.mubr.f32.gmra.mrb[0].mxu0 %v1092
        %v1397 = vpop.f32.mrb[0].mxu0
        %v1398 = vadd.f32 0.0, %v1397
        %v1399 = vpop.f32.mrb[0].mxu0
        %v1400 = vadd.f32 0.0, %v1399
        %1401 = vdwg.mxu0
        %1402 = vmatprep.subr.mxu0 0.0
        %1403 = vmatpush1.msra.mxu0 %v501
        %1404 = vmatprep.subr.mxu0 0.0
        %1405 = vmatpush1.msra.mxu0 %v502
        %1406 = vmatprep.subr.mxu0 0.0
        %1407 = vmatpush1.msra.mxu0 %v503
        %1408 = vmatprep.subr.mxu0 0.0
        %1409 = vmatpush1.msra.mxu0 %v504
        %1410 = vmatprep.subr.mxu0 0.0
        %1411 = vmatpush1.msra.mxu0 %v505
        %1412 = vmatprep.subr.mxu0 0.0
        %1413 = vmatpush1.msra.mxu0 %v506
        %1414 = vmatprep.subr.mxu0 0.0
        %1415 = vmatpush1.msra.mxu0 %v507
        %1416 = vmatprep.subr.mxu0 0.0
        %1417 = vmatpush1.msra.mxu0 %v508
        %1418 = vmatprep.subr.mxu0 0.0
        %1419 = vmatpush1.msra.mxu0 %v509
        %1420 = vmatprep.subr.mxu0 0.0
        %1421 = vmatpush1.msra.mxu0 %v510
        %1422 = vmatprep.subr.mxu0 0.0
        %1423 = vmatpush1.msra.mxu0 %v511
        %1424 = vmatprep.subr.mxu0 0.0
        %1425 = vmatpush1.msra.mxu0 %v512
        %1426 = vmatprep.subr.mxu0 0.0
        %1427 = vmatpush1.msra.mxu0 %v513
        %1428 = vmatprep.subr.mxu0 0.0
        %1429 = vmatpush1.msra.mxu0 %v514
        %1430 = vmatprep.subr.mxu0 0.0
        %1431 = vmatpush1.msra.mxu0 %v515
        %1432 = vmatprep.subr.mxu0 0.0
        %1433 = vmatpush1.msra.mxu0 %v516
        %1434 = vmatprep.subr.mxu0 0.0
        %1435 = vmatpush1.msra.mxu0 0.0
        %1436 = vmatprep.subr.mxu0 0.0
        %1437 = vmatpush1.msra.mxu0 0.0
        %1438 = vmatprep.subr.mxu0 0.0
        %1439 = vmatpush1.msra.mxu0 0.0
        %1440 = vmatprep.subr.mxu0 0.0
        %1441 = vmatpush1.msra.mxu0 0.0
        %1442 = vmatprep.subr.mxu0 0.0
        %1443 = vmatpush1.msra.mxu0 0.0
        %1444 = vmatprep.subr.mxu0 0.0
        %1445 = vmatpush1.msra.mxu0 0.0
        %1446 = vmatprep.subr.mxu0 0.0
        %1447 = vmatpush1.msra.mxu0 0.0
        %1448 = vmatprep.subr.mxu0 0.0
        %1449 = vmatpush1.msra.mxu0 0.0
        %1450 = vmatprep.subr.mxu0 0.0
        %1451 = vmatpush1.msra.mxu0 0.0
        %1452 = vmatprep.subr.mxu0 0.0
        %1453 = vmatpush1.msra.mxu0 0.0
        %1454 = vmatprep.subr.mxu0 0.0
        %1455 = vmatpush1.msra.mxu0 0.0
        %1456 = vmatprep.subr.mxu0 0.0
        %1457 = vmatpush1.msra.mxu0 0.0
        %1458 = vmatprep.subr.mxu0 0.0
        %1459 = vmatpush1.msra.mxu0 0.0
        %1460 = vmatprep.subr.mxu0 0.0
        %1461 = vmatpush1.msra.mxu0 0.0
        %1462 = vmatprep.subr.mxu0 0.0
        %1463 = vmatpush1.msra.mxu0 0.0
        %1464 = vmatprep.subr.mxu0 0.0
        %1465 = vmatpush1.msra.mxu0 0.0
        %1466 = vmatprep.mubr.f32.mxu0 0.0
        %1467 = vmatmul.mubr.f32.gmra.mrb[0].mxu0 %v1161
        %v1468 = vpop.f32.mrb[0].mxu0
        %v1469 = vadd.f32 0.0, %v1468
        %v1470 = vpop.f32.mrb[0].mxu0
        %1471 = vmatprep.mubr.f32.mxu0 0.0
        %1472 = vmatmul.mubr.f32.gmra.mrb[0].mxu0 %v1167
        %v1473 = vpop.f32.mrb[0].mxu0
        %v1474 = vadd.f32 0.0, %v1473
        %v1475 = vpop.f32.mrb[0].mxu0
        %1476 = vdwg.mxu0
        %1477 = vmatprep.subr.mxu0 0.0
        %1478 = vmatpush1.msra.mxu0 %v501
        %1479 = vmatprep.subr.mxu0 0.0
        %1480 = vmatpush1.msra.mxu0 %v502
        %1481 = vmatprep.subr.mxu0 0.0
        %1482 = vmatpush1.msra.mxu0 %v503
        %1483 = vmatprep.subr.mxu0 0.0
        %1484 = vmatpush1.msra.mxu0 %v504
        %1485 = vmatprep.subr.mxu0 0.0
        %1486 = vmatpush1.msra.mxu0 %v505
        %1487 = vmatprep.subr.mxu0 0.0
        %1488 = vmatpush1.msra.mxu0 %v506
        %1489 = vmatprep.subr.mxu0 0.0
        %1490 = vmatpush1.msra.mxu0 %v507
        %1491 = vmatprep.subr.mxu0 0.0
        %1492 = vmatpush1.msra.mxu0 %v508
        %1493 = vmatprep.subr.mxu0 0.0
        %1494 = vmatpush1.msra.mxu0 %v509
        %1495 = vmatprep.subr.mxu0 0.0
        %1496 = vmatpush1.msra.mxu0 %v510
        %1497 = vmatprep.subr.mxu0 0.0
        %1498 = vmatpush1.msra.mxu0 %v511
        %1499 = vmatprep.subr.mxu0 0.0
        %1500 = vmatpush1.msra.mxu0 %v512
        %1501 = vmatprep.subr.mxu0 0.0
        %1502 = vmatpush1.msra.mxu0 %v513
        %1503 = vmatprep.subr.mxu0 0.0
        %1504 = vmatpush1.msra.mxu0 %v514
        %1505 = vmatprep.subr.mxu0 0.0
        %1506 = vmatpush1.msra.mxu0 %v515
        %1507 = vmatprep.subr.mxu0 0.0
        %1508 = vmatpush1.msra.mxu0 %v516
        %1509 = vmatprep.subr.mxu0 0.0
        %1510 = vmatpush1.msra.mxu0 0.0
        %1511 = vmatprep.subr.mxu0 0.0
        %1512 = vmatpush1.msra.mxu0 0.0
        %1513 = vmatprep.subr.mxu0 0.0
        %1514 = vmatpush1.msra.mxu0 0.0
        %1515 = vmatprep.subr.mxu0 0.0
        %1516 = vmatpush1.msra.mxu0 0.0
        %1517 = vmatprep.subr.mxu0 0.0
        %1518 = vmatpush1.msra.mxu0 0.0
        %1519 = vmatprep.subr.mxu0 0.0
        %1520 = vmatpush1.msra.mxu0 0.0
        %1521 = vmatprep.subr.mxu0 0.0
        %1522 = vmatpush1.msra.mxu0 0.0
        %1523 = vmatprep.subr.mxu0 0.0
        %1524 = vmatpush1.msra.mxu0 0.0
        %1525 = vmatprep.subr.mxu0 0.0
        %1526 = vmatpush1.msra.mxu0 0.0
        %1527 = vmatprep.subr.mxu0 0.0
        %1528 = vmatpush1.msra.mxu0 0.0
        %1529 = vmatprep.subr.mxu0 0.0
        %1530 = vmatpush1.msra.mxu0 0.0
        %1531 = vmatprep.subr.mxu0 0.0
        %1532 = vmatpush1.msra.mxu0 0.0
        %1533 = vmatprep.subr.mxu0 0.0
        %1534 = vmatpush1.msra.mxu0 0.0
        %1535 = vmatprep.subr.mxu0 0.0
        %1536 = vmatpush1.msra.mxu0 0.0
        %1537 = vmatprep.subr.mxu0 0.0
        %1538 = vmatpush1.msra.mxu0 0.0
        %1539 = vmatprep.subr.mxu0 0.0
        %1540 = vmatpush1.msra.mxu0 0.0
        %1541 = vmatprep.mubr.f32.mxu0 0.0
        %1542 = vmatmul.mubr.f32.gmra.mrb[0].mxu0 %v1163
        %v1543 = vpop.f32.mrb[0].mxu0
        %v1544 = vadd.f32 0.0, %v1543
        %v1545 = vpop.f32.mrb[0].mxu0
        %1546 = vmatprep.mubr.f32.mxu0 0.0
        %1547 = vmatmul.mubr.f32.gmra.mrb[0].mxu0 %v1169
        %v1548 = vpop.f32.mrb[0].mxu0
        %v1549 = vadd.f32 0.0, %v1548
        %v1550 = vpop.f32.mrb[0].mxu0
        %1551 = vdwg.mxu0
        %1552 = vmatprep.subr.mxu0 0.0
        %1553 = vmatpush1.msra.mxu0 %v501
        %1554 = vmatprep.subr.mxu0 0.0
        %1555 = vmatpush1.msra.mxu0 %v502
        %1556 = vmatprep.subr.mxu0 0.0
        %1557 = vmatpush1.msra.mxu0 %v503
        %1558 = vmatprep.subr.mxu0 0.0
        %1559 = vmatpush1.msra.mxu0 %v504
        %1560 = vmatprep.subr.mxu0 0.0
        %1561 = vmatpush1.msra.mxu0 %v505
        %1562 = vmatprep.subr.mxu0 0.0
        %1563 = vmatpush1.msra.mxu0 %v506
        %1564 = vmatprep.subr.mxu0 0.0
        %1565 = vmatpush1.msra.mxu0 %v507
        %1566 = vmatprep.subr.mxu0 0.0
        %1567 = vmatpush1.msra.mxu0 %v508
        %1568 = vmatprep.subr.mxu0 0.0
        %1569 = vmatpush1.msra.mxu0 %v509
        %1570 = vmatprep.subr.mxu0 0.0
        %1571 = vmatpush1.msra.mxu0 %v510
        %1572 = vmatprep.subr.mxu0 0.0
        %1573 = vmatpush1.msra.mxu0 %v511
        %1574 = vmatprep.subr.mxu0 0.0
        %1575 = vmatpush1.msra.mxu0 %v512
        %1576 = vmatprep.subr.mxu0 0.0
        %1577 = vmatpush1.msra.mxu0 %v513
        %1578 = vmatprep.subr.mxu0 0.0
        %1579 = vmatpush1.msra.mxu0 %v514
        %1580 = vmatprep.subr.mxu0 0.0
        %1581 = vmatpush1.msra.mxu0 %v515
        %1582 = vmatprep.subr.mxu0 0.0
        %1583 = vmatpush1.msra.mxu0 %v516
        %1584 = vmatprep.subr.mxu0 0.0
        %1585 = vmatpush1.msra.mxu0 0.0
        %1586 = vmatprep.subr.mxu0 0.0
        %1587 = vmatpush1.msra.mxu0 0.0
        %1588 = vmatprep.subr.mxu0 0.0
        %1589 = vmatpush1.msra.mxu0 0.0
        %1590 = vmatprep.subr.mxu0 0.0
        %1591 = vmatpush1.msra.mxu0 0.0
        %1592 = vmatprep.subr.mxu0 0.0
        %1593 = vmatpush1.msra.mxu0 0.0
        %1594 = vmatprep.subr.mxu0 0.0
        %1595 = vmatpush1.msra.mxu0 0.0
        %1596 = vmatprep.subr.mxu0 0.0
        %1597 = vmatpush1.msra.mxu0 0.0
        %1598 = vmatprep.subr.mxu0 0.0
        %1599 = vmatpush1.msra.mxu0 0.0
        %1600 = vmatprep.subr.mxu0 0.0
        %1601 = vmatpush1.msra.mxu0 0.0
        %1602 = vmatprep.subr.mxu0 0.0
        %1603 = vmatpush1.msra.mxu0 0.0
        %1604 = vmatprep.subr.mxu0 0.0
        %1605 = vmatpush1.msra.mxu0 0.0
        %1606 = vmatprep.subr.mxu0 0.0
        %1607 = vmatpush1.msra.mxu0 0.0
        %1608 = vmatprep.subr.mxu0 0.0
        %1609 = vmatpush1.msra.mxu0 0.0
        %1610 = vmatprep.subr.mxu0 0.0
        %1611 = vmatpush1.msra.mxu0 0.0
        %1612 = vmatprep.subr.mxu0 0.0
        %1613 = vmatpush1.msra.mxu0 0.0
        %1614 = vmatprep.subr.mxu0 0.0
        %1615 = vmatpush1.msra.mxu0 0.0
        %1616 = vmatprep.mubr.f32.mxu0 0.0
        %1617 = vmatmul.mubr.f32.gmra.mrb[0].mxu0 %v1238
        %v1618 = vpop.f32.mrb[0].mxu0
        %v1619 = vadd.f32 0.0, %v1618
        %v1620 = vpop.f32.mrb[0].mxu0
        %1621 = vmatprep.mubr.f32.mxu0 0.0
        %1622 = vmatmul.mubr.f32.gmra.mrb[0].mxu0 %v1244
        %v1623 = vpop.f32.mrb[0].mxu0
        %v1624 = vadd.f32 0.0, %v1623
        %v1625 = vpop.f32.mrb[0].mxu0
        %1626 = vdwg.mxu0
        %1627 = vmatprep.subr.mxu0 0.0
        %1628 = vmatpush1.msra.mxu0 %v501
        %1629 = vmatprep.subr.mxu0 0.0
        %1630 = vmatpush1.msra.mxu0 %v502
        %1631 = vmatprep.subr.mxu0 0.0
        %1632 = vmatpush1.msra.mxu0 %v503
        %1633 = vmatprep.subr.mxu0 0.0
        %1634 = vmatpush1.msra.mxu0 %v504
        %1635 = vmatprep.subr.mxu0 0.0
        %1636 = vmatpush1.msra.mxu0 %v505
        %1637 = vmatprep.subr.mxu0 0.0
        %1638 = vmatpush1.msra.mxu0 %v506
        %1639 = vmatprep.subr.mxu0 0.0
        %1640 = vmatpush1.msra.mxu0 %v507
        %1641 = vmatprep.subr.mxu0 0.0
        %1642 = vmatpush1.msra.mxu0 %v508
        %1643 = vmatprep.subr.mxu0 0.0
        %1644 = vmatpush1.msra.mxu0 %v509
        %1645 = vmatprep.subr.mxu0 0.0
        %1646 = vmatpush1.msra.mxu0 %v510
        %1647 = vmatprep.subr.mxu0 0.0
        %1648 = vmatpush1.msra.mxu0 %v511
        %1649 = vmatprep.subr.mxu0 0.0
        %1650 = vmatpush1.msra.mxu0 %v512
        %1651 = vmatprep.subr.mxu0 0.0
        %1652 = vmatpush1.msra.mxu0 %v513
        %1653 = vmatprep.subr.mxu0 0.0
        %1654 = vmatpush1.msra.mxu0 %v514
        %1655 = vmatprep.subr.mxu0 0.0
        %1656 = vmatpush1.msra.mxu0 %v515
        %1657 = vmatprep.subr.mxu0 0.0
        %1658 = vmatpush1.msra.mxu0 %v516
        %1659 = vmatprep.subr.mxu0 0.0
        %1660 = vmatpush1.msra.mxu0 0.0
        %1661 = vmatprep.subr.mxu0 0.0
        %1662 = vmatpush1.msra.mxu0 0.0
        %1663 = vmatprep.subr.mxu0 0.0
        %1664 = vmatpush1.msra.mxu0 0.0
        %1665 = vmatprep.subr.mxu0 0.0
        %1666 = vmatpush1.msra.mxu0 0.0
        %1667 = vmatprep.subr.mxu0 0.0
        %1668 = vmatpush1.msra.mxu0 0.0
        %1669 = vmatprep.subr.mxu0 0.0
        %1670 = vmatpush1.msra.mxu0 0.0
        %1671 = vmatprep.subr.mxu0 0.0
        %1672 = vmatpush1.msra.mxu0 0.0
        %1673 = vmatprep.subr.mxu0 0.0
        %1674 = vmatpush1.msra.mxu0 0.0
        %1675 = vmatprep.subr.mxu0 0.0
        %1676 = vmatpush1.msra.mxu0 0.0
        %1677 = vmatprep.subr.mxu0 0.0
        %1678 = vmatpush1.msra.mxu0 0.0
        %1679 = vmatprep.subr.mxu0 0.0
        %1680 = vmatpush1.msra.mxu0 0.0
        %1681 = vmatprep.subr.mxu0 0.0
        %1682 = vmatpush1.msra.mxu0 0.0
        %1683 = vmatprep.subr.mxu0 0.0
        %1684 = vmatpush1.msra.mxu0 0.0
        %1685 = vmatprep.subr.mxu0 0.0
        %1686 = vmatpush1.msra.mxu0 0.0
        %1687 = vmatprep.subr.mxu0 0.0
        %1688 = vmatpush1.msra.mxu0 0.0
        %1689 = vmatprep.subr.mxu0 0.0
        %1690 = vmatpush1.msra.mxu0 0.0
        %1691 = vmatprep.mubr.f32.mxu0 0.0
        %1692 = vmatmul.mubr.f32.gmra.mrb[0].mxu0 %v1240
        %v1693 = vpop.f32.mrb[0].mxu0
        %v1694 = vadd.f32 0.0, %v1693
        %v1695 = vpop.f32.mrb[0].mxu0
        %1696 = vmatprep.mubr.f32.mxu0 0.0
        %1697 = vmatmul.mubr.f32.gmra.mrb[0].mxu0 %v1246
        %v1698 = vpop.f32.mrb[0].mxu0
        %v1699 = vadd.f32 0.0, %v1698
        %v1700 = vpop.f32.mrb[0].mxu0
        %1701 = vdwg.mxu0
        %1702 = vmatprep.subr.mxu0 0.0
        %1703 = vmatpush1.msra.mxu0 %v501
        %1704 = vmatprep.subr.mxu0 0.0
        %1705 = vmatpush1.msra.mxu0 %v502
        %1706 = vmatprep.subr.mxu0 0.0
        %1707 = vmatpush1.msra.mxu0 %v503
        %1708 = vmatprep.subr.mxu0 0.0
        %1709 = vmatpush1.msra.mxu0 %v504
        %1710 = vmatprep.subr.mxu0 0.0
        %1711 = vmatpush1.msra.mxu0 %v505
        %1712 = vmatprep.subr.mxu0 0.0
        %1713 = vmatpush1.msra.mxu0 %v506
        %1714 = vmatprep.subr.mxu0 0.0
        %1715 = vmatpush1.msra.mxu0 %v507
        %1716 = vmatprep.subr.mxu0 0.0
        %1717 = vmatpush1.msra.mxu0 %v508
        %1718 = vmatprep.subr.mxu0 0.0
        %1719 = vmatpush1.msra.mxu0 %v509
        %1720 = vmatprep.subr.mxu0 0.0
        %1721 = vmatpush1.msra.mxu0 %v510
        %1722 = vmatprep.subr.mxu0 0.0
        %1723 = vmatpush1.msra.mxu0 %v511
        %1724 = vmatprep.subr.mxu0 0.0
        %1725 = vmatpush1.msra.mxu0 %v512
        %1726 = vmatprep.subr.mxu0 0.0
        %1727 = vmatpush1.msra.mxu0 %v513
        %1728 = vmatprep.subr.mxu0 0.0
        %1729 = vmatpush1.msra.mxu0 %v514
        %1730 = vmatprep.subr.mxu0 0.0
        %1731 = vmatpush1.msra.mxu0 %v515
        %1732 = vmatprep.subr.mxu0 0.0
        %1733 = vmatpush1.msra.mxu0 %v516
        %1734 = vmatprep.subr.mxu0 0.0
        %1735 = vmatpush1.msra.mxu0 0.0
        %1736 = vmatprep.subr.mxu0 0.0
        %1737 = vmatpush1.msra.mxu0 0.0
        %1738 = vmatprep.subr.mxu0 0.0
        %1739 = vmatpush1.msra.mxu0 0.0
        %1740 = vmatprep.subr.mxu0 0.0
        %1741 = vmatpush1.msra.mxu0 0.0
        %1742 = vmatprep.subr.mxu0 0.0
        %1743 = vmatpush1.msra.mxu0 0.0
        %1744 = vmatprep.subr.mxu0 0.0
        %1745 = vmatpush1.msra.mxu0 0.0
        %1746 = vmatprep.subr.mxu0 0.0
        %1747 = vmatpush1.msra.mxu0 0.0
        %1748 = vmatprep.subr.mxu0 0.0
        %1749 = vmatpush1.msra.mxu0 0.0
        %1750 = vmatprep.subr.mxu0 0.0
        %1751 = vmatpush1.msra.mxu0 0.0
        %1752 = vmatprep.subr.mxu0 0.0
        %1753 = vmatpush1.msra.mxu0 0.0
        %1754 = vmatprep.subr.mxu0 0.0
        %1755 = vmatpush1.msra.mxu0 0.0
        %1756 = vmatprep.subr.mxu0 0.0
        %1757 = vmatpush1.msra.mxu0 0.0
        %1758 = vmatprep.subr.mxu0 0.0
        %1759 = vmatpush1.msra.mxu0 0.0
        %1760 = vmatprep.subr.mxu0 0.0
        %1761 = vmatpush1.msra.mxu0 0.0
        %1762 = vmatprep.subr.mxu0 0.0
        %1763 = vmatpush1.msra.mxu0 0.0
        %1764 = vmatprep.subr.mxu0 0.0
        %1765 = vmatpush1.msra.mxu0 0.0
        %1766 = vmatprep.mubr.f32.mxu0 0.0
        %1767 = vmatmul.mubr.f32.gmra.mrb[0].mxu0 %v1315
        %v1768 = vpop.f32.mrb[0].mxu0
        %v1769 = vadd.f32 0.0, %v1768
        %v1770 = vpop.f32.mrb[0].mxu0
        %1771 = vmatprep.mubr.f32.mxu0 0.0
        %1772 = vmatmul.mubr.f32.gmra.mrb[0].mxu0 %v1321
        %v1773 = vpop.f32.mrb[0].mxu0
        %v1774 = vadd.f32 0.0, %v1773
        %v1775 = vpop.f32.mrb[0].mxu0
        %1776 = vdwg.mxu0
        %1777 = vmatprep.subr.mxu0 0.0
        %1778 = vmatpush1.msra.mxu0 %v501
        %1779 = vmatprep.subr.mxu0 0.0
        %1780 = vmatpush1.msra.mxu0 %v502
        %1781 = vmatprep.subr.mxu0 0.0
        %1782 = vmatpush1.msra.mxu0 %v503
        %1783 = vmatprep.subr.mxu0 0.0
        %1784 = vmatpush1.msra.mxu0 %v504
        %1785 = vmatprep.subr.mxu0 0.0
        %1786 = vmatpush1.msra.mxu0 %v505
        %1787 = vmatprep.subr.mxu0 0.0
        %1788 = vmatpush1.msra.mxu0 %v506
        %1789 = vmatprep.subr.mxu0 0.0
        %1790 = vmatpush1.msra.mxu0 %v507
        %1791 = vmatprep.subr.mxu0 0.0
        %1792 = vmatpush1.msra.mxu0 %v508
        %1793 = vmatprep.subr.mxu0 0.0
        %1794 = vmatpush1.msra.mxu0 %v509
        %1795 = vmatprep.subr.mxu0 0.0
        %1796 = vmatpush1.msra.mxu0 %v510
        %1797 = vmatprep.subr.mxu0 0.0
        %1798 = vmatpush1.msra.mxu0 %v511
        %1799 = vmatprep.subr.mxu0 0.0
        %1800 = vmatpush1.msra.mxu0 %v512
        %1801 = vmatprep.subr.mxu0 0.0
        %1802 = vmatpush1.msra.mxu0 %v513
        %1803 = vmatprep.subr.mxu0 0.0
        %1804 = vmatpush1.msra.mxu0 %v514
        %1805 = vmatprep.subr.mxu0 0.0
        %1806 = vmatpush1.msra.mxu0 %v515
        %1807 = vmatprep.subr.mxu0 0.0
        %1808 = vmatpush1.msra.mxu0 %v516
        %1809 = vmatprep.subr.mxu0 0.0
        %1810 = vmatpush1.msra.mxu0 0.0
        %1811 = vmatprep.subr.mxu0 0.0
        %1812 = vmatpush1.msra.mxu0 0.0
        %1813 = vmatprep.subr.mxu0 0.0
        %1814 = vmatpush1.msra.mxu0 0.0
        %1815 = vmatprep.subr.mxu0 0.0
        %1816 = vmatpush1.msra.mxu0 0.0
        %1817 = vmatprep.subr.mxu0 0.0
        %1818 = vmatpush1.msra.mxu0 0.0
        %1819 = vmatprep.subr.mxu0 0.0
        %1820 = vmatpush1.msra.mxu0 0.0
        %1821 = vmatprep.subr.mxu0 0.0
        %1822 = vmatpush1.msra.mxu0 0.0
        %1823 = vmatprep.subr.mxu0 0.0
        %1824 = vmatpush1.msra.mxu0 0.0
        %1825 = vmatprep.subr.mxu0 0.0
        %1826 = vmatpush1.msra.mxu0 0.0
        %1827 = vmatprep.subr.mxu0 0.0
        %1828 = vmatpush1.msra.mxu0 0.0
        %1829 = vmatprep.subr.mxu0 0.0
        %1830 = vmatpush1.msra.mxu0 0.0
        %1831 = vmatprep.subr.mxu0 0.0
        %1832 = vmatpush1.msra.mxu0 0.0
        %1833 = vmatprep.subr.mxu0 0.0
        %1834 = vmatpush1.msra.mxu0 0.0
        %1835 = vmatprep.subr.mxu0 0.0
        %1836 = vmatpush1.msra.mxu0 0.0
        %1837 = vmatprep.subr.mxu0 0.0
        %1838 = vmatpush1.msra.mxu0 0.0
        %1839 = vmatprep.subr.mxu0 0.0
        %1840 = vmatpush1.msra.mxu0 0.0
        %1841 = vmatprep.mubr.f32.mxu0 0.0
        %1842 = vmatmul.mubr.f32.gmra.mrb[0].mxu0 %v1317
        %v1843 = vpop.f32.mrb[0].mxu0
        %v1844 = vadd.f32 0.0, %v1843
        %v1845 = vpop.f32.mrb[0].mxu0
        %1846 = vmatprep.mubr.f32.mxu0 0.0
        %1847 = vmatmul.mubr.f32.gmra.mrb[0].mxu0 %v1323
        %v1848 = vpop.f32.mrb[0].mxu0
        %v1849 = vadd.f32 0.0, %v1848
        %v1850 = vpop.f32.mrb[0].mxu0
        %1851 = vdwg.mxu0
        %1852 = vmatprep.subr.mxu0 0.0
        %1853 = vmatpush1.msra.mxu0 %v501
        %1854 = vmatprep.subr.mxu0 0.0
        %1855 = vmatpush1.msra.mxu0 %v502
        %1856 = vmatprep.subr.mxu0 0.0
        %1857 = vmatpush1.msra.mxu0 %v503
        %1858 = vmatprep.subr.mxu0 0.0
        %1859 = vmatpush1.msra.mxu0 %v504
        %1860 = vmatprep.subr.mxu0 0.0
        %1861 = vmatpush1.msra.mxu0 %v505
        %1862 = vmatprep.subr.mxu0 0.0
        %1863 = vmatpush1.msra.mxu0 %v506
        %1864 = vmatprep.subr.mxu0 0.0
        %1865 = vmatpush1.msra.mxu0 %v507
        %1866 = vmatprep.subr.mxu0 0.0
        %1867 = vmatpush1.msra.mxu0 %v508
        %1868 = vmatprep.subr.mxu0 0.0
        %1869 = vmatpush1.msra.mxu0 %v509
        %1870 = vmatprep.subr.mxu0 0.0
        %1871 = vmatpush1.msra.mxu0 %v510
        %1872 = vmatprep.subr.mxu0 0.0
        %1873 = vmatpush1.msra.mxu0 %v511
        %1874 = vmatprep.subr.mxu0 0.0
        %1875 = vmatpush1.msra.mxu0 %v512
        %1876 = vmatprep.subr.mxu0 0.0
        %1877 = vmatpush1.msra.mxu0 %v513
        %1878 = vmatprep.subr.mxu0 0.0
        %1879 = vmatpush1.msra.mxu0 %v514
        %1880 = vmatprep.subr.mxu0 0.0
        %1881 = vmatpush1.msra.mxu0 %v515
        %1882 = vmatprep.subr.mxu0 0.0
        %1883 = vmatpush1.msra.mxu0 %v516
        %1884 = vmatprep.subr.mxu0 0.0
        %1885 = vmatpush1.msra.mxu0 0.0
        %1886 = vmatprep.subr.mxu0 0.0
        %1887 = vmatpush1.msra.mxu0 0.0
        %1888 = vmatprep.subr.mxu0 0.0
        %1889 = vmatpush1.msra.mxu0 0.0
        %1890 = vmatprep.subr.mxu0 0.0
        %1891 = vmatpush1.msra.mxu0 0.0
        %1892 = vmatprep.subr.mxu0 0.0
        %1893 = vmatpush1.msra.mxu0 0.0
        %1894 = vmatprep.subr.mxu0 0.0
        %1895 = vmatpush1.msra.mxu0 0.0
        %1896 = vmatprep.subr.mxu0 0.0
        %1897 = vmatpush1.msra.mxu0 0.0
        %1898 = vmatprep.subr.mxu0 0.0
        %1899 = vmatpush1.msra.mxu0 0.0
        %1900 = vmatprep.subr.mxu0 0.0
        %1901 = vmatpush1.msra.mxu0 0.0
        %1902 = vmatprep.subr.mxu0 0.0
        %1903 = vmatpush1.msra.mxu0 0.0
        %1904 = vmatprep.subr.mxu0 0.0
        %1905 = vmatpush1.msra.mxu0 0.0
        %1906 = vmatprep.subr.mxu0 0.0
        %1907 = vmatpush1.msra.mxu0 0.0
        %1908 = vmatprep.subr.mxu0 0.0
        %1909 = vmatpush1.msra.mxu0 0.0
        %1910 = vmatprep.subr.mxu0 0.0
        %1911 = vmatpush1.msra.mxu0 0.0
        %1912 = vmatprep.subr.mxu0 0.0
        %1913 = vmatpush1.msra.mxu0 0.0
        %1914 = vmatprep.subr.mxu0 0.0
        %1915 = vmatpush1.msra.mxu0 0.0
        %1916 = vmatprep.mubr.f32.mxu0 0.0
        %1917 = vmatmul.mubr.f32.gmra.mrb[0].mxu0 %v1392
        %v1918 = vpop.f32.mrb[0].mxu0
        %v1919 = vadd.f32 0.0, %v1918
        %v1920 = vpop.f32.mrb[0].mxu0
        %1921 = vmatprep.mubr.f32.mxu0 0.0
        %1922 = vmatmul.mubr.f32.gmra.mrb[0].mxu0 %v1398
        %v1923 = vpop.f32.mrb[0].mxu0
        %v1924 = vadd.f32 0.0, %v1923
        %v1925 = vpop.f32.mrb[0].mxu0
        %1926 = vdwg.mxu0
        %1927 = vmatprep.subr.mxu0 0.0
        %1928 = vmatpush1.msra.mxu0 %v501
        %1929 = vmatprep.subr.mxu0 0.0
        %1930 = vmatpush1.msra.mxu0 %v502
        %1931 = vmatprep.subr.mxu0 0.0
        %1932 = vmatpush1.msra.mxu0 %v503
        %1933 = vmatprep.subr.mxu0 0.0
        %1934 = vmatpush1.msra.mxu0 %v504
        %1935 = vmatprep.subr.mxu0 0.0
        %1936 = vmatpush1.msra.mxu0 %v505
        %1937 = vmatprep.subr.mxu0 0.0
        %1938 = vmatpush1.msra.mxu0 %v506
        %1939 = vmatprep.subr.mxu0 0.0
        %1940 = vmatpush1.msra.mxu0 %v507
        %1941 = vmatprep.subr.mxu0 0.0
        %1942 = vmatpush1.msra.mxu0 %v508
        %1943 = vmatprep.subr.mxu0 0.0
        %1944 = vmatpush1.msra.mxu0 %v509
        %1945 = vmatprep.subr.mxu0 0.0
        %1946 = vmatpush1.msra.mxu0 %v510
        %1947 = vmatprep.subr.mxu0 0.0
        %1948 = vmatpush1.msra.mxu0 %v511
        %1949 = vmatprep.subr.mxu0 0.0
        %1950 = vmatpush1.msra.mxu0 %v512
        %1951 = vmatprep.subr.mxu0 0.0
        %1952 = vmatpush1.msra.mxu0 %v513
        %1953 = vmatprep.subr.mxu0 0.0
        %1954 = vmatpush1.msra.mxu0 %v514
        %1955 = vmatprep.subr.mxu0 0.0
        %1956 = vmatpush1.msra.mxu0 %v515
        %1957 = vmatprep.subr.mxu0 0.0
        %1958 = vmatpush1.msra.mxu0 %v516
        %1959 = vmatprep.subr.mxu0 0.0
        %1960 = vmatpush1.msra.mxu0 0.0
        %1961 = vmatprep.subr.mxu0 0.0
        %1962 = vmatpush1.msra.mxu0 0.0
        %1963 = vmatprep.subr.mxu0 0.0
        %1964 = vmatpush1.msra.mxu0 0.0
        %1965 = vmatprep.subr.mxu0 0.0
        %1966 = vmatpush1.msra.mxu0 0.0
        %1967 = vmatprep.subr.mxu0 0.0
        %1968 = vmatpush1.msra.mxu0 0.0
        %1969 = vmatprep.subr.mxu0 0.0
        %1970 = vmatpush1.msra.mxu0 0.0
        %1971 = vmatprep.subr.mxu0 0.0
        %1972 = vmatpush1.msra.mxu0 0.0
        %1973 = vmatprep.subr.mxu0 0.0
        %1974 = vmatpush1.msra.mxu0 0.0
        %1975 = vmatprep.subr.mxu0 0.0
        %1976 = vmatpush1.msra.mxu0 0.0
        %1977 = vmatprep.subr.mxu0 0.0
        %1978 = vmatpush1.msra.mxu0 0.0
        %1979 = vmatprep.subr.mxu0 0.0
        %1980 = vmatpush1.msra.mxu0 0.0
        %1981 = vmatprep.subr.mxu0 0.0
        %1982 = vmatpush1.msra.mxu0 0.0
        %1983 = vmatprep.subr.mxu0 0.0
        %1984 = vmatpush1.msra.mxu0 0.0
        %1985 = vmatprep.subr.mxu0 0.0
        %1986 = vmatpush1.msra.mxu0 0.0
        %1987 = vmatprep.subr.mxu0 0.0
        %1988 = vmatpush1.msra.mxu0 0.0
        %1989 = vmatprep.subr.mxu0 0.0
        %1990 = vmatpush1.msra.mxu0 0.0
        %1991 = vmatprep.mubr.f32.mxu0 0.0
        %1992 = vmatmul.mubr.f32.gmra.mrb[0].mxu0 %v1394
        %v1993 = vpop.f32.mrb[0].mxu0
        %v1994 = vadd.f32 0.0, %v1993
        %v1995 = vpop.f32.mrb[0].mxu0
        %1996 = vmatprep.mubr.f32.mxu0 0.0
        %1997 = vmatmul.mubr.f32.gmra.mrb[0].mxu0 %v1400
        %v1998 = vpop.f32.mrb[0].mxu0
        %v1999 = vadd.f32 0.0, %v1998
        %v2000 = vpop.f32.mrb[0].mxu0
        %2001 = vdwg.mxu0
        %v2002 = vmul.f32 %v1469, %v1469
        %v2003 = vmul.f32 %v1474, %v1474
        %v2004 = vsub.f32 %v1544, %v2002
        %v2005 = vsub.f32 %v1549, %v2003
        %v2006 = vlaneseq
        %v2007 = vand.u32 %v2006, 127
        %vm2008 = vcmp.lt.s32.totalorder %v2007, 16
        %v2009 = vmul.f32 %v1619, %v1619
        %v2010 = vmul.f32 %v1624, %v1624
        %v2011 = vmul.f32 %v1619, %v1469
        %v2012 = vmul.f32 %v1624, %v1474
        %v2013 = vsub.f32 %v1694, %v2009
        %v2014 = vsub.f32 %v1699, %v2010
        %v2015 = vsub.f32 %v1769, %v2011
        %v2016 = vsub.f32 %v1774, %v2012
        %v2017 = vmul.f32 %v2011, 2.0
        %v2018 = vmul.f32 %v2012, 2.0
        %v2019 = vadd.f32 %v2017, 0.0001
        %v2020 = vadd.f32 %v2018, 0.0001
        %v2021 = vmul.f32 %v2015, 2.0
        %v2022 = vmul.f32 %v2016, 2.0
        %v2023 = vadd.f32 %v2021, 0.0009
        %v2024 = vadd.f32 %v2022, 0.0009
        %v2025 = vmul.f32 %v2019, %v2023
        %v2026 = vmul.f32 %v2020, %v2024
        %v2027 = vadd.f32 %v2009, %v2002
        %v2028 = vadd.f32 %v2010, %v2003
        %v2029 = vadd.f32 %v2027, 0.0001
        %v2030 = vadd.f32 %v2028, 0.0001
        %v2031 = vadd.f32 %v2013, %v2004
        %v2032 = vadd.f32 %v2014, %v2005
        %v2033 = vadd.f32 %v2031, 0.0009
        %v2034 = vadd.f32 %v2032, 0.0009
        %v2035 = vmul.f32 %v2029, %v2033
        %v2036 = vmul.f32 %v2030, %v2034
        %v2037 = vrcp.pop %v2035
        %v2038 = vrcp.pop %v2036
        %v2039 = vmul.f32 %v2035, %v2037
        %v2040 = vmul.f32 %v2036, %v2038
        %v2041 = vsub.f32 2.0, %v2039
        %v2042 = vsub.f32 2.0, %v2040
        %v2043 = vmul.f32 %v2037, %v2041
        %v2044 = vmul.f32 %v2038, %v2042
        %v2045 = vmul.f32 %v2025, %v2043
        %v2046 = vmul.f32 %v2026, %v2044
        %v2047 = vsel %vm2008, %v2045, 0.0
        %v2048 = vsel %vm2008, %v2046, 0.0
        %v2049 = vadd.f32 %v2047, %v2048
        %2050 = vadd.xlane.f32.xlu0 %v2049
        %v2051 = vpop.xlane.xlu0 %2050
        %v2052 = vrot.slane %v2051, 4
        %v2053 = vadd.f32 %v2051, %v2052
        %v2054 = vrot.slane %v2053, 2
        %v2055 = vadd.f32 %v2053, %v2054
        %v2056 = vrot.slane %v2055, 1
        %v2057 = vadd.f32 %v2055, %v2056
        %s2058 = vtos %v2057
        %v2059 = vmul.f32 %v1844, %v1844
        %v2060 = vmul.f32 %v1849, %v1849
        %v2061 = vmul.f32 %v1844, %v1469
        %v2062 = vmul.f32 %v1849, %v1474
        %v2063 = vsub.f32 %v1919, %v2059
        %v2064 = vsub.f32 %v1924, %v2060
        %v2065 = vsub.f32 %v1994, %v2061
        %v2066 = vsub.f32 %v1999, %v2062
        %v2067 = vmul.f32 %v2061, 2.0
        %v2068 = vmul.f32 %v2062, 2.0
        %v2069 = vadd.f32 %v2067, 0.0001
        %v2070 = vadd.f32 %v2068, 0.0001
        %v2071 = vmul.f32 %v2065, 2.0
        %v2072 = vmul.f32 %v2066, 2.0
        %v2073 = vadd.f32 %v2071, 0.0009
        %v2074 = vadd.f32 %v2072, 0.0009
        %v2075 = vmul.f32 %v2069, %v2073
        %v2076 = vmul.f32 %v2070, %v2074
        %v2077 = vadd.f32 %v2059, %v2002
        %v2078 = vadd.f32 %v2060, %v2003
        %v2079 = vadd.f32 %v2077, 0.0001
        %v2080 = vadd.f32 %v2078, 0.0001
        %v2081 = vadd.f32 %v2063, %v2004
        %v2082 = vadd.f32 %v2064, %v2005
        %v2083 = vadd.f32 %v2081, 0.0009
        %v2084 = vadd.f32 %v2082, 0.0009
        %v2085 = vmul.f32 %v2079, %v2083
        %v2086 = vmul.f32 %v2080, %v2084
        %v2087 = vrcp.pop %v2085
        %v2088 = vrcp.pop %v2086
        %v2089 = vmul.f32 %v2085, %v2087
        %v2090 = vmul.f32 %v2086, %v2088
        %v2091 = vsub.f32 2.0, %v2089
        %v2092 = vsub.f32 2.0, %v2090
        %v2093 = vmul.f32 %v2087, %v2091
        %v2094 = vmul.f32 %v2088, %v2092
        %v2095 = vmul.f32 %v2075, %v2093
        %v2096 = vmul.f32 %v2076, %v2094
        %v2097 = vsel %vm2008, %v2095, 0.0
        %v2098 = vsel %vm2008, %v2096, 0.0
        %v2099 = vadd.f32 %v2097, %v2098
        %2100 = vadd.xlane.f32.xlu0 %v2099
        %v2101 = vpop.xlane.xlu0 %2100
        %v2102 = vrot.slane %v2101, 4
        %v2103 = vadd.f32 %v2101, %v2102
        %v2104 = vrot.slane %v2103, 2
        %v2105 = vadd.f32 %v2103, %v2104
        %v2106 = vrot.slane %v2105, 1
        %v2107 = vadd.f32 %v2105, %v2106
        %s2108 = vtos %v2107
        %vm2109 = vcmp.eq.s32.totalorder %v2007, 0
        %vm2110 = vcmp.eq.s32.totalorder %v2007, 1
        %vm2111 = vcmp.eq.s32.totalorder %v2007, 2
        %vm2112 = vcmp.eq.s32.totalorder %v2007, 3
        %v2113 = vstv %s2108
        %v2114 = vsel %vm2112, %v2113, 0.0
        %v2115 = vstv %s2058
        %v2116 = vsel %vm2111, %v2115, %v2114
        %v2117 = vstv %s1077
        %v2118 = vsel %vm2110, %v2117, %v2116
        %v2119 = vstv %s1076
        %v2120 = vsel %vm2109, %v2119, %v2118
        %2121 = vst [vmem:[%s500] sm:$0xff] %v2120
        %s2122 = sand.u32 %s244, 1
        %s2123 = scalar_lea.sflag [#allocation4], %s2122
        %s2124 = sand.u32 %s244, 1
        %s2125 = smul.addr %s2124, 8
        %s2126 = scalar_lea.vmem [#allocation16], %s2125
        // Predicated region
        $region89: #{tpu_custom_call.1} parent=55 // pred_check
          %p2127 = pneg %p254
        $region90: #{tpu_custom_call.1} parent=55 // pred_check_branch
          %2129 = sbr.rel (%p2127) target = $region92
        $region91: #{tpu_custom_call.1} parent=55 // pred_region
          %s2131 = ssub.s32 128, 128
          %2132 = vsyncadd %s2123, %s2131
          %s2133 = smul.addr %s32, 128
          %s2134 = scalar_lea.hbm %s9, %s2133
          %s2136 = sshll.u32 %s2126, 4
          %s2137 = int_to_ptr.vmem [resolvable:$true] %s2136
          %2139 = dma.vmem_to_hbm [thread:$0]  %s2137, 128, %s2134, %s2123
        $region92: #{tpu_custom_call.1} parent=55 // pred_fallthru
          _
      $region56: #{tpu_custom_call.1} parent=5 // pred_fallthru
        _
      %p2140 = scmp.le.s32.totalorder 2, %s27
      // Predicated region
      $region93: #{tpu_custom_call.1} parent=5 // pred_check
        %p2141 = pneg %p2140
      $region94: #{tpu_custom_call.1} parent=5 // pred_check_branch
        %2143 = sbr.rel (%p2141) target = $region96
      $region95: #{tpu_custom_call.1} parent=5 // pred_region
        %s2144 = ssub.s32 %s27, 2
        // Predicated region
        $region97: #{tpu_custom_call.1} parent=95 // pred_check
          %p2145 = pneg %p260
        $region98: #{tpu_custom_call.1} parent=95 // pred_check_branch
          %2147 = sbr.rel (%p2145) target = $region100
        $region99: #{tpu_custom_call.1} parent=95 // pred_region
          %s2148 = sand.u32 %s245, 1
          %s2149 = scalar_lea.sflag [#allocation4], %s2148
          %s2150 = sand.u32 %s245, 1
          %s2151 = smul.addr %s2150, 8
          %s2152 = scalar_lea.vmem [#allocation16], %s2151
          %2153 = dma.done %s2149, 128
        $region100: #{tpu_custom_call.1} parent=95 // pred_fallthru
          _
      $region96: #{tpu_custom_call.1} parent=5 // pred_fallthru
        _
    $region6: #{tpu_custom_call.1} parent=1 // loop_footer
      %s31 = sadd.s32 1, %s27
    $region7: #{tpu_custom_call.1} parent=1 // loop_footer_branch
      %26 = sbr.rel target = $region3
    $region8: #{tpu_custom_call.1} parent=1 // loop_exit
      _
    %2154 = vsyncpa [#allocation3], 1
    %s2155 = scalar_lea.sflag [#allocation3], 1
    %2156 = vsyncpa %s2155, 1
    %2157 = vsyncpa [#allocation6], 1
    %s2158 = scalar_lea.sflag [#allocation6], 1
    %2159 = vsyncpa %s2158, 1
    %2160 = vsyncpa [#allocation9], 1
    %2161 = vsyncpa [#allocation12], 1
    %2162 = vsyncpa [#allocation15], 1
    %2163 = vsyncpa [#allocation4], 1
    %s2164 = scalar_lea.sflag [#allocation4], 1
    %2165 = vsyncpa %s2164, 1

// kernel: tpu_custom_call.1
$region0: #{tpu_custom_call.1}
  #allocation0 [shape = 'u32[]', space=smem, size = 0x4, offset = 0x4, fixed_abs, tag = 'smem constant byte address 0x4 - core index']
  #allocation1 [shape = 'u32[144,128]{1,0:T(1,128)}', space=vmem, size = 0x12000, scoped, tag = 'internal scratch']
  %s0 = inlined_call_operand.hbm [shape: f32[2,16,128], index: 0, kind: input, shape index: {}]
  %s1 = inlined_call_operand.hbm [shape: f32[2,16,128], index: 1, kind: input, shape index: {}]
  %s2 = inlined_call_operand.hbm [shape: f32[2,16,128], index: 2, kind: input, shape index: {}]
  %s3 = inlined_call_operand.hbm [shape: f32[1,128,128], index: 3, kind: input, shape index: {}]
  %s4 = inlined_call_operand.hbm [shape: f32[1,16,16], index: 4, kind: input, shape index: {}]
  %s5 = inlined_call_operand.hbm [shape: f32[1,128,128], index: 5, kind: input, shape index: {}]
  %s6 = inlined_call_operand.vmem [shape: f32[1,16,16], index: 6, kind: input, shape index: {}]
  %s7 = inlined_call_operand.hbm [shape: f32[1,128,128], index: 7, kind: input, shape index: {}]
  %s8 = inlined_call_operand.hbm [shape: f32[1,16,16], index: 8, kind: input, shape index: {}]
  %s9 = inlined_call_operand.hbm [shape: f32[2,8,128], index: 9, kind: output, shape index: {}]
  %s10 = sld [smem:[#allocation0]]
  $region101: #{tpu_custom_call.1} parent=0
    _
  %s12 = ssub.s32 1, %s10
  %s13 = scalar_select 0, %s12, %s10
  $region1: #{tpu_custom_call.1} parent=0
    #allocation2 [shape = 'u8[16384]{0}', space=vmem, size = 0x4000, scoped, tag = 'input window, operand 0']
    #allocation3 [shape = 's32[2]{0}', space=sflag, size = 0x8, scoped, tag = 'scoped memory for tpu_custom_call.1']
    #allocation4 [shape = 's32[2]{0}', space=sflag, size = 0x8, scoped, tag = 'scoped memory for tpu_custom_call.1']
    #allocation5 [shape = 'u8[16384]{0}', space=vmem, size = 0x4000, scoped, tag = 'input window, operand 1']
    #allocation6 [shape = 's32[2]{0}', space=sflag, size = 0x8, scoped, tag = 'scoped memory for tpu_custom_call.1']
    #allocation7 [shape = 'u8[16384]{0}', space=vmem, size = 0x4000, scoped, tag = 'input window, operand 2']
    #allocation8 [shape = 'u8[65536]{0}', space=vmem, size = 0x10000, scoped, tag = 'input window, operand 3, single buffered']
    #allocation9 [shape = 's32[1]{0}', space=sflag, size = 0x4, scoped, tag = 'scoped memory for tpu_custom_call.1']
    #allocation10 [shape = 'u8[8192]{0}', space=vmem, size = 0x2000, scoped, tag = 'input window, operand 4, single buffered']
    #allocation11 [shape = 'u8[65536]{0}', space=vmem, size = 0x10000, scoped, tag = 'input window, operand 5, single buffered']
    #allocation12 [shape = 's32[1]{0}', space=sflag, size = 0x4, scoped, tag = 'scoped memory for tpu_custom_call.1']
    #allocation13 [shape = 'u8[65536]{0}', space=vmem, size = 0x10000, scoped, tag = 'input window, operand 7, single buffered']
    #allocation14 [shape = 'u8[8192]{0}', space=vmem, size = 0x2000, scoped, tag = 'input window, operand 8, single buffered']
    #allocation15 [shape = 's32[1]{0}', space=sflag, size = 0x4, scoped, tag = 'scoped memory for tpu_custom_call.1']
    #allocation16 [shape = 'u8[8192]{0}', space=vmem, size = 0x2000, scoped, tag = 'output window, operand 0']
    %14 = vsyncpa [#allocation3], 0
    %s15 = scalar_lea.sflag [#allocation3], 1
    %16 = vsyncpa %s15, 0
    %17 = vsyncpa [#allocation6], 0
    %s18 = scalar_lea.sflag [#allocation6], 1
    %19 = vsyncpa %s18, 0
    %20 = vsyncpa [#allocation9], 0
    %21 = vsyncpa [#allocation12], 0
    %22 = vsyncpa [#allocation15], 0
    %23 = vsyncpa [#allocation4], 0
    %s24 = scalar_lea.sflag [#allocation4], 1
    %25 = vsyncpa %s24, 0
    loop: start=0, step=1, limit=4
    $region2: #{tpu_custom_call.1} parent=1 // loop_pre_header
      _
    $region3: #{tpu_custom_call.1} parent=1 // loop_header
      %s27 = sphi 0, %s31
      %p28 = scmp.ge.s32.totalorder %s27, 4
      %s37 = sphi 0, %s39
      %s40 = sphi 0, %s37
      %s41 = sphi 0, %s40
      %s57 = sphi 0, %s41
      %s63 = sphi 0, %s65
      %s66 = sphi 0, %s63
      %s67 = sphi 0, %s66
      %s83 = sphi 0, %s67
      %s89 = sphi 0, %s91
      %s92 = sphi 0, %s89
      %s93 = sphi 0, %s92
      %s109 = sphi 0, %s93
      %s113 = sphi 0, %s113
      %s115 = sphi 0, %s113
      %s116 = sphi 0, %s115
      %s130 = sphi 0, %s116
      %s134 = sphi 0, %s134
      %s136 = sphi 0, %s134
      %s137 = sphi 0, %s136
      %s151 = sphi 0, %s137
      %s155 = sphi 0, %s155
      %s157 = sphi 0, %s155
      %s158 = sphi 0, %s157
      %s172 = sphi 0, %s158
      %s176 = sphi 0, %s176
      %s178 = sphi 0, %s176
      %s179 = sphi 0, %s178
      %s193 = sphi 0, %s179
      %s197 = sphi 0, %s197
      %s199 = sphi 0, %s197
      %s200 = sphi 0, %s199
      %s214 = sphi 0, %s200
      %s218 = sphi 0, %s218
      %s220 = sphi 0, %s218
      %s221 = sphi 0, %s220
      %s235 = sphi 0, %s221
      %s241 = sphi 0, %s243
      %s244 = sphi 0, %s241
      %s245 = sphi 0, %s244
      %s261 = sphi 0, %s245
    $region4: #{tpu_custom_call.1} parent=1 // loop_header_branch
      %30 = sbr.rel (%p28) target = $region8
    $region5: #{tpu_custom_call.1} parent=1 // loop_body
      %s32 = ssub.s32 %s27, 1
      %s33 = ssub.s32 %s27, 2
      %s34 = sadd.s32 %s27, 1
      %s35 = ssub.s32 %s27, %s34
      %p36 = scmp.eq.s32.totalorder %s35, 0
      %s38 = sadd.s32 %s37, 1
      %s39 = scalar_select %p36, %s37, %s38
      %p42 = pneg %p36
      %p43 = scmp.eq.s32.totalorder %s27, 1
      %p44 = por %p42, %p43
      %p45 = scmp.ne.s32.totalorder %s37, %s40
      %p46 = scmp.eq.s32.totalorder %s27, 0
      %p47 = por %p45, %p46
      %p48 = scmp.ne.s32.totalorder %s37, %s40
      %p49 = scmp.eq.s32.totalorder %s32, 1
      %p50 = por %p48, %p49
      %p51 = scmp.ne.s32.totalorder %s40, %s41
      %p52 = scmp.eq.s32.totalorder %s32, 0
      %p53 = por %p51, %p52
      %p54 = scmp.ne.s32.totalorder %s40, %s41
      %p55 = scmp.eq.s32.totalorder %s33, 1
      %p56 = por %p54, %p55
      %p58 = scmp.ne.s32.totalorder %s41, %s57
      %p59 = scmp.eq.s32.totalorder %s33, 0
      %p60 = por %p58, %p59
      %s61 = ssub.s32 %s27, %s34
      %p62 = scmp.eq.s32.totalorder %s61, 0
      %s64 = sadd.s32 %s63, 1
      %s65 = scalar_select %p62, %s63, %s64
      %p68 = pneg %p62
      %p69 = scmp.eq.s32.totalorder %s27, 1
      %p70 = por %p68, %p69
      %p71 = scmp.ne.s32.totalorder %s63, %s66
      %p72 = scmp.eq.s32.totalorder %s27, 0
      %p73 = por %p71, %p72
      %p74 = scmp.ne.s32.totalorder %s63, %s66
      %p75 = scmp.eq.s32.totalorder %s32, 1
      %p76 = por %p74, %p75
      %p77 = scmp.ne.s32.totalorder %s66, %s67
      %p78 = scmp.eq.s32.totalorder %s32, 0
      %p79 = por %p77, %p78
      %p80 = scmp.ne.s32.totalorder %s66, %s67
      %p81 = scmp.eq.s32.totalorder %s33, 1
      %p82 = por %p80, %p81
      %p84 = scmp.ne.s32.totalorder %s67, %s83
      %p85 = scmp.eq.s32.totalorder %s33, 0
      %p86 = por %p84, %p85
      %s87 = ssub.s32 %s27, %s34
      %p88 = scmp.eq.s32.totalorder %s87, 0
      %s90 = sadd.s32 %s89, 1
      %s91 = scalar_select %p88, %s89, %s90
      %p94 = pneg %p88
      %p95 = scmp.eq.s32.totalorder %s27, 1
      %p96 = por %p94, %p95
      %p97 = scmp.ne.s32.totalorder %s89, %s92
      %p98 = scmp.eq.s32.totalorder %s27, 0
      %p99 = por %p97, %p98
      %p100 = scmp.ne.s32.totalorder %s89, %s92
      %p101 = scmp.eq.s32.totalorder %s32, 1
      %p102 = por %p100, %p101
      %p103 = scmp.ne.s32.totalorder %s92, %s93
      %p104 = scmp.eq.s32.totalorder %s32, 0
      %p105 = por %p103, %p104
      %p106 = scmp.ne.s32.totalorder %s92, %s93
      %p107 = scmp.eq.s32.totalorder %s33, 1
      %p108 = por %p106, %p107
      %p110 = scmp.ne.s32.totalorder %s93, %s109
      %p111 = scmp.eq.s32.totalorder %s33, 0
      %p112 = por %p110, %p111
      %s114 = sadd.s32 %s113, 1
      %p117 = scmp.eq.s32.totalorder %s27, 1
      %p118 = scmp.ne.s32.totalorder %s113, %s115
      %p119 = scmp.eq.s32.totalorder %s27, 0
      %p120 = por %p118, %p119
      %p121 = scmp.ne.s32.totalorder %s113, %s115
      %p122 = scmp.eq.s32.totalorder %s32, 1
      %p123 = por %p121, %p122
      %p124 = scmp.ne.s32.totalorder %s115, %s116
      %p125 = scmp.eq.s32.totalorder %s32, 0
      %p126 = por %p124, %p125
      %p127 = scmp.ne.s32.totalorder %s115, %s116
      %p128 = scmp.eq.s32.totalorder %s33, 1
      %p129 = por %p127, %p128
      %p131 = scmp.ne.s32.totalorder %s116, %s130
      %p132 = scmp.eq.s32.totalorder %s33, 0
      %p133 = por %p131, %p132
      %s135 = sadd.s32 %s134, 1
      %p138 = scmp.eq.s32.totalorder %s27, 1
      %p139 = scmp.ne.s32.totalorder %s134, %s136
      %p140 = scmp.eq.s32.totalorder %s27, 0
      %p141 = por %p139, %p140
      %p142 = scmp.ne.s32.totalorder %s134, %s136
      %p143 = scmp.eq.s32.totalorder %s32, 1
      %p144 = por %p142, %p143
      %p145 = scmp.ne.s32.totalorder %s136, %s137
      %p146 = scmp.eq.s32.totalorder %s32, 0
      %p147 = por %p145, %p146
      %p148 = scmp.ne.s32.totalorder %s136, %s137
      %p149 = scmp.eq.s32.totalorder %s33, 1
      %p150 = por %p148, %p149
      %p152 = scmp.ne.s32.totalorder %s137, %s151
      %p153 = scmp.eq.s32.totalorder %s33, 0
      %p154 = por %p152, %p153
      %s156 = sadd.s32 %s155, 1
      %p159 = scmp.eq.s32.totalorder %s27, 1
      %p160 = scmp.ne.s32.totalorder %s155, %s157
      %p161 = scmp.eq.s32.totalorder %s27, 0
      %p162 = por %p160, %p161
      %p163 = scmp.ne.s32.totalorder %s155, %s157
      %p164 = scmp.eq.s32.totalorder %s32, 1
      %p165 = por %p163, %p164
      %p166 = scmp.ne.s32.totalorder %s157, %s158
      %p167 = scmp.eq.s32.totalorder %s32, 0
      %p168 = por %p166, %p167
      %p169 = scmp.ne.s32.totalorder %s157, %s158
      %p170 = scmp.eq.s32.totalorder %s33, 1
      %p171 = por %p169, %p170
      %p173 = scmp.ne.s32.totalorder %s158, %s172
      %p174 = scmp.eq.s32.totalorder %s33, 0
      %p175 = por %p173, %p174
      %s177 = sadd.s32 %s176, 1
      %p180 = scmp.eq.s32.totalorder %s27, 1
      %p181 = scmp.ne.s32.totalorder %s176, %s178
      %p182 = scmp.eq.s32.totalorder %s27, 0
      %p183 = por %p181, %p182
      %p184 = scmp.ne.s32.totalorder %s176, %s178
      %p185 = scmp.eq.s32.totalorder %s32, 1
      %p186 = por %p184, %p185
      %p187 = scmp.ne.s32.totalorder %s178, %s179
      %p188 = scmp.eq.s32.totalorder %s32, 0
      %p189 = por %p187, %p188
      %p190 = scmp.ne.s32.totalorder %s178, %s179
      %p191 = scmp.eq.s32.totalorder %s33, 1
      %p192 = por %p190, %p191
      %p194 = scmp.ne.s32.totalorder %s179, %s193
      %p195 = scmp.eq.s32.totalorder %s33, 0
      %p196 = por %p194, %p195
      %s198 = sadd.s32 %s197, 1
      %p201 = scmp.eq.s32.totalorder %s27, 1
      %p202 = scmp.ne.s32.totalorder %s197, %s199
      %p203 = scmp.eq.s32.totalorder %s27, 0
      %p204 = por %p202, %p203
      %p205 = scmp.ne.s32.totalorder %s197, %s199
      %p206 = scmp.eq.s32.totalorder %s32, 1
      %p207 = por %p205, %p206
      %p208 = scmp.ne.s32.totalorder %s199, %s200
      %p209 = scmp.eq.s32.totalorder %s32, 0
      %p210 = por %p208, %p209
      %p211 = scmp.ne.s32.totalorder %s199, %s200
      %p212 = scmp.eq.s32.totalorder %s33, 1
      %p213 = por %p211, %p212
      %p215 = scmp.ne.s32.totalorder %s200, %s214
      %p216 = scmp.eq.s32.totalorder %s33, 0
      %p217 = por %p215, %p216
      %s219 = sadd.s32 %s218, 1
      %p222 = scmp.eq.s32.totalorder %s27, 1
      %p223 = scmp.ne.s32.totalorder %s218, %s220
      %p224 = scmp.eq.s32.totalorder %s27, 0
      %p225 = por %p223, %p224
      %p226 = scmp.ne.s32.totalorder %s218, %s220
      %p227 = scmp.eq.s32.totalorder %s32, 1
      %p228 = por %p226, %p227
      %p229 = scmp.ne.s32.totalorder %s220, %s221
      %p230 = scmp.eq.s32.totalorder %s32, 0
      %p231 = por %p229, %p230
      %p232 = scmp.ne.s32.totalorder %s220, %s221
      %p233 = scmp.eq.s32.totalorder %s33, 1
      %p234 = por %p232, %p233
      %p236 = scmp.ne.s32.totalorder %s221, %s235
      %p237 = scmp.eq.s32.totalorder %s33, 0
      %p238 = por %p236, %p237
      %s239 = ssub.s32 %s27, %s34
      %p240 = scmp.eq.s32.totalorder %s239, 0
      %s242 = sadd.s32 %s241, 1
      %s243 = scalar_select %p240, %s241, %s242
      %p246 = pneg %p240
      %p247 = scmp.eq.s32.totalorder %s27, 1
      %p248 = por %p246, %p247
      %p249 = scmp.ne.s32.totalorder %s241, %s244
      %p250 = scmp.eq.s32.totalorder %s27, 0
      %p251 = por %p249, %p250
      %p252 = scmp.ne.s32.totalorder %s241, %s244
      %p253 = scmp.eq.s32.totalorder %s32, 1
      %p254 = por %p252, %p253
      %p255 = scmp.ne.s32.totalorder %s244, %s245
      %p256 = scmp.eq.s32.totalorder %s32, 0
      %p257 = por %p255, %p256
      %p258 = scmp.ne.s32.totalorder %s244, %s245
      %p259 = scmp.eq.s32.totalorder %s33, 1
      %p260 = por %p258, %p259
      %p262 = scmp.ne.s32.totalorder %s245, %s261
      %p263 = scmp.eq.s32.totalorder %s33, 0
      %p264 = por %p262, %p263
      %p265 = scmp.le.s32.totalorder 1, %s27
      %p266 = scmp.lt.s32.totalorder %s27, 3
      %p267 = pnand %p265, %p266
      %p268 = pneg %p267
      // Predicated region
      $region9: #{tpu_custom_call.1} parent=5 // pred_check
        _
      $region10: #{tpu_custom_call.1} parent=5 // pred_check_branch
        %270 = sbr.rel (%p267) target = $region12
      $region11: #{tpu_custom_call.1} parent=5 // pred_region
        %s271 = ssub.s32 %s27, 1
        // Predicated region
        $region13: #{tpu_custom_call.1} parent=11 // pred_check
          %p272 = pneg %p126
        $region14: #{tpu_custom_call.1} parent=11 // pred_check_branch
          %274 = sbr.rel (%p272) target = $region16
        $region15: #{tpu_custom_call.1} parent=11 // pred_region
          %s276 = ssub.s32 2048, 2048
          %277 = vsyncadd [#allocation9], %s276
          %s278 = sshll.u32 [#allocation8], 4
          %s279 = int_to_ptr.vmem [resolvable:$true] %s278
          %284 = dma.hbm_to_vmem [thread:$0]  %s3, 2048, %s279, [#allocation9], 128, 128, 8
        $region16: #{tpu_custom_call.1} parent=11 // pred_fallthru
          _
        // Predicated region
        $region17: #{tpu_custom_call.1} parent=11 // pred_check
          %p285 = pneg %p147
        $region18: #{tpu_custom_call.1} parent=11 // pred_check_branch
          %287 = sbr.rel (%p285) target = $region20
        $region19: #{tpu_custom_call.1} parent=11 // pred_region
          %s289 = ssub.s32 256, 256
          %290 = vsyncadd [#allocation9], %s289
          %s291 = sshll.u32 [#allocation10], 4
          %s292 = int_to_ptr.vmem [resolvable:$true] %s291
          %297 = dma.hbm_to_vmem [thread:$0]  %s4, 256, %s292, [#allocation9], 128, 128, 8
        $region20: #{tpu_custom_call.1} parent=11 // pred_fallthru
          _
        // Predicated region
        $region21: #{tpu_custom_call.1} parent=11 // pred_check
          %p298 = pneg %p168
        $region22: #{tpu_custom_call.1} parent=11 // pred_check_branch
          %300 = sbr.rel (%p298) target = $region24
        $region23: #{tpu_custom_call.1} parent=11 // pred_region
          %s302 = ssub.s32 2048, 2048
          %303 = vsyncadd [#allocation12], %s302
          %s304 = sshll.u32 [#allocation11], 4
          %s305 = int_to_ptr.vmem [resolvable:$true] %s304
          %310 = dma.hbm_to_vmem [thread:$0]  %s5, 2048, %s305, [#allocation12], 128, 128, 8
        $region24: #{tpu_custom_call.1} parent=11 // pred_fallthru
          _
        // Predicated region
        $region25: #{tpu_custom_call.1} parent=11 // pred_check
          %p311 = pneg %p189
        $region26: #{tpu_custom_call.1} parent=11 // pred_check_branch
          %313 = sbr.rel (%p311) target = $region28
        $region27: #{tpu_custom_call.1} parent=11 // pred_region
          _
        $region28: #{tpu_custom_call.1} parent=11 // pred_fallthru
          _
        // Predicated region
        $region29: #{tpu_custom_call.1} parent=11 // pred_check
          %p314 = pneg %p210
        $region30: #{tpu_custom_call.1} parent=11 // pred_check_branch
          %316 = sbr.rel (%p314) target = $region32
        $region31: #{tpu_custom_call.1} parent=11 // pred_region
          %s318 = ssub.s32 2048, 2048
          %319 = vsyncadd [#allocation12], %s318
          %s320 = sshll.u32 [#allocation13], 4
          %s321 = int_to_ptr.vmem [resolvable:$true] %s320
          %326 = dma.hbm_to_vmem [thread:$0]  %s7, 2048, %s321, [#allocation12], 128, 128, 8
        $region32: #{tpu_custom_call.1} parent=11 // pred_fallthru
          _
        // Predicated region
        $region33: #{tpu_custom_call.1} parent=11 // pred_check
          %p327 = pneg %p231
        $region34: #{tpu_custom_call.1} parent=11 // pred_check_branch
          %329 = sbr.rel (%p327) target = $region36
        $region35: #{tpu_custom_call.1} parent=11 // pred_region
          %s331 = ssub.s32 256, 256
          %332 = vsyncadd [#allocation15], %s331
          %s333 = sshll.u32 [#allocation14], 4
          %s334 = int_to_ptr.vmem [resolvable:$true] %s333
          %339 = dma.hbm_to_vmem [thread:$0]  %s8, 256, %s334, [#allocation15], 128, 128, 8
        $region36: #{tpu_custom_call.1} parent=11 // pred_fallthru
          _
      $region12: #{tpu_custom_call.1} parent=5 // pred_fallthru
        _
      %p340 = scmp.lt.s32.totalorder %s27, 2
      // Predicated region
      $region37: #{tpu_custom_call.1} parent=5 // pred_check
        %p341 = pneg %p340
      $region38: #{tpu_custom_call.1} parent=5 // pred_check_branch
        %343 = sbr.rel (%p341) target = $region40
      $region39: #{tpu_custom_call.1} parent=5 // pred_region
        // Predicated region
        $region41: #{tpu_custom_call.1} parent=39 // pred_check
          %p344 = pneg %p47
        $region42: #{tpu_custom_call.1} parent=39 // pred_check_branch
          %346 = sbr.rel (%p344) target = $region44
        $region43: #{tpu_custom_call.1} parent=39 // pred_region
          %s347 = sand.u32 %s37, 1
          %s348 = scalar_lea.sflag [#allocation3], %s347
          %s349 = sand.u32 %s37, 1
          %s350 = smul.addr %s349, 16
          %s351 = scalar_lea.vmem [#allocation2], %s350
          %s353 = ssub.s32 256, 256
          %354 = vsyncadd %s348, %s353
          %s355 = smul.addr %s27, 2
          %s356 = smul.addr %s355, 128
          %s357 = scalar_lea.hbm %s0, %s356
          %s358 = sshll.u32 %s351, 4
          %s359 = int_to_ptr.vmem [resolvable:$true] %s358
          %364 = dma.hbm_to_vmem [thread:$0]  %s357, 256, %s359, %s348, 128, 128, 8
        $region44: #{tpu_custom_call.1} parent=39 // pred_fallthru
          _
        // Predicated region
        $region45: #{tpu_custom_call.1} parent=39 // pred_check
          %p365 = pneg %p73
        $region46: #{tpu_custom_call.1} parent=39 // pred_check_branch
          %367 = sbr.rel (%p365) target = $region48
        $region47: #{tpu_custom_call.1} parent=39 // pred_region
          %s368 = sand.u32 %s27, 1
          %s369 = scalar_lea.sflag [#allocation6], %s368
          %s370 = sand.u32 %s63, 1
          %s371 = smul.addr %s370, 16
          %s372 = scalar_lea.vmem [#allocation5], %s371
          %s374 = ssub.s32 256, 256
          %375 = vsyncadd %s369, %s374
          %s376 = smul.addr %s27, 2
          %s377 = smul.addr %s376, 128
          %s378 = scalar_lea.hbm %s1, %s377
          %s379 = sshll.u32 %s372, 4
          %s380 = int_to_ptr.vmem [resolvable:$true] %s379
          %385 = dma.hbm_to_vmem [thread:$0]  %s378, 256, %s380, %s369, 128, 128, 8
        $region48: #{tpu_custom_call.1} parent=39 // pred_fallthru
          _
        // Predicated region
        $region49: #{tpu_custom_call.1} parent=39 // pred_check
          %p386 = pneg %p99
        $region50: #{tpu_custom_call.1} parent=39 // pred_check_branch
          %388 = sbr.rel (%p386) target = $region52
        $region51: #{tpu_custom_call.1} parent=39 // pred_region
          %s389 = sand.u32 %s27, 1
          %s390 = scalar_lea.sflag [#allocation6], %s389
          %s391 = sand.u32 %s89, 1
          %s392 = smul.addr %s391, 16
          %s393 = scalar_lea.vmem [#allocation7], %s392
          %s395 = ssub.s32 256, 256
          %396 = vsyncadd %s390, %s395
          %s397 = smul.addr %s27, 2
          %s398 = smul.addr %s397, 128
          %s399 = scalar_lea.hbm %s2, %s398
          %s400 = sshll.u32 %s393, 4
          %s401 = int_to_ptr.vmem [resolvable:$true] %s400
          %406 = dma.hbm_to_vmem [thread:$0]  %s399, 256, %s401, %s390, 128, 128, 8
        $region52: #{tpu_custom_call.1} parent=39 // pred_fallthru
          _
      $region40: #{tpu_custom_call.1} parent=5 // pred_fallthru
        _
      %p407 = scmp.le.s32.totalorder 1, %s27
      %p408 = scmp.lt.s32.totalorder %s27, 3
      %p409 = pnand %p407, %p408
      %p410 = pneg %p409
      // Predicated region
      $region53: #{tpu_custom_call.1} parent=5 // pred_check
        _
      $region54: #{tpu_custom_call.1} parent=5 // pred_check_branch
        %412 = sbr.rel (%p409) target = $region56
      $region55: #{tpu_custom_call.1} parent=5 // pred_region
        %s413 = ssub.s32 %s27, 1
        %s414 = sand.u32 %s40, 1
        %s415 = scalar_lea.sflag [#allocation3], %s414
        %s416 = sand.u32 %s40, 1
        %s417 = smul.addr %s416, 16
        %s418 = scalar_lea.vmem [#allocation2], %s417
        // Predicated region
        $region57: #{tpu_custom_call.1} parent=55 // pred_check
          %p419 = pneg %p53
        $region58: #{tpu_custom_call.1} parent=55 // pred_check_branch
          %421 = sbr.rel (%p419) target = $region60
        $region59: #{tpu_custom_call.1} parent=55 // pred_region
          %422 = dma.done %s415, 256
        $region60: #{tpu_custom_call.1} parent=55 // pred_fallthru
          _
        %s423 = sand.u32 %s32, 1
        %s424 = scalar_lea.sflag [#allocation6], %s423
        %s425 = sand.u32 %s66, 1
        %s426 = smul.addr %s425, 16
        %s427 = scalar_lea.vmem [#allocation5], %s426
        // Predicated region
        $region61: #{tpu_custom_call.1} parent=55 // pred_check
          %p428 = pneg %p79
        $region62: #{tpu_custom_call.1} parent=55 // pred_check_branch
          %430 = sbr.rel (%p428) target = $region64
        $region63: #{tpu_custom_call.1} parent=55 // pred_region
          %431 = dma.done %s424, 256
        $region64: #{tpu_custom_call.1} parent=55 // pred_fallthru
          _
        %s432 = sand.u32 %s32, 1
        %s433 = scalar_lea.sflag [#allocation6], %s432
        %s434 = sand.u32 %s92, 1
        %s435 = smul.addr %s434, 16
        %s436 = scalar_lea.vmem [#allocation7], %s435
        // Predicated region
        $region65: #{tpu_custom_call.1} parent=55 // pred_check
          %p437 = pneg %p105
        $region66: #{tpu_custom_call.1} parent=55 // pred_check_branch
          %439 = sbr.rel (%p437) target = $region68
        $region67: #{tpu_custom_call.1} parent=55 // pred_region
          %440 = dma.done %s433, 256
        $region68: #{tpu_custom_call.1} parent=55 // pred_fallthru
          _
        // Predicated region
        $region69: #{tpu_custom_call.1} parent=55 // pred_check
          %p441 = pneg %p126
        $region70: #{tpu_custom_call.1} parent=55 // pred_check_branch
          %443 = sbr.rel (%p441) target = $region72
        $region71: #{tpu_custom_call.1} parent=55 // pred_region
          %444 = dma.done [#allocation9], 2048
        $region72: #{tpu_custom_call.1} parent=55 // pred_fallthru
          _
        // Predicated region
        $region73: #{tpu_custom_call.1} parent=55 // pred_check
          %p445 = pneg %p147
        $region74: #{tpu_custom_call.1} parent=55 // pred_check_branch
          %447 = sbr.rel (%p445) target = $region76
        $region75: #{tpu_custom_call.1} parent=55 // pred_region
          %448 = dma.done [#allocation9], 256
        $region76: #{tpu_custom_call.1} parent=55 // pred_fallthru
          _
        // Predicated region
        $region77: #{tpu_custom_call.1} parent=55 // pred_check
          %p449 = pneg %p168
        $region78: #{tpu_custom_call.1} parent=55 // pred_check_branch
          %451 = sbr.rel (%p449) target = $region80
        $region79: #{tpu_custom_call.1} parent=55 // pred_region
          %452 = dma.done [#allocation12], 2048
        $region80: #{tpu_custom_call.1} parent=55 // pred_fallthru
          _
        // Predicated region
        $region81: #{tpu_custom_call.1} parent=55 // pred_check
          %p453 = pneg %p210
        $region82: #{tpu_custom_call.1} parent=55 // pred_check_branch
          %455 = sbr.rel (%p453) target = $region84
        $region83: #{tpu_custom_call.1} parent=55 // pred_region
          %456 = dma.done [#allocation12], 2048
        $region84: #{tpu_custom_call.1} parent=55 // pred_fallthru
          _
        // Predicated region
        $region85: #{tpu_custom_call.1} parent=55 // pred_check
          %p457 = pneg %p231
        $region86: #{tpu_custom_call.1} parent=55 // pred_check_branch
          %459 = sbr.rel (%p457) target = $region88
        $region87: #{tpu_custom_call.1} parent=55 // pred_region
          %460 = dma.done [#allocation15], 256
        $region88: #{tpu_custom_call.1} parent=55 // pred_fallthru
          _
        %s461 = sand.u32 %s40, 1
        %s462 = scalar_lea.sflag [#allocation3], %s461
        %s463 = sand.u32 %s40, 1
        %s464 = smul.addr %s463, 16
        %s465 = scalar_lea.vmem [#allocation2], %s464
        %p466 = pneg %p53
        %p467 = pneg %p50
        %s468 = sand.u32 %s32, 1
        %s469 = scalar_lea.sflag [#allocation6], %s468
        %s470 = sand.u32 %s66, 1
        %s471 = smul.addr %s470, 16
        %s472 = scalar_lea.vmem [#allocation5], %s471
        %p473 = pneg %p79
        %p474 = pneg %p76
        %s475 = sand.u32 %s32, 1
        %s476 = scalar_lea.sflag [#allocation6], %s475
        %s477 = sand.u32 %s92, 1
        %s478 = smul.addr %s477, 16
        %s479 = scalar_lea.vmem [#allocation7], %s478
        %p480 = pneg %p105
        %p481 = pneg %p102
        %p482 = pneg %p126
        %p483 = pneg %p123
        %p484 = pneg %p147
        %p485 = pneg %p144
        %p486 = pneg %p168
        %p487 = pneg %p165
        %p488 = pneg %p189
        %p489 = pneg %p186
        %p490 = pneg %p210
        %p491 = pneg %p207
        %p492 = pneg %p231
        %p493 = pneg %p228
        %p494 = pneg %p257
        %p495 = pneg %p254
        %s496 = sand.u32 %s244, 1
        %s497 = scalar_lea.sflag [#allocation4], %s496
        %s498 = sand.u32 %s244, 1
        %s499 = smul.addr %s498, 8
        %s500 = scalar_lea.vmem [#allocation16], %s499
        %v501 = vld [vmem:[#allocation8] sm:$0xff]
        %v502 = vld [vmem:[#allocation8 + $0x8] sm:$0xff]
        %v503 = vld [vmem:[#allocation8 + $0x10] sm:$0xff]
        %v504 = vld [vmem:[#allocation8 + $0x18] sm:$0xff]
        %v505 = vld [vmem:[#allocation8 + $0x20] sm:$0xff]
        %v506 = vld [vmem:[#allocation8 + $0x28] sm:$0xff]
        %v507 = vld [vmem:[#allocation8 + $0x30] sm:$0xff]
        %v508 = vld [vmem:[#allocation8 + $0x38] sm:$0xff]
        %v509 = vld [vmem:[#allocation8 + $0x40] sm:$0xff]
        %v510 = vld [vmem:[#allocation8 + $0x48] sm:$0xff]
        %v511 = vld [vmem:[#allocation8 + $0x50] sm:$0xff]
        %v512 = vld [vmem:[#allocation8 + $0x58] sm:$0xff]
        %v513 = vld [vmem:[#allocation8 + $0x60] sm:$0xff]
        %v514 = vld [vmem:[#allocation8 + $0x68] sm:$0xff]
        %v515 = vld [vmem:[#allocation8 + $0x70] sm:$0xff]
        %v516 = vld [vmem:[#allocation8 + $0x78] sm:$0xff]
        %v517 = vld [vmem:[#allocation10] sm:$0xff]
        %v518 = vld [vmem:[#allocation10 + $0x8] sm:$0xff]
        %v519 = vld [vmem:[#allocation11] sm:$0xff]
        %v520 = vld [vmem:[#allocation11 + $0x8] sm:$0xff]
        %v521 = vld [vmem:[#allocation11 + $0x10] sm:$0xff]
        %v522 = vld [vmem:[#allocation11 + $0x18] sm:$0xff]
        %v523 = vld [vmem:[#allocation11 + $0x20] sm:$0xff]
        %v524 = vld [vmem:[#allocation11 + $0x28] sm:$0xff]
        %v525 = vld [vmem:[#allocation11 + $0x30] sm:$0xff]
        %v526 = vld [vmem:[#allocation11 + $0x38] sm:$0xff]
        %v527 = vld [vmem:[#allocation11 + $0x40] sm:$0xff]
        %v528 = vld [vmem:[#allocation11 + $0x48] sm:$0xff]
        %v529 = vld [vmem:[#allocation11 + $0x50] sm:$0xff]
        %v530 = vld [vmem:[#allocation11 + $0x58] sm:$0xff]
        %v531 = vld [vmem:[#allocation11 + $0x60] sm:$0xff]
        %v532 = vld [vmem:[#allocation11 + $0x68] sm:$0xff]
        %v533 = vld [vmem:[#allocation11 + $0x70] sm:$0xff]
        %v534 = vld [vmem:[#allocation11 + $0x78] sm:$0xff]
        %v535 = vld [vmem:[#allocation13] sm:$0xff]
        %v536 = vld [vmem:[#allocation13 + $0x8] sm:$0xff]
        %v537 = vld [vmem:[#allocation13 + $0x10] sm:$0xff]
        %v538 = vld [vmem:[#allocation13 + $0x18] sm:$0xff]
        %v539 = vld [vmem:[#allocation13 + $0x20] sm:$0xff]
        %v540 = vld [vmem:[#allocation13 + $0x28] sm:$0xff]
        %v541 = vld [vmem:[#allocation13 + $0x30] sm:$0xff]
        %v542 = vld [vmem:[#allocation13 + $0x38] sm:$0xff]
        %v543 = vld [vmem:[#allocation13 + $0x40] sm:$0xff]
        %v544 = vld [vmem:[#allocation13 + $0x48] sm:$0xff]
        %v545 = vld [vmem:[#allocation13 + $0x50] sm:$0xff]
        %v546 = vld [vmem:[#allocation13 + $0x58] sm:$0xff]
        %v547 = vld [vmem:[#allocation13 + $0x60] sm:$0xff]
        %v548 = vld [vmem:[#allocation13 + $0x68] sm:$0xff]
        %v549 = vld [vmem:[#allocation13 + $0x70] sm:$0xff]
        %v550 = vld [vmem:[#allocation13 + $0x78] sm:$0xff]
        %v551 = vld [vmem:[%s6] sm:$0xff]
        %v552 = vld [vmem:[%s6 + $0x8] sm:$0xff]
        %v553 = vld [vmem:[#allocation14] sm:$0xff]
        %v554 = vld [vmem:[#allocation14 + $0x8] sm:$0xff]
        %v555 = vld [vmem:[%s418] sm:$0xff]
        %v556 = vld [vmem:[%s418 + $0x8] sm:$0xff]
        %v557 = vld [vmem:[%s427] sm:$0xff]
        %v558 = vld [vmem:[%s427 + $0x8] sm:$0xff]
        %v559 = vld [vmem:[%s436] sm:$0xff]
        %v560 = vld [vmem:[%s436 + $0x8] sm:$0xff]
        %561 = vmatprep.subr.mxu0 0.0
        %562 = vmatpush1.msra.mxu0 %v519
        %563 = vmatprep.subr.mxu0 0.0
        %564 = vmatpush1.msra.mxu0 %v520
        %565 = vmatprep.subr.mxu0 0.0
        %566 = vmatpush1.msra.mxu0 %v521
        %567 = vmatprep.subr.mxu0 0.0
        %568 = vmatpush1.msra.mxu0 %v522
        %569 = vmatprep.subr.mxu0 0.0
        %570 = vmatpush1.msra.mxu0 %v523
        %571 = vmatprep.subr.mxu0 0.0
        %572 = vmatpush1.msra.mxu0 %v524
        %573 = vmatprep.subr.mxu0 0.0
        %574 = vmatpush1.msra.mxu0 %v525
        %575 = vmatprep.subr.mxu0 0.0
        %576 = vmatpush1.msra.mxu0 %v526
        %577 = vmatprep.subr.mxu0 0.0
        %578 = vmatpush1.msra.mxu0 %v527
        %579 = vmatprep.subr.mxu0 0.0
        %580 = vmatpush1.msra.mxu0 %v528
        %581 = vmatprep.subr.mxu0 0.0
        %582 = vmatpush1.msra.mxu0 %v529
        %583 = vmatprep.subr.mxu0 0.0
        %584 = vmatpush1.msra.mxu0 %v530
        %585 = vmatprep.subr.mxu0 0.0
        %586 = vmatpush1.msra.mxu0 %v531
        %587 = vmatprep.subr.mxu0 0.0
        %588 = vmatpush1.msra.mxu0 %v532
        %589 = vmatprep.subr.mxu0 0.0
        %590 = vmatpush1.msra.mxu0 %v533
        %591 = vmatprep.subr.mxu0 0.0
        %592 = vmatpush1.msra.mxu0 %v534
        %593 = vmatprep.subr.mxu0 0.0
        %594 = vmatpush1.msra.mxu0 0.0
        %595 = vmatprep.subr.mxu0 0.0
        %596 = vmatpush1.msra.mxu0 0.0
        %597 = vmatprep.subr.mxu0 0.0
        %598 = vmatpush1.msra.mxu0 0.0
        %599 = vmatprep.subr.mxu0 0.0
        %600 = vmatpush1.msra.mxu0 0.0
        %601 = vmatprep.subr.mxu0 0.0
        %602 = vmatpush1.msra.mxu0 0.0
        %603 = vmatprep.subr.mxu0 0.0
        %604 = vmatpush1.msra.mxu0 0.0
        %605 = vmatprep.subr.mxu0 0.0
        %606 = vmatpush1.msra.mxu0 0.0
        %607 = vmatprep.subr.mxu0 0.0
        %608 = vmatpush1.msra.mxu0 0.0
        %609 = vmatprep.subr.mxu0 0.0
        %610 = vmatpush1.msra.mxu0 0.0
        %611 = vmatprep.subr.mxu0 0.0
        %612 = vmatpush1.msra.mxu0 0.0
        %613 = vmatprep.subr.mxu0 0.0
        %614 = vmatpush1.msra.mxu0 0.0
        %615 = vmatprep.subr.mxu0 0.0
        %616 = vmatpush1.msra.mxu0 0.0
        %617 = vmatprep.subr.mxu0 0.0
        %618 = vmatpush1.msra.mxu0 0.0
        %619 = vmatprep.subr.mxu0 0.0
        %620 = vmatpush1.msra.mxu0 0.0
        %621 = vmatprep.subr.mxu0 0.0
        %622 = vmatpush1.msra.mxu0 0.0
        %623 = vmatprep.subr.mxu0 0.0
        %624 = vmatpush1.msra.mxu0 0.0
        %625 = vmatprep.mubr.f32.mxu0 0.0
        %626 = vmatmul.mubr.f32.gmra.mrb[0].mxu0 %v555
        %v627 = vpop.f32.mrb[0].mxu0
        %v628 = vadd.f32 0.0, %v627
        %v629 = vpop.f32.mrb[0].mxu0
        %630 = vmatprep.mubr.f32.mxu0 0.0
        %631 = vmatmul.mubr.f32.gmra.mrb[0].mxu0 %v556
        %v632 = vpop.f32.mrb[0].mxu0
        %v633 = vadd.f32 0.0, %v632
        %v634 = vpop.f32.mrb[0].mxu0
        %635 = vmatprep.mubr.f32.mxu0 0.0
        %636 = vmatmul.mubr.f32.gmra.mrb[0].mxu0 %v557
        %v637 = vpop.f32.mrb[0].mxu0
        %v638 = vadd.f32 0.0, %v637
        %v639 = vpop.f32.mrb[0].mxu0
        %640 = vmatprep.mubr.f32.mxu0 0.0
        %641 = vmatmul.mubr.f32.gmra.mrb[0].mxu0 %v558
        %v642 = vpop.f32.mrb[0].mxu0
        %v643 = vadd.f32 0.0, %v642
        %v644 = vpop.f32.mrb[0].mxu0
        %645 = vdwg.mxu0
        %646 = vmatprep.subr.mxu0 0.0
        %647 = vmatpush1.msra.mxu0 %v535
        %648 = vmatprep.subr.mxu0 0.0
        %649 = vmatpush1.msra.mxu0 %v536
        %650 = vmatprep.subr.mxu0 0.0
        %651 = vmatpush1.msra.mxu0 %v537
        %652 = vmatprep.subr.mxu0 0.0
        %653 = vmatpush1.msra.mxu0 %v538
        %654 = vmatprep.subr.mxu0 0.0
        %655 = vmatpush1.msra.mxu0 %v539
        %656 = vmatprep.subr.mxu0 0.0
        %657 = vmatpush1.msra.mxu0 %v540
        %658 = vmatprep.subr.mxu0 0.0
        %659 = vmatpush1.msra.mxu0 %v541
        %660 = vmatprep.subr.mxu0 0.0
        %661 = vmatpush1.msra.mxu0 %v542
        %662 = vmatprep.subr.mxu0 0.0
        %663 = vmatpush1.msra.mxu0 %v543
        %664 = vmatprep.subr.mxu0 0.0
        %665 = vmatpush1.msra.mxu0 %v544
        %666 = vmatprep.subr.mxu0 0.0
        %667 = vmatpush1.msra.mxu0 %v545
        %668 = vmatprep.subr.mxu0 0.0
        %669 = vmatpush1.msra.mxu0 %v546
        %670 = vmatprep.subr.mxu0 0.0
        %671 = vmatpush1.msra.mxu0 %v547
        %672 = vmatprep.subr.mxu0 0.0
        %673 = vmatpush1.msra.mxu0 %v548
        %674 = vmatprep.subr.mxu0 0.0
        %675 = vmatpush1.msra.mxu0 %v549
        %676 = vmatprep.subr.mxu0 0.0
        %677 = vmatpush1.msra.mxu0 %v550
        %678 = vmatprep.subr.mxu0 0.0
        %679 = vmatpush1.msra.mxu0 0.0
        %680 = vmatprep.subr.mxu0 0.0
        %681 = vmatpush1.msra.mxu0 0.0
        %682 = vmatprep.subr.mxu0 0.0
        %683 = vmatpush1.msra.mxu0 0.0
        %684 = vmatprep.subr.mxu0 0.0
        %685 = vmatpush1.msra.mxu0 0.0
        %686 = vmatprep.subr.mxu0 0.0
        %687 = vmatpush1.msra.mxu0 0.0
        %688 = vmatprep.subr.mxu0 0.0
        %689 = vmatpush1.msra.mxu0 0.0
        %690 = vmatprep.subr.mxu0 0.0
        %691 = vmatpush1.msra.mxu0 0.0
        %692 = vmatprep.subr.mxu0 0.0
        %693 = vmatpush1.msra.mxu0 0.0
        %694 = vmatprep.subr.mxu0 0.0
        %695 = vmatpush1.msra.mxu0 0.0
        %696 = vmatprep.subr.mxu0 0.0
        %697 = vmatpush1.msra.mxu0 0.0
        %698 = vmatprep.subr.mxu0 0.0
        %699 = vmatpush1.msra.mxu0 0.0
        %700 = vmatprep.subr.mxu0 0.0
        %701 = vmatpush1.msra.mxu0 0.0
        %702 = vmatprep.subr.mxu0 0.0
        %703 = vmatpush1.msra.mxu0 0.0
        %704 = vmatprep.subr.mxu0 0.0
        %705 = vmatpush1.msra.mxu0 0.0
        %706 = vmatprep.subr.mxu0 0.0
        %707 = vmatpush1.msra.mxu0 0.0
        %708 = vmatprep.subr.mxu0 0.0
        %709 = vmatpush1.msra.mxu0 0.0
        %710 = vmatprep.mubr.f32.mxu0 0.0
        %711 = vmatmul.mubr.f32.gmra.mrb[0].mxu0 %v555
        %v712 = vpop.f32.mrb[0].mxu0
        %v713 = vadd.f32 0.0, %v712
        %v714 = vpop.f32.mrb[0].mxu0
        %715 = vmatprep.mubr.f32.mxu0 0.0
        %716 = vmatmul.mubr.f32.gmra.mrb[0].mxu0 %v556
        %v717 = vpop.f32.mrb[0].mxu0
        %v718 = vadd.f32 0.0, %v717
        %v719 = vpop.f32.mrb[0].mxu0
        %720 = vmatprep.mubr.f32.mxu0 0.0
        %721 = vmatmul.mubr.f32.gmra.mrb[0].mxu0 %v557
        %v722 = vpop.f32.mrb[0].mxu0
        %v723 = vadd.f32 0.0, %v722
        %v724 = vpop.f32.mrb[0].mxu0
        %725 = vmatprep.mubr.f32.mxu0 0.0
        %726 = vmatmul.mubr.f32.gmra.mrb[0].mxu0 %v558
        %v727 = vpop.f32.mrb[0].mxu0
        %v728 = vadd.f32 0.0, %v727
        %v729 = vpop.f32.mrb[0].mxu0
        %730 = vdwg.mxu0
        %vm731 = vcmask 130048
        %v733 = vsel %vm731, %v551, 0
        %v736 = vsel %vm731, %v552, 0
        %738 = vmatprep.subr.mxu0 0.0
        %739 = vmatpush1.msra.mxu0 %v628
        %740 = vmatprep.subr.mxu0 0.0
        %741 = vmatpush1.msra.mxu0 %v633
        %742 = vmatprep.subr.mxu0 0.0
        %743 = vmatpush1.msra.mxu0 0.0
        %744 = vmatprep.subr.mxu0 0.0
        %745 = vmatpush1.msra.mxu0 0.0
        %746 = vmatprep.subr.mxu0 0.0
        %747 = vmatpush1.msra.mxu0 0.0
        %748 = vmatprep.subr.mxu0 0.0
        %749 = vmatpush1.msra.mxu0 0.0
        %750 = vmatprep.subr.mxu0 0.0
        %751 = vmatpush1.msra.mxu0 0.0
        %752 = vmatprep.subr.mxu0 0.0
        %753 = vmatpush1.msra.mxu0 0.0
        %754 = vmatprep.subr.mxu0 0.0
        %755 = vmatpush1.msra.mxu0 0.0
        %756 = vmatprep.subr.mxu0 0.0
        %757 = vmatpush1.msra.mxu0 0.0
        %758 = vmatprep.subr.mxu0 0.0
        %759 = vmatpush1.msra.mxu0 0.0
        %760 = vmatprep.subr.mxu0 0.0
        %761 = vmatpush1.msra.mxu0 0.0
        %762 = vmatprep.subr.mxu0 0.0
        %763 = vmatpush1.msra.mxu0 0.0
        %764 = vmatprep.subr.mxu0 0.0
        %765 = vmatpush1.msra.mxu0 0.0
        %766 = vmatprep.subr.mxu0 0.0
        %767 = vmatpush1.msra.mxu0 0.0
        %768 = vmatprep.subr.mxu0 0.0
        %769 = vmatpush1.msra.mxu0 0.0
        %770 = vmatprep.subr.mxu0 0.0
        %771 = vmatpush1.msra.mxu0 0.0
        %772 = vmatprep.subr.mxu0 0.0
        %773 = vmatpush1.msra.mxu0 0.0
        %774 = vmatprep.subr.mxu0 0.0
        %775 = vmatpush1.msra.mxu0 0.0
        %776 = vmatprep.subr.mxu0 0.0
        %777 = vmatpush1.msra.mxu0 0.0
        %778 = vmatprep.subr.mxu0 0.0
        %779 = vmatpush1.msra.mxu0 0.0
        %780 = vmatprep.subr.mxu0 0.0
        %781 = vmatpush1.msra.mxu0 0.0
        %782 = vmatprep.subr.mxu0 0.0
        %783 = vmatpush1.msra.mxu0 0.0
        %784 = vmatprep.subr.mxu0 0.0
        %785 = vmatpush1.msra.mxu0 0.0
        %786 = vmatprep.subr.mxu0 0.0
        %787 = vmatpush1.msra.mxu0 0.0
        %788 = vmatprep.subr.mxu0 0.0
        %789 = vmatpush1.msra.mxu0 0.0
        %790 = vmatprep.subr.mxu0 0.0
        %791 = vmatpush1.msra.mxu0 0.0
        %792 = vmatprep.subr.mxu0 0.0
        %793 = vmatpush1.msra.mxu0 0.0
        %794 = vmatprep.subr.mxu0 0.0
        %795 = vmatpush1.msra.mxu0 0.0
        %796 = vmatprep.subr.mxu0 0.0
        %797 = vmatpush1.msra.mxu0 0.0
        %798 = vmatprep.subr.mxu0 0.0
        %799 = vmatpush1.msra.mxu0 0.0
        %800 = vmatprep.subr.mxu0 0.0
        %801 = vmatpush1.msra.mxu0 0.0
        %802 = vmatprep.mubr.f32.mxu0 0.0
        %803 = vmatmul.mubr.f32.gmra.mrb[0].mxu0 %v733
        %v804 = vpop.f32.mrb[0].mxu0
        %v805 = vadd.f32 0.0, %v804
        %v806 = vpop.f32.mrb[0].mxu0
        %807 = vmatprep.mubr.f32.mxu0 0.0
        %808 = vmatmul.mubr.f32.gmra.mrb[0].mxu0 %v736
        %v809 = vpop.f32.mrb[0].mxu0
        %v810 = vadd.f32 0.0, %v809
        %v811 = vpop.f32.mrb[0].mxu0
        %812 = vdwg.mxu0
        %v814 = vsel %vm731, %v553, 0
        %v817 = vsel %vm731, %v554, 0
        %819 = vmatprep.subr.mxu0 0.0
        %820 = vmatpush1.msra.mxu0 %v713
        %821 = vmatprep.subr.mxu0 0.0
        %822 = vmatpush1.msra.mxu0 %v718
        %823 = vmatprep.subr.mxu0 0.0
        %824 = vmatpush1.msra.mxu0 0.0
        %825 = vmatprep.subr.mxu0 0.0
        %826 = vmatpush1.msra.mxu0 0.0
        %827 = vmatprep.subr.mxu0 0.0
        %828 = vmatpush1.msra.mxu0 0.0
        %829 = vmatprep.subr.mxu0 0.0
        %830 = vmatpush1.msra.mxu0 0.0
        %831 = vmatprep.subr.mxu0 0.0
        %832 = vmatpush1.msra.mxu0 0.0
        %833 = vmatprep.subr.mxu0 0.0
        %834 = vmatpush1.msra.mxu0 0.0
        %835 = vmatprep.subr.mxu0 0.0
        %836 = vmatpush1.msra.mxu0 0.0
        %837 = vmatprep.subr.mxu0 0.0
        %838 = vmatpush1.msra.mxu0 0.0
        %839 = vmatprep.subr.mxu0 0.0
        %840 = vmatpush1.msra.mxu0 0.0
        %841 = vmatprep.subr.mxu0 0.0
        %842 = vmatpush1.msra.mxu0 0.0
        %843 = vmatprep.subr.mxu0 0.0
        %844 = vmatpush1.msra.mxu0 0.0
        %845 = vmatprep.subr.mxu0 0.0
        %846 = vmatpush1.msra.mxu0 0.0
        %847 = vmatprep.subr.mxu0 0.0
        %848 = vmatpush1.msra.mxu0 0.0
        %849 = vmatprep.subr.mxu0 0.0
        %850 = vmatpush1.msra.mxu0 0.0
        %851 = vmatprep.subr.mxu0 0.0
        %852 = vmatpush1.msra.mxu0 0.0
        %853 = vmatprep.subr.mxu0 0.0
        %854 = vmatpush1.msra.mxu0 0.0
        %855 = vmatprep.subr.mxu0 0.0
        %856 = vmatpush1.msra.mxu0 0.0
        %857 = vmatprep.subr.mxu0 0.0
        %858 = vmatpush1.msra.mxu0 0.0
        %859 = vmatprep.subr.mxu0 0.0
        %860 = vmatpush1.msra.mxu0 0.0
        %861 = vmatprep.subr.mxu0 0.0
        %862 = vmatpush1.msra.mxu0 0.0
        %863 = vmatprep.subr.mxu0 0.0
        %864 = vmatpush1.msra.mxu0 0.0
        %865 = vmatprep.subr.mxu0 0.0
        %866 = vmatpush1.msra.mxu0 0.0
        %867 = vmatprep.subr.mxu0 0.0
        %868 = vmatpush1.msra.mxu0 0.0
        %869 = vmatprep.subr.mxu0 0.0
        %870 = vmatpush1.msra.mxu0 0.0
        %871 = vmatprep.subr.mxu0 0.0
        %872 = vmatpush1.msra.mxu0 0.0
        %873 = vmatprep.subr.mxu0 0.0
        %874 = vmatpush1.msra.mxu0 0.0
        %875 = vmatprep.subr.mxu0 0.0
        %876 = vmatpush1.msra.mxu0 0.0
        %877 = vmatprep.subr.mxu0 0.0
        %878 = vmatpush1.msra.mxu0 0.0
        %879 = vmatprep.subr.mxu0 0.0
        %880 = vmatpush1.msra.mxu0 0.0
        %881 = vmatprep.subr.mxu0 0.0
        %882 = vmatpush1.msra.mxu0 0.0
        %883 = vmatprep.mubr.f32.mxu0 0.0
        %884 = vmatmul.mubr.f32.gmra.mrb[0].mxu0 %v814
        %v885 = vpop.f32.mrb[0].mxu0
        %v886 = vadd.f32 0.0, %v885
        %v887 = vpop.f32.mrb[0].mxu0
        %888 = vmatprep.mubr.f32.mxu0 0.0
        %889 = vmatmul.mubr.f32.gmra.mrb[0].mxu0 %v817
        %v890 = vpop.f32.mrb[0].mxu0
        %v891 = vadd.f32 0.0, %v890
        %v892 = vpop.f32.mrb[0].mxu0
        %893 = vdwg.mxu0
        %v894 = vand.u32 2147483647, %v805
        %v895 = vand.u32 2147483647, %v810
        %v896 = vand.u32 2147483647, %v886
        %v897 = vand.u32 2147483647, %v891
        %v898 = vadd.f32 %v894, %v896
        %v899 = vadd.f32 %v895, %v897
        %v900 = vadd.f32 %v898, %v899
        %901 = vadd.xlane.f32.xlu0 %v900
        %v902 = vpop.xlane.xlu0 %901
        %v903 = vrot.slane %v902, 4
        %v904 = vadd.f32 %v902, %v903
        %v905 = vrot.slane %v904, 2
        %v906 = vadd.f32 %v904, %v905
        %v907 = vrot.slane %v906, 1
        %v908 = vadd.f32 %v906, %v907
        %s909 = vtos %v908
        %910 = vmatprep.subr.mxu0 0.0
        %911 = vmatpush1.msra.mxu0 %v638
        %912 = vmatprep.subr.mxu0 0.0
        %913 = vmatpush1.msra.mxu0 %v643
        %914 = vmatprep.subr.mxu0 0.0
        %915 = vmatpush1.msra.mxu0 0.0
        %916 = vmatprep.subr.mxu0 0.0
        %917 = vmatpush1.msra.mxu0 0.0
        %918 = vmatprep.subr.mxu0 0.0
        %919 = vmatpush1.msra.mxu0 0.0
        %920 = vmatprep.subr.mxu0 0.0
        %921 = vmatpush1.msra.mxu0 0.0
        %922 = vmatprep.subr.mxu0 0.0
        %923 = vmatpush1.msra.mxu0 0.0
        %924 = vmatprep.subr.mxu0 0.0
        %925 = vmatpush1.msra.mxu0 0.0
        %926 = vmatprep.subr.mxu0 0.0
        %927 = vmatpush1.msra.mxu0 0.0
        %928 = vmatprep.subr.mxu0 0.0
        %929 = vmatpush1.msra.mxu0 0.0
        %930 = vmatprep.subr.mxu0 0.0
        %931 = vmatpush1.msra.mxu0 0.0
        %932 = vmatprep.subr.mxu0 0.0
        %933 = vmatpush1.msra.mxu0 0.0
        %934 = vmatprep.subr.mxu0 0.0
        %935 = vmatpush1.msra.mxu0 0.0
        %936 = vmatprep.subr.mxu0 0.0
        %937 = vmatpush1.msra.mxu0 0.0
        %938 = vmatprep.subr.mxu0 0.0
        %939 = vmatpush1.msra.mxu0 0.0
        %940 = vmatprep.subr.mxu0 0.0
        %941 = vmatpush1.msra.mxu0 0.0
        %942 = vmatprep.subr.mxu0 0.0
        %943 = vmatpush1.msra.mxu0 0.0
        %944 = vmatprep.subr.mxu0 0.0
        %945 = vmatpush1.msra.mxu0 0.0
        %946 = vmatprep.subr.mxu0 0.0
        %947 = vmatpush1.msra.mxu0 0.0
        %948 = vmatprep.subr.mxu0 0.0
        %949 = vmatpush1.msra.mxu0 0.0
        %950 = vmatprep.subr.mxu0 0.0
        %951 = vmatpush1.msra.mxu0 0.0
        %952 = vmatprep.subr.mxu0 0.0
        %953 = vmatpush1.msra.mxu0 0.0
        %954 = vmatprep.subr.mxu0 0.0
        %955 = vmatpush1.msra.mxu0 0.0
        %956 = vmatprep.subr.mxu0 0.0
        %957 = vmatpush1.msra.mxu0 0.0
        %958 = vmatprep.subr.mxu0 0.0
        %959 = vmatpush1.msra.mxu0 0.0
        %960 = vmatprep.subr.mxu0 0.0
        %961 = vmatpush1.msra.mxu0 0.0
        %962 = vmatprep.subr.mxu0 0.0
        %963 = vmatpush1.msra.mxu0 0.0
        %964 = vmatprep.subr.mxu0 0.0
        %965 = vmatpush1.msra.mxu0 0.0
        %966 = vmatprep.subr.mxu0 0.0
        %967 = vmatpush1.msra.mxu0 0.0
        %968 = vmatprep.subr.mxu0 0.0
        %969 = vmatpush1.msra.mxu0 0.0
        %970 = vmatprep.subr.mxu0 0.0
        %971 = vmatpush1.msra.mxu0 0.0
        %972 = vmatprep.subr.mxu0 0.0
        %973 = vmatpush1.msra.mxu0 0.0
        %974 = vmatprep.mubr.f32.mxu0 0.0
        %975 = vmatmul.mubr.f32.gmra.mrb[0].mxu0 %v733
        %v976 = vpop.f32.mrb[0].mxu0
        %v977 = vadd.f32 0.0, %v976
        %v978 = vpop.f32.mrb[0].mxu0
        %979 = vmatprep.mubr.f32.mxu0 0.0
        %980 = vmatmul.mubr.f32.gmra.mrb[0].mxu0 %v736
        %v981 = vpop.f32.mrb[0].mxu0
        %v982 = vadd.f32 0.0, %v981
        %v983 = vpop.f32.mrb[0].mxu0
        %984 = vdwg.mxu0
        %985 = vmatprep.subr.mxu0 0.0
        %986 = vmatpush1.msra.mxu0 %v723
        %987 = vmatprep.subr.mxu0 0.0
        %988 = vmatpush1.msra.mxu0 %v728
        %989 = vmatprep.subr.mxu0 0.0
        %990 = vmatpush1.msra.mxu0 0.0
        %991 = vmatprep.subr.mxu0 0.0
        %992 = vmatpush1.msra.mxu0 0.0
        %993 = vmatprep.subr.mxu0 0.0
        %994 = vmatpush1.msra.mxu0 0.0
        %995 = vmatprep.subr.mxu0 0.0
        %996 = vmatpush1.msra.mxu0 0.0
        %997 = vmatprep.subr.mxu0 0.0
        %998 = vmatpush1.msra.mxu0 0.0
        %999 = vmatprep.subr.mxu0 0.0
        %1000 = vmatpush1.msra.mxu0 0.0
        %1001 = vmatprep.subr.mxu0 0.0
        %1002 = vmatpush1.msra.mxu0 0.0
        %1003 = vmatprep.subr.mxu0 0.0
        %1004 = vmatpush1.msra.mxu0 0.0
        %1005 = vmatprep.subr.mxu0 0.0
        %1006 = vmatpush1.msra.mxu0 0.0
        %1007 = vmatprep.subr.mxu0 0.0
        %1008 = vmatpush1.msra.mxu0 0.0
        %1009 = vmatprep.subr.mxu0 0.0
        %1010 = vmatpush1.msra.mxu0 0.0
        %1011 = vmatprep.subr.mxu0 0.0
        %1012 = vmatpush1.msra.mxu0 0.0
        %1013 = vmatprep.subr.mxu0 0.0
        %1014 = vmatpush1.msra.mxu0 0.0
        %1015 = vmatprep.subr.mxu0 0.0
        %1016 = vmatpush1.msra.mxu0 0.0
        %1017 = vmatprep.subr.mxu0 0.0
        %1018 = vmatpush1.msra.mxu0 0.0
        %1019 = vmatprep.subr.mxu0 0.0
        %1020 = vmatpush1.msra.mxu0 0.0
        %1021 = vmatprep.subr.mxu0 0.0
        %1022 = vmatpush1.msra.mxu0 0.0
        %1023 = vmatprep.subr.mxu0 0.0
        %1024 = vmatpush1.msra.mxu0 0.0
        %1025 = vmatprep.subr.mxu0 0.0
        %1026 = vmatpush1.msra.mxu0 0.0
        %1027 = vmatprep.subr.mxu0 0.0
        %1028 = vmatpush1.msra.mxu0 0.0
        %1029 = vmatprep.subr.mxu0 0.0
        %1030 = vmatpush1.msra.mxu0 0.0
        %1031 = vmatprep.subr.mxu0 0.0
        %1032 = vmatpush1.msra.mxu0 0.0
        %1033 = vmatprep.subr.mxu0 0.0
        %1034 = vmatpush1.msra.mxu0 0.0
        %1035 = vmatprep.subr.mxu0 0.0
        %1036 = vmatpush1.msra.mxu0 0.0
        %1037 = vmatprep.subr.mxu0 0.0
        %1038 = vmatpush1.msra.mxu0 0.0
        %1039 = vmatprep.subr.mxu0 0.0
        %1040 = vmatpush1.msra.mxu0 0.0
        %1041 = vmatprep.subr.mxu0 0.0
        %1042 = vmatpush1.msra.mxu0 0.0
        %1043 = vmatprep.subr.mxu0 0.0
        %1044 = vmatpush1.msra.mxu0 0.0
        %1045 = vmatprep.subr.mxu0 0.0
        %1046 = vmatpush1.msra.mxu0 0.0
        %1047 = vmatprep.subr.mxu0 0.0
        %1048 = vmatpush1.msra.mxu0 0.0
        %1049 = vmatprep.mubr.f32.mxu0 0.0
        %1050 = vmatmul.mubr.f32.gmra.mrb[0].mxu0 %v814
        %v1051 = vpop.f32.mrb[0].mxu0
        %v1052 = vadd.f32 0.0, %v1051
        %v1053 = vpop.f32.mrb[0].mxu0
        %1054 = vmatprep.mubr.f32.mxu0 0.0
        %1055 = vmatmul.mubr.f32.gmra.mrb[0].mxu0 %v817
        %v1056 = vpop.f32.mrb[0].mxu0
        %v1057 = vadd.f32 0.0, %v1056
        %v1058 = vpop.f32.mrb[0].mxu0
        %1059 = vdwg.mxu0
        %v1060 = vand.u32 2147483647, %v977
        %v1061 = vand.u32 2147483647, %v982
        %v1062 = vand.u32 2147483647, %v1052
        %v1063 = vand.u32 2147483647, %v1057
        %v1064 = vadd.f32 %v1060, %v1062
        %v1065 = vadd.f32 %v1061, %v1063
        %v1066 = vadd.f32 %v1064, %v1065
        %1067 = vadd.xlane.f32.xlu0 %v1066
        %v1068 = vpop.xlane.xlu0 %1067
        %v1069 = vrot.slane %v1068, 4
        %v1070 = vadd.f32 %v1068, %v1069
        %v1071 = vrot.slane %v1070, 2
        %v1072 = vadd.f32 %v1070, %v1071
        %v1073 = vrot.slane %v1072, 1
        %v1074 = vadd.f32 %v1072, %v1073
        %s1075 = vtos %v1074
        %s1076 = sadd.f32 %s909, 0.0
        %s1077 = sadd.f32 %s1075, 0.0
        %v1078 = vmul.f32 %v559, %v559
        %v1079 = vmul.f32 %v560, %v560
        %v1080 = vmul.f32 %v555, %v555
        %v1081 = vmul.f32 %v556, %v556
        %v1082 = vmul.f32 %v555, %v559
        %v1083 = vmul.f32 %v556, %v560
        %v1084 = vmul.f32 %v557, %v557
        %v1085 = vmul.f32 %v558, %v558
        %v1086 = vmul.f32 %v557, %v559
        %v1087 = vmul.f32 %v558, %v560
        %v1089 = vsel %vm731, %v517, 0
        %v1092 = vsel %vm731, %v518, 0
        %1094 = vmatprep.subr.mxu0 %v1078
        %1095 = vmatpush1.msra.mxu0 %v559
        %1096 = vmatprep.subr.mxu0 %v1079
        %1097 = vmatpush1.msra.mxu0 %v560
        %1098 = vmatprep.subr.mxu0 0.0
        %1099 = vmatpush1.msra.mxu0 0.0
        %1100 = vmatprep.subr.mxu0 0.0
        %1101 = vmatpush1.msra.mxu0 0.0
        %1102 = vmatprep.subr.mxu0 0.0
        %1103 = vmatpush1.msra.mxu0 0.0
        %1104 = vmatprep.subr.mxu0 0.0
        %1105 = vmatpush1.msra.mxu0 0.0
        %1106 = vmatprep.subr.mxu0 0.0
        %1107 = vmatpush1.msra.mxu0 0.0
        %1108 = vmatprep.subr.mxu0 0.0
        %1109 = vmatpush1.msra.mxu0 0.0
        %1110 = vmatprep.subr.mxu0 0.0
        %1111 = vmatpush1.msra.mxu0 0.0
        %1112 = vmatprep.subr.mxu0 0.0
        %1113 = vmatpush1.msra.mxu0 0.0
        %1114 = vmatprep.subr.mxu0 0.0
        %1115 = vmatpush1.msra.mxu0 0.0
        %1116 = vmatprep.subr.mxu0 0.0
        %1117 = vmatpush1.msra.mxu0 0.0
        %1118 = vmatprep.subr.mxu0 0.0
        %1119 = vmatpush1.msra.mxu0 0.0
        %1120 = vmatprep.subr.mxu0 0.0
        %1121 = vmatpush1.msra.mxu0 0.0
        %1122 = vmatprep.subr.mxu0 0.0
        %1123 = vmatpush1.msra.mxu0 0.0
        %1124 = vmatprep.subr.mxu0 0.0
        %1125 = vmatpush1.msra.mxu0 0.0
        %1126 = vmatprep.subr.mxu0 0.0
        %1127 = vmatpush1.msra.mxu0 0.0
        %1128 = vmatprep.subr.mxu0 0.0
        %1129 = vmatpush1.msra.mxu0 0.0
        %1130 = vmatprep.subr.mxu0 0.0
        %1131 = vmatpush1.msra.mxu0 0.0
        %1132 = vmatprep.subr.mxu0 0.0
        %1133 = vmatpush1.msra.mxu0 0.0
        %1134 = vmatprep.subr.mxu0 0.0
        %1135 = vmatpush1.msra.mxu0 0.0
        %1136 = vmatprep.subr.mxu0 0.0
        %1137 = vmatpush1.msra.mxu0 0.0
        %1138 = vmatprep.subr.mxu0 0.0
        %1139 = vmatpush1.msra.mxu0 0.0
        %1140 = vmatprep.subr.mxu0 0.0
        %1141 = vmatpush1.msra.mxu0 0.0
        %1142 = vmatprep.subr.mxu0 0.0
        %1143 = vmatpush1.msra.mxu0 0.0
        %1144 = vmatprep.subr.mxu0 0.0
        %1145 = vmatpush1.msra.mxu0 0.0
        %1146 = vmatprep.subr.mxu0 0.0
        %1147 = vmatpush1.msra.mxu0 0.0
        %1148 = vmatprep.subr.mxu0 0.0
        %1149 = vmatpush1.msra.mxu0 0.0
        %1150 = vmatprep.subr.mxu0 0.0
        %1151 = vmatpush1.msra.mxu0 0.0
        %1152 = vmatprep.subr.mxu0 0.0
        %1153 = vmatpush1.msra.mxu0 0.0
        %1154 = vmatprep.subr.mxu0 0.0
        %1155 = vmatpush1.msra.mxu0 0.0
        %1156 = vmatprep.subr.mxu0 0.0
        %1157 = vmatpush1.msra.mxu0 0.0
        %1158 = vmatprep.mubr.f32.mxu0 0.0
        %1159 = vmatmul.mubr.f32.gmra.mrb[0].mxu0 %v1089
        %v1160 = vpop.f32.mrb[0].mxu0
        %v1161 = vadd.f32 0.0, %v1160
        %v1162 = vpop.f32.mrb[0].mxu0
        %v1163 = vadd.f32 0.0, %v1162
        %1164 = vmatprep.mubr.f32.mxu0 0.0
        %1165 = vmatmul.mubr.f32.gmra.mrb[0].mxu0 %v1092
        %v1166 = vpop.f32.mrb[0].mxu0
        %v1167 = vadd.f32 0.0, %v1166
        %v1168 = vpop.f32.mrb[0].mxu0
        %v1169 = vadd.f32 0.0, %v1168
        %1170 = vdwg.mxu0
        %1171 = vmatprep.subr.mxu0 %v1080
        %1172 = vmatpush1.msra.mxu0 %v555
        %1173 = vmatprep.subr.mxu0 %v1081
        %1174 = vmatpush1.msra.mxu0 %v556
        %1175 = vmatprep.subr.mxu0 0.0
        %1176 = vmatpush1.msra.mxu0 0.0
        %1177 = vmatprep.subr.mxu0 0.0
        %1178 = vmatpush1.msra.mxu0 0.0
        %1179 = vmatprep.subr.mxu0 0.0
        %1180 = vmatpush1.msra.mxu0 0.0
        %1181 = vmatprep.subr.mxu0 0.0
        %1182 = vmatpush1.msra.mxu0 0.0
        %1183 = vmatprep.subr.mxu0 0.0
        %1184 = vmatpush1.msra.mxu0 0.0
        %1185 = vmatprep.subr.mxu0 0.0
        %1186 = vmatpush1.msra.mxu0 0.0
        %1187 = vmatprep.subr.mxu0 0.0
        %1188 = vmatpush1.msra.mxu0 0.0
        %1189 = vmatprep.subr.mxu0 0.0
        %1190 = vmatpush1.msra.mxu0 0.0
        %1191 = vmatprep.subr.mxu0 0.0
        %1192 = vmatpush1.msra.mxu0 0.0
        %1193 = vmatprep.subr.mxu0 0.0
        %1194 = vmatpush1.msra.mxu0 0.0
        %1195 = vmatprep.subr.mxu0 0.0
        %1196 = vmatpush1.msra.mxu0 0.0
        %1197 = vmatprep.subr.mxu0 0.0
        %1198 = vmatpush1.msra.mxu0 0.0
        %1199 = vmatprep.subr.mxu0 0.0
        %1200 = vmatpush1.msra.mxu0 0.0
        %1201 = vmatprep.subr.mxu0 0.0
        %1202 = vmatpush1.msra.mxu0 0.0
        %1203 = vmatprep.subr.mxu0 0.0
        %1204 = vmatpush1.msra.mxu0 0.0
        %1205 = vmatprep.subr.mxu0 0.0
        %1206 = vmatpush1.msra.mxu0 0.0
        %1207 = vmatprep.subr.mxu0 0.0
        %1208 = vmatpush1.msra.mxu0 0.0
        %1209 = vmatprep.subr.mxu0 0.0
        %1210 = vmatpush1.msra.mxu0 0.0
        %1211 = vmatprep.subr.mxu0 0.0
        %1212 = vmatpush1.msra.mxu0 0.0
        %1213 = vmatprep.subr.mxu0 0.0
        %1214 = vmatpush1.msra.mxu0 0.0
        %1215 = vmatprep.subr.mxu0 0.0
        %1216 = vmatpush1.msra.mxu0 0.0
        %1217 = vmatprep.subr.mxu0 0.0
        %1218 = vmatpush1.msra.mxu0 0.0
        %1219 = vmatprep.subr.mxu0 0.0
        %1220 = vmatpush1.msra.mxu0 0.0
        %1221 = vmatprep.subr.mxu0 0.0
        %1222 = vmatpush1.msra.mxu0 0.0
        %1223 = vmatprep.subr.mxu0 0.0
        %1224 = vmatpush1.msra.mxu0 0.0
        %1225 = vmatprep.subr.mxu0 0.0
        %1226 = vmatpush1.msra.mxu0 0.0
        %1227 = vmatprep.subr.mxu0 0.0
        %1228 = vmatpush1.msra.mxu0 0.0
        %1229 = vmatprep.subr.mxu0 0.0
        %1230 = vmatpush1.msra.mxu0 0.0
        %1231 = vmatprep.subr.mxu0 0.0
        %1232 = vmatpush1.msra.mxu0 0.0
        %1233 = vmatprep.subr.mxu0 0.0
        %1234 = vmatpush1.msra.mxu0 0.0
        %1235 = vmatprep.mubr.f32.mxu0 0.0
        %1236 = vmatmul.mubr.f32.gmra.mrb[0].mxu0 %v1089
        %v1237 = vpop.f32.mrb[0].mxu0
        %v1238 = vadd.f32 0.0, %v1237
        %v1239 = vpop.f32.mrb[0].mxu0
        %v1240 = vadd.f32 0.0, %v1239
        %1241 = vmatprep.mubr.f32.mxu0 0.0
        %1242 = vmatmul.mubr.f32.gmra.mrb[0].mxu0 %v1092
        %v1243 = vpop.f32.mrb[0].mxu0
        %v1244 = vadd.f32 0.0, %v1243
        %v1245 = vpop.f32.mrb[0].mxu0
        %v1246 = vadd.f32 0.0, %v1245
        %1247 = vdwg.mxu0
        %1248 = vmatprep.subr.mxu0 %v557
        %1249 = vmatpush1.msra.mxu0 %v1082
        %1250 = vmatprep.subr.mxu0 %v558
        %1251 = vmatpush1.msra.mxu0 %v1083
        %1252 = vmatprep.subr.mxu0 0.0
        %1253 = vmatpush1.msra.mxu0 0.0
        %1254 = vmatprep.subr.mxu0 0.0
        %1255 = vmatpush1.msra.mxu0 0.0
        %1256 = vmatprep.subr.mxu0 0.0
        %1257 = vmatpush1.msra.mxu0 0.0
        %1258 = vmatprep.subr.mxu0 0.0
        %1259 = vmatpush1.msra.mxu0 0.0
        %1260 = vmatprep.subr.mxu0 0.0
        %1261 = vmatpush1.msra.mxu0 0.0
        %1262 = vmatprep.subr.mxu0 0.0
        %1263 = vmatpush1.msra.mxu0 0.0
        %1264 = vmatprep.subr.mxu0 0.0
        %1265 = vmatpush1.msra.mxu0 0.0
        %1266 = vmatprep.subr.mxu0 0.0
        %1267 = vmatpush1.msra.mxu0 0.0
        %1268 = vmatprep.subr.mxu0 0.0
        %1269 = vmatpush1.msra.mxu0 0.0
        %1270 = vmatprep.subr.mxu0 0.0
        %1271 = vmatpush1.msra.mxu0 0.0
        %1272 = vmatprep.subr.mxu0 0.0
        %1273 = vmatpush1.msra.mxu0 0.0
        %1274 = vmatprep.subr.mxu0 0.0
        %1275 = vmatpush1.msra.mxu0 0.0
        %1276 = vmatprep.subr.mxu0 0.0
        %1277 = vmatpush1.msra.mxu0 0.0
        %1278 = vmatprep.subr.mxu0 0.0
        %1279 = vmatpush1.msra.mxu0 0.0
        %1280 = vmatprep.subr.mxu0 0.0
        %1281 = vmatpush1.msra.mxu0 0.0
        %1282 = vmatprep.subr.mxu0 0.0
        %1283 = vmatpush1.msra.mxu0 0.0
        %1284 = vmatprep.subr.mxu0 0.0
        %1285 = vmatpush1.msra.mxu0 0.0
        %1286 = vmatprep.subr.mxu0 0.0
        %1287 = vmatpush1.msra.mxu0 0.0
        %1288 = vmatprep.subr.mxu0 0.0
        %1289 = vmatpush1.msra.mxu0 0.0
        %1290 = vmatprep.subr.mxu0 0.0
        %1291 = vmatpush1.msra.mxu0 0.0
        %1292 = vmatprep.subr.mxu0 0.0
        %1293 = vmatpush1.msra.mxu0 0.0
        %1294 = vmatprep.subr.mxu0 0.0
        %1295 = vmatpush1.msra.mxu0 0.0
        %1296 = vmatprep.subr.mxu0 0.0
        %1297 = vmatpush1.msra.mxu0 0.0
        %1298 = vmatprep.subr.mxu0 0.0
        %1299 = vmatpush1.msra.mxu0 0.0
        %1300 = vmatprep.subr.mxu0 0.0
        %1301 = vmatpush1.msra.mxu0 0.0
        %1302 = vmatprep.subr.mxu0 0.0
        %1303 = vmatpush1.msra.mxu0 0.0
        %1304 = vmatprep.subr.mxu0 0.0
        %1305 = vmatpush1.msra.mxu0 0.0
        %1306 = vmatprep.subr.mxu0 0.0
        %1307 = vmatpush1.msra.mxu0 0.0
        %1308 = vmatprep.subr.mxu0 0.0
        %1309 = vmatpush1.msra.mxu0 0.0
        %1310 = vmatprep.subr.mxu0 0.0
        %1311 = vmatpush1.msra.mxu0 0.0
        %1312 = vmatprep.mubr.f32.mxu0 0.0
        %1313 = vmatmul.mubr.f32.gmra.mrb[0].mxu0 %v1089
        %v1314 = vpop.f32.mrb[0].mxu0
        %v1315 = vadd.f32 0.0, %v1314
        %v1316 = vpop.f32.mrb[0].mxu0
        %v1317 = vadd.f32 0.0, %v1316
        %1318 = vmatprep.mubr.f32.mxu0 0.0
        %1319 = vmatmul.mubr.f32.gmra.mrb[0].mxu0 %v1092
        %v1320 = vpop.f32.mrb[0].mxu0
        %v1321 = vadd.f32 0.0, %v1320
        %v1322 = vpop.f32.mrb[0].mxu0
        %v1323 = vadd.f32 0.0, %v1322
        %1324 = vdwg.mxu0
        %1325 = vmatprep.subr.mxu0 %v1086
        %1326 = vmatpush1.msra.mxu0 %v1084
        %1327 = vmatprep.subr.mxu0 %v1087
        %1328 = vmatpush1.msra.mxu0 %v1085
        %1329 = vmatprep.subr.mxu0 0.0
        %1330 = vmatpush1.msra.mxu0 0.0
        %1331 = vmatprep.subr.mxu0 0.0
        %1332 = vmatpush1.msra.mxu0 0.0
        %1333 = vmatprep.subr.mxu0 0.0
        %1334 = vmatpush1.msra.mxu0 0.0
        %1335 = vmatprep.subr.mxu0 0.0
        %1336 = vmatpush1.msra.mxu0 0.0
        %1337 = vmatprep.subr.mxu0 0.0
        %1338 = vmatpush1.msra.mxu0 0.0
        %1339 = vmatprep.subr.mxu0 0.0
        %1340 = vmatpush1.msra.mxu0 0.0
        %1341 = vmatprep.subr.mxu0 0.0
        %1342 = vmatpush1.msra.mxu0 0.0
        %1343 = vmatprep.subr.mxu0 0.0
        %1344 = vmatpush1.msra.mxu0 0.0
        %1345 = vmatprep.subr.mxu0 0.0
        %1346 = vmatpush1.msra.mxu0 0.0
        %1347 = vmatprep.subr.mxu0 0.0
        %1348 = vmatpush1.msra.mxu0 0.0
        %1349 = vmatprep.subr.mxu0 0.0
        %1350 = vmatpush1.msra.mxu0 0.0
        %1351 = vmatprep.subr.mxu0 0.0
        %1352 = vmatpush1.msra.mxu0 0.0
        %1353 = vmatprep.subr.mxu0 0.0
        %1354 = vmatpush1.msra.mxu0 0.0
        %1355 = vmatprep.subr.mxu0 0.0
        %1356 = vmatpush1.msra.mxu0 0.0
        %1357 = vmatprep.subr.mxu0 0.0
        %1358 = vmatpush1.msra.mxu0 0.0
        %1359 = vmatprep.subr.mxu0 0.0
        %1360 = vmatpush1.msra.mxu0 0.0
        %1361 = vmatprep.subr.mxu0 0.0
        %1362 = vmatpush1.msra.mxu0 0.0
        %1363 = vmatprep.subr.mxu0 0.0
        %1364 = vmatpush1.msra.mxu0 0.0
        %1365 = vmatprep.subr.mxu0 0.0
        %1366 = vmatpush1.msra.mxu0 0.0
        %1367 = vmatprep.subr.mxu0 0.0
        %1368 = vmatpush1.msra.mxu0 0.0
        %1369 = vmatprep.subr.mxu0 0.0
        %1370 = vmatpush1.msra.mxu0 0.0
        %1371 = vmatprep.subr.mxu0 0.0
        %1372 = vmatpush1.msra.mxu0 0.0
        %1373 = vmatprep.subr.mxu0 0.0
        %1374 = vmatpush1.msra.mxu0 0.0
        %1375 = vmatprep.subr.mxu0 0.0
        %1376 = vmatpush1.msra.mxu0 0.0
        %1377 = vmatprep.subr.mxu0 0.0
        %1378 = vmatpush1.msra.mxu0 0.0
        %1379 = vmatprep.subr.mxu0 0.0
        %1380 = vmatpush1.msra.mxu0 0.0
        %1381 = vmatprep.subr.mxu0 0.0
        %1382 = vmatpush1.msra.mxu0 0.0
        %1383 = vmatprep.subr.mxu0 0.0
        %1384 = vmatpush1.msra.mxu0 0.0
        %1385 = vmatprep.subr.mxu0 0.0
        %1386 = vmatpush1.msra.mxu0 0.0
        %1387 = vmatprep.subr.mxu0 0.0
        %1388 = vmatpush1.msra.mxu0 0.0
        %1389 = vmatprep.mubr.f32.mxu0 0.0
        %1390 = vmatmul.mubr.f32.gmra.mrb[0].mxu0 %v1089
        %v1391 = vpop.f32.mrb[0].mxu0
        %v1392 = vadd.f32 0.0, %v1391
        %v1393 = vpop.f32.mrb[0].mxu0
        %v1394 = vadd.f32 0.0, %v1393
        %1395 = vmatprep.mubr.f32.mxu0 0.0
        %1396 = vmatmul.mubr.f32.gmra.mrb[0].mxu0 %v1092
        %v1397 = vpop.f32.mrb[0].mxu0
        %v1398 = vadd.f32 0.0, %v1397
        %v1399 = vpop.f32.mrb[0].mxu0
        %v1400 = vadd.f32 0.0, %v1399
        %1401 = vdwg.mxu0
        %1402 = vmatprep.subr.mxu0 0.0
        %1403 = vmatpush1.msra.mxu0 %v501
        %1404 = vmatprep.subr.mxu0 0.0
        %1405 = vmatpush1.msra.mxu0 %v502
        %1406 = vmatprep.subr.mxu0 0.0
        %1407 = vmatpush1.msra.mxu0 %v503
        %1408 = vmatprep.subr.mxu0 0.0
        %1409 = vmatpush1.msra.mxu0 %v504
        %1410 = vmatprep.subr.mxu0 0.0
        %1411 = vmatpush1.msra.mxu0 %v505
        %1412 = vmatprep.subr.mxu0 0.0
        %1413 = vmatpush1.msra.mxu0 %v506
        %1414 = vmatprep.subr.mxu0 0.0
        %1415 = vmatpush1.msra.mxu0 %v507
        %1416 = vmatprep.subr.mxu0 0.0
        %1417 = vmatpush1.msra.mxu0 %v508
        %1418 = vmatprep.subr.mxu0 0.0
        %1419 = vmatpush1.msra.mxu0 %v509
        %1420 = vmatprep.subr.mxu0 0.0
        %1421 = vmatpush1.msra.mxu0 %v510
        %1422 = vmatprep.subr.mxu0 0.0
        %1423 = vmatpush1.msra.mxu0 %v511
        %1424 = vmatprep.subr.mxu0 0.0
        %1425 = vmatpush1.msra.mxu0 %v512
        %1426 = vmatprep.subr.mxu0 0.0
        %1427 = vmatpush1.msra.mxu0 %v513
        %1428 = vmatprep.subr.mxu0 0.0
        %1429 = vmatpush1.msra.mxu0 %v514
        %1430 = vmatprep.subr.mxu0 0.0
        %1431 = vmatpush1.msra.mxu0 %v515
        %1432 = vmatprep.subr.mxu0 0.0
        %1433 = vmatpush1.msra.mxu0 %v516
        %1434 = vmatprep.subr.mxu0 0.0
        %1435 = vmatpush1.msra.mxu0 0.0
        %1436 = vmatprep.subr.mxu0 0.0
        %1437 = vmatpush1.msra.mxu0 0.0
        %1438 = vmatprep.subr.mxu0 0.0
        %1439 = vmatpush1.msra.mxu0 0.0
        %1440 = vmatprep.subr.mxu0 0.0
        %1441 = vmatpush1.msra.mxu0 0.0
        %1442 = vmatprep.subr.mxu0 0.0
        %1443 = vmatpush1.msra.mxu0 0.0
        %1444 = vmatprep.subr.mxu0 0.0
        %1445 = vmatpush1.msra.mxu0 0.0
        %1446 = vmatprep.subr.mxu0 0.0
        %1447 = vmatpush1.msra.mxu0 0.0
        %1448 = vmatprep.subr.mxu0 0.0
        %1449 = vmatpush1.msra.mxu0 0.0
        %1450 = vmatprep.subr.mxu0 0.0
        %1451 = vmatpush1.msra.mxu0 0.0
        %1452 = vmatprep.subr.mxu0 0.0
        %1453 = vmatpush1.msra.mxu0 0.0
        %1454 = vmatprep.subr.mxu0 0.0
        %1455 = vmatpush1.msra.mxu0 0.0
        %1456 = vmatprep.subr.mxu0 0.0
        %1457 = vmatpush1.msra.mxu0 0.0
        %1458 = vmatprep.subr.mxu0 0.0
        %1459 = vmatpush1.msra.mxu0 0.0
        %1460 = vmatprep.subr.mxu0 0.0
        %1461 = vmatpush1.msra.mxu0 0.0
        %1462 = vmatprep.subr.mxu0 0.0
        %1463 = vmatpush1.msra.mxu0 0.0
        %1464 = vmatprep.subr.mxu0 0.0
        %1465 = vmatpush1.msra.mxu0 0.0
        %1466 = vmatprep.mubr.f32.mxu0 0.0
        %1467 = vmatmul.mubr.f32.gmra.mrb[0].mxu0 %v1161
        %v1468 = vpop.f32.mrb[0].mxu0
        %v1469 = vadd.f32 0.0, %v1468
        %v1470 = vpop.f32.mrb[0].mxu0
        %1471 = vmatprep.mubr.f32.mxu0 0.0
        %1472 = vmatmul.mubr.f32.gmra.mrb[0].mxu0 %v1167
        %v1473 = vpop.f32.mrb[0].mxu0
        %v1474 = vadd.f32 0.0, %v1473
        %v1475 = vpop.f32.mrb[0].mxu0
        %1476 = vdwg.mxu0
        %1477 = vmatprep.subr.mxu0 0.0
        %1478 = vmatpush1.msra.mxu0 %v501
        %1479 = vmatprep.subr.mxu0 0.0
        %1480 = vmatpush1.msra.mxu0 %v502
        %1481 = vmatprep.subr.mxu0 0.0
        %1482 = vmatpush1.msra.mxu0 %v503
        %1483 = vmatprep.subr.mxu0 0.0
        %1484 = vmatpush1.msra.mxu0 %v504
        %1485 = vmatprep.subr.mxu0 0.0
        %1486 = vmatpush1.msra.mxu0 %v505
        %1487 = vmatprep.subr.mxu0 0.0
        %1488 = vmatpush1.msra.mxu0 %v506
        %1489 = vmatprep.subr.mxu0 0.0
        %1490 = vmatpush1.msra.mxu0 %v507
        %1491 = vmatprep.subr.mxu0 0.0
        %1492 = vmatpush1.msra.mxu0 %v508
        %1493 = vmatprep.subr.mxu0 0.0
        %1494 = vmatpush1.msra.mxu0 %v509
        %1495 = vmatprep.subr.mxu0 0.0
        %1496 = vmatpush1.msra.mxu0 %v510
        %1497 = vmatprep.subr.mxu0 0.0
        %1498 = vmatpush1.msra.mxu0 %v511
        %1499 = vmatprep.subr.mxu0 0.0
        %1500 = vmatpush1.msra.mxu0 %v512
        %1501 = vmatprep.subr.mxu0 0.0
        %1502 = vmatpush1.msra.mxu0 %v513
        %1503 = vmatprep.subr.mxu0 0.0
        %1504 = vmatpush1.msra.mxu0 %v514
        %1505 = vmatprep.subr.mxu0 0.0
        %1506 = vmatpush1.msra.mxu0 %v515
        %1507 = vmatprep.subr.mxu0 0.0
        %1508 = vmatpush1.msra.mxu0 %v516
        %1509 = vmatprep.subr.mxu0 0.0
        %1510 = vmatpush1.msra.mxu0 0.0
        %1511 = vmatprep.subr.mxu0 0.0
        %1512 = vmatpush1.msra.mxu0 0.0
        %1513 = vmatprep.subr.mxu0 0.0
        %1514 = vmatpush1.msra.mxu0 0.0
        %1515 = vmatprep.subr.mxu0 0.0
        %1516 = vmatpush1.msra.mxu0 0.0
        %1517 = vmatprep.subr.mxu0 0.0
        %1518 = vmatpush1.msra.mxu0 0.0
        %1519 = vmatprep.subr.mxu0 0.0
        %1520 = vmatpush1.msra.mxu0 0.0
        %1521 = vmatprep.subr.mxu0 0.0
        %1522 = vmatpush1.msra.mxu0 0.0
        %1523 = vmatprep.subr.mxu0 0.0
        %1524 = vmatpush1.msra.mxu0 0.0
        %1525 = vmatprep.subr.mxu0 0.0
        %1526 = vmatpush1.msra.mxu0 0.0
        %1527 = vmatprep.subr.mxu0 0.0
        %1528 = vmatpush1.msra.mxu0 0.0
        %1529 = vmatprep.subr.mxu0 0.0
        %1530 = vmatpush1.msra.mxu0 0.0
        %1531 = vmatprep.subr.mxu0 0.0
        %1532 = vmatpush1.msra.mxu0 0.0
        %1533 = vmatprep.subr.mxu0 0.0
        %1534 = vmatpush1.msra.mxu0 0.0
        %1535 = vmatprep.subr.mxu0 0.0
        %1536 = vmatpush1.msra.mxu0 0.0
        %1537 = vmatprep.subr.mxu0 0.0
        %1538 = vmatpush1.msra.mxu0 0.0
        %1539 = vmatprep.subr.mxu0 0.0
        %1540 = vmatpush1.msra.mxu0 0.0
        %1541 = vmatprep.mubr.f32.mxu0 0.0
        %1542 = vmatmul.mubr.f32.gmra.mrb[0].mxu0 %v1163
        %v1543 = vpop.f32.mrb[0].mxu0
        %v1544 = vadd.f32 0.0, %v1543
        %v1545 = vpop.f32.mrb[0].mxu0
        %1546 = vmatprep.mubr.f32.mxu0 0.0
        %1547 = vmatmul.mubr.f32.gmra.mrb[0].mxu0 %v1169
        %v1548 = vpop.f32.mrb[0].mxu0
        %v1549 = vadd.f32 0.0, %v1548
        %v1550 = vpop.f32.mrb[0].mxu0
        %1551 = vdwg.mxu0
        %1552 = vmatprep.subr.mxu0 0.0
        %1553 = vmatpush1.msra.mxu0 %v501
        %1554 = vmatprep.subr.mxu0 0.0
        %1555 = vmatpush1.msra.mxu0 %v502
        %1556 = vmatprep.subr.mxu0 0.0
        %1557 = vmatpush1.msra.mxu0 %v503
        %1558 = vmatprep.subr.mxu0 0.0
        %1559 = vmatpush1.msra.mxu0 %v504
        %1560 = vmatprep.subr.mxu0 0.0
        %1561 = vmatpush1.msra.mxu0 %v505
        %1562 = vmatprep.subr.mxu0 0.0
        %1563 = vmatpush1.msra.mxu0 %v506
        %1564 = vmatprep.subr.mxu0 0.0
        %1565 = vmatpush1.msra.mxu0 %v507
        %1566 = vmatprep.subr.mxu0 0.0
        %1567 = vmatpush1.msra.mxu0 %v508
        %1568 = vmatprep.subr.mxu0 0.0
        %1569 = vmatpush1.msra.mxu0 %v509
        %1570 = vmatprep.subr.mxu0 0.0
        %1571 = vmatpush1.msra.mxu0 %v510
        %1572 = vmatprep.subr.mxu0 0.0
        %1573 = vmatpush1.msra.mxu0 %v511
        %1574 = vmatprep.subr.mxu0 0.0
        %1575 = vmatpush1.msra.mxu0 %v512
        %1576 = vmatprep.subr.mxu0 0.0
        %1577 = vmatpush1.msra.mxu0 %v513
        %1578 = vmatprep.subr.mxu0 0.0
        %1579 = vmatpush1.msra.mxu0 %v514
        %1580 = vmatprep.subr.mxu0 0.0
        %1581 = vmatpush1.msra.mxu0 %v515
        %1582 = vmatprep.subr.mxu0 0.0
        %1583 = vmatpush1.msra.mxu0 %v516
        %1584 = vmatprep.subr.mxu0 0.0
        %1585 = vmatpush1.msra.mxu0 0.0
        %1586 = vmatprep.subr.mxu0 0.0
        %1587 = vmatpush1.msra.mxu0 0.0
        %1588 = vmatprep.subr.mxu0 0.0
        %1589 = vmatpush1.msra.mxu0 0.0
        %1590 = vmatprep.subr.mxu0 0.0
        %1591 = vmatpush1.msra.mxu0 0.0
        %1592 = vmatprep.subr.mxu0 0.0
        %1593 = vmatpush1.msra.mxu0 0.0
        %1594 = vmatprep.subr.mxu0 0.0
        %1595 = vmatpush1.msra.mxu0 0.0
        %1596 = vmatprep.subr.mxu0 0.0
        %1597 = vmatpush1.msra.mxu0 0.0
        %1598 = vmatprep.subr.mxu0 0.0
        %1599 = vmatpush1.msra.mxu0 0.0
        %1600 = vmatprep.subr.mxu0 0.0
        %1601 = vmatpush1.msra.mxu0 0.0
        %1602 = vmatprep.subr.mxu0 0.0
        %1603 = vmatpush1.msra.mxu0 0.0
        %1604 = vmatprep.subr.mxu0 0.0
        %1605 = vmatpush1.msra.mxu0 0.0
        %1606 = vmatprep.subr.mxu0 0.0
        %1607 = vmatpush1.msra.mxu0 0.0
        %1608 = vmatprep.subr.mxu0 0.0
        %1609 = vmatpush1.msra.mxu0 0.0
        %1610 = vmatprep.subr.mxu0 0.0
        %1611 = vmatpush1.msra.mxu0 0.0
        %1612 = vmatprep.subr.mxu0 0.0
        %1613 = vmatpush1.msra.mxu0 0.0
        %1614 = vmatprep.subr.mxu0 0.0
        %1615 = vmatpush1.msra.mxu0 0.0
        %1616 = vmatprep.mubr.f32.mxu0 0.0
        %1617 = vmatmul.mubr.f32.gmra.mrb[0].mxu0 %v1238
        %v1618 = vpop.f32.mrb[0].mxu0
        %v1619 = vadd.f32 0.0, %v1618
        %v1620 = vpop.f32.mrb[0].mxu0
        %1621 = vmatprep.mubr.f32.mxu0 0.0
        %1622 = vmatmul.mubr.f32.gmra.mrb[0].mxu0 %v1244
        %v1623 = vpop.f32.mrb[0].mxu0
        %v1624 = vadd.f32 0.0, %v1623
        %v1625 = vpop.f32.mrb[0].mxu0
        %1626 = vdwg.mxu0
        %1627 = vmatprep.subr.mxu0 0.0
        %1628 = vmatpush1.msra.mxu0 %v501
        %1629 = vmatprep.subr.mxu0 0.0
        %1630 = vmatpush1.msra.mxu0 %v502
        %1631 = vmatprep.subr.mxu0 0.0
        %1632 = vmatpush1.msra.mxu0 %v503
        %1633 = vmatprep.subr.mxu0 0.0
        %1634 = vmatpush1.msra.mxu0 %v504
        %1635 = vmatprep.subr.mxu0 0.0
        %1636 = vmatpush1.msra.mxu0 %v505
        %1637 = vmatprep.subr.mxu0 0.0
        %1638 = vmatpush1.msra.mxu0 %v506
        %1639 = vmatprep.subr.mxu0 0.0
        %1640 = vmatpush1.msra.mxu0 %v507
        %1641 = vmatprep.subr.mxu0 0.0
        %1642 = vmatpush1.msra.mxu0 %v508
        %1643 = vmatprep.subr.mxu0 0.0
        %1644 = vmatpush1.msra.mxu0 %v509
        %1645 = vmatprep.subr.mxu0 0.0
        %1646 = vmatpush1.msra.mxu0 %v510
        %1647 = vmatprep.subr.mxu0 0.0
        %1648 = vmatpush1.msra.mxu0 %v511
        %1649 = vmatprep.subr.mxu0 0.0
        %1650 = vmatpush1.msra.mxu0 %v512
        %1651 = vmatprep.subr.mxu0 0.0
        %1652 = vmatpush1.msra.mxu0 %v513
        %1653 = vmatprep.subr.mxu0 0.0
        %1654 = vmatpush1.msra.mxu0 %v514
        %1655 = vmatprep.subr.mxu0 0.0
        %1656 = vmatpush1.msra.mxu0 %v515
        %1657 = vmatprep.subr.mxu0 0.0
        %1658 = vmatpush1.msra.mxu0 %v516
        %1659 = vmatprep.subr.mxu0 0.0
        %1660 = vmatpush1.msra.mxu0 0.0
        %1661 = vmatprep.subr.mxu0 0.0
        %1662 = vmatpush1.msra.mxu0 0.0
        %1663 = vmatprep.subr.mxu0 0.0
        %1664 = vmatpush1.msra.mxu0 0.0
        %1665 = vmatprep.subr.mxu0 0.0
        %1666 = vmatpush1.msra.mxu0 0.0
        %1667 = vmatprep.subr.mxu0 0.0
        %1668 = vmatpush1.msra.mxu0 0.0
        %1669 = vmatprep.subr.mxu0 0.0
        %1670 = vmatpush1.msra.mxu0 0.0
        %1671 = vmatprep.subr.mxu0 0.0
        %1672 = vmatpush1.msra.mxu0 0.0
        %1673 = vmatprep.subr.mxu0 0.0
        %1674 = vmatpush1.msra.mxu0 0.0
        %1675 = vmatprep.subr.mxu0 0.0
        %1676 = vmatpush1.msra.mxu0 0.0
        %1677 = vmatprep.subr.mxu0 0.0
        %1678 = vmatpush1.msra.mxu0 0.0
        %1679 = vmatprep.subr.mxu0 0.0
        %1680 = vmatpush1.msra.mxu0 0.0
        %1681 = vmatprep.subr.mxu0 0.0
        %1682 = vmatpush1.msra.mxu0 0.0
        %1683 = vmatprep.subr.mxu0 0.0
        %1684 = vmatpush1.msra.mxu0 0.0
        %1685 = vmatprep.subr.mxu0 0.0
        %1686 = vmatpush1.msra.mxu0 0.0
        %1687 = vmatprep.subr.mxu0 0.0
        %1688 = vmatpush1.msra.mxu0 0.0
        %1689 = vmatprep.subr.mxu0 0.0
        %1690 = vmatpush1.msra.mxu0 0.0
        %1691 = vmatprep.mubr.f32.mxu0 0.0
        %1692 = vmatmul.mubr.f32.gmra.mrb[0].mxu0 %v1240
        %v1693 = vpop.f32.mrb[0].mxu0
        %v1694 = vadd.f32 0.0, %v1693
        %v1695 = vpop.f32.mrb[0].mxu0
        %1696 = vmatprep.mubr.f32.mxu0 0.0
        %1697 = vmatmul.mubr.f32.gmra.mrb[0].mxu0 %v1246
        %v1698 = vpop.f32.mrb[0].mxu0
        %v1699 = vadd.f32 0.0, %v1698
        %v1700 = vpop.f32.mrb[0].mxu0
        %1701 = vdwg.mxu0
        %1702 = vmatprep.subr.mxu0 0.0
        %1703 = vmatpush1.msra.mxu0 %v501
        %1704 = vmatprep.subr.mxu0 0.0
        %1705 = vmatpush1.msra.mxu0 %v502
        %1706 = vmatprep.subr.mxu0 0.0
        %1707 = vmatpush1.msra.mxu0 %v503
        %1708 = vmatprep.subr.mxu0 0.0
        %1709 = vmatpush1.msra.mxu0 %v504
        %1710 = vmatprep.subr.mxu0 0.0
        %1711 = vmatpush1.msra.mxu0 %v505
        %1712 = vmatprep.subr.mxu0 0.0
        %1713 = vmatpush1.msra.mxu0 %v506
        %1714 = vmatprep.subr.mxu0 0.0
        %1715 = vmatpush1.msra.mxu0 %v507
        %1716 = vmatprep.subr.mxu0 0.0
        %1717 = vmatpush1.msra.mxu0 %v508
        %1718 = vmatprep.subr.mxu0 0.0
        %1719 = vmatpush1.msra.mxu0 %v509
        %1720 = vmatprep.subr.mxu0 0.0
        %1721 = vmatpush1.msra.mxu0 %v510
        %1722 = vmatprep.subr.mxu0 0.0
        %1723 = vmatpush1.msra.mxu0 %v511
        %1724 = vmatprep.subr.mxu0 0.0
        %1725 = vmatpush1.msra.mxu0 %v512
        %1726 = vmatprep.subr.mxu0 0.0
        %1727 = vmatpush1.msra.mxu0 %v513
        %1728 = vmatprep.subr.mxu0 0.0
        %1729 = vmatpush1.msra.mxu0 %v514
        %1730 = vmatprep.subr.mxu0 0.0
        %1731 = vmatpush1.msra.mxu0 %v515
        %1732 = vmatprep.subr.mxu0 0.0
        %1733 = vmatpush1.msra.mxu0 %v516
        %1734 = vmatprep.subr.mxu0 0.0
        %1735 = vmatpush1.msra.mxu0 0.0
        %1736 = vmatprep.subr.mxu0 0.0
        %1737 = vmatpush1.msra.mxu0 0.0
        %1738 = vmatprep.subr.mxu0 0.0
        %1739 = vmatpush1.msra.mxu0 0.0
        %1740 = vmatprep.subr.mxu0 0.0
        %1741 = vmatpush1.msra.mxu0 0.0
        %1742 = vmatprep.subr.mxu0 0.0
        %1743 = vmatpush1.msra.mxu0 0.0
        %1744 = vmatprep.subr.mxu0 0.0
        %1745 = vmatpush1.msra.mxu0 0.0
        %1746 = vmatprep.subr.mxu0 0.0
        %1747 = vmatpush1.msra.mxu0 0.0
        %1748 = vmatprep.subr.mxu0 0.0
        %1749 = vmatpush1.msra.mxu0 0.0
        %1750 = vmatprep.subr.mxu0 0.0
        %1751 = vmatpush1.msra.mxu0 0.0
        %1752 = vmatprep.subr.mxu0 0.0
        %1753 = vmatpush1.msra.mxu0 0.0
        %1754 = vmatprep.subr.mxu0 0.0
        %1755 = vmatpush1.msra.mxu0 0.0
        %1756 = vmatprep.subr.mxu0 0.0
        %1757 = vmatpush1.msra.mxu0 0.0
        %1758 = vmatprep.subr.mxu0 0.0
        %1759 = vmatpush1.msra.mxu0 0.0
        %1760 = vmatprep.subr.mxu0 0.0
        %1761 = vmatpush1.msra.mxu0 0.0
        %1762 = vmatprep.subr.mxu0 0.0
        %1763 = vmatpush1.msra.mxu0 0.0
        %1764 = vmatprep.subr.mxu0 0.0
        %1765 = vmatpush1.msra.mxu0 0.0
        %1766 = vmatprep.mubr.f32.mxu0 0.0
        %1767 = vmatmul.mubr.f32.gmra.mrb[0].mxu0 %v1315
        %v1768 = vpop.f32.mrb[0].mxu0
        %v1769 = vadd.f32 0.0, %v1768
        %v1770 = vpop.f32.mrb[0].mxu0
        %1771 = vmatprep.mubr.f32.mxu0 0.0
        %1772 = vmatmul.mubr.f32.gmra.mrb[0].mxu0 %v1321
        %v1773 = vpop.f32.mrb[0].mxu0
        %v1774 = vadd.f32 0.0, %v1773
        %v1775 = vpop.f32.mrb[0].mxu0
        %1776 = vdwg.mxu0
        %1777 = vmatprep.subr.mxu0 0.0
        %1778 = vmatpush1.msra.mxu0 %v501
        %1779 = vmatprep.subr.mxu0 0.0
        %1780 = vmatpush1.msra.mxu0 %v502
        %1781 = vmatprep.subr.mxu0 0.0
        %1782 = vmatpush1.msra.mxu0 %v503
        %1783 = vmatprep.subr.mxu0 0.0
        %1784 = vmatpush1.msra.mxu0 %v504
        %1785 = vmatprep.subr.mxu0 0.0
        %1786 = vmatpush1.msra.mxu0 %v505
        %1787 = vmatprep.subr.mxu0 0.0
        %1788 = vmatpush1.msra.mxu0 %v506
        %1789 = vmatprep.subr.mxu0 0.0
        %1790 = vmatpush1.msra.mxu0 %v507
        %1791 = vmatprep.subr.mxu0 0.0
        %1792 = vmatpush1.msra.mxu0 %v508
        %1793 = vmatprep.subr.mxu0 0.0
        %1794 = vmatpush1.msra.mxu0 %v509
        %1795 = vmatprep.subr.mxu0 0.0
        %1796 = vmatpush1.msra.mxu0 %v510
        %1797 = vmatprep.subr.mxu0 0.0
        %1798 = vmatpush1.msra.mxu0 %v511
        %1799 = vmatprep.subr.mxu0 0.0
        %1800 = vmatpush1.msra.mxu0 %v512
        %1801 = vmatprep.subr.mxu0 0.0
        %1802 = vmatpush1.msra.mxu0 %v513
        %1803 = vmatprep.subr.mxu0 0.0
        %1804 = vmatpush1.msra.mxu0 %v514
        %1805 = vmatprep.subr.mxu0 0.0
        %1806 = vmatpush1.msra.mxu0 %v515
        %1807 = vmatprep.subr.mxu0 0.0
        %1808 = vmatpush1.msra.mxu0 %v516
        %1809 = vmatprep.subr.mxu0 0.0
        %1810 = vmatpush1.msra.mxu0 0.0
        %1811 = vmatprep.subr.mxu0 0.0
        %1812 = vmatpush1.msra.mxu0 0.0
        %1813 = vmatprep.subr.mxu0 0.0
        %1814 = vmatpush1.msra.mxu0 0.0
        %1815 = vmatprep.subr.mxu0 0.0
        %1816 = vmatpush1.msra.mxu0 0.0
        %1817 = vmatprep.subr.mxu0 0.0
        %1818 = vmatpush1.msra.mxu0 0.0
        %1819 = vmatprep.subr.mxu0 0.0
        %1820 = vmatpush1.msra.mxu0 0.0
        %1821 = vmatprep.subr.mxu0 0.0
        %1822 = vmatpush1.msra.mxu0 0.0
        %1823 = vmatprep.subr.mxu0 0.0
        %1824 = vmatpush1.msra.mxu0 0.0
        %1825 = vmatprep.subr.mxu0 0.0
        %1826 = vmatpush1.msra.mxu0 0.0
        %1827 = vmatprep.subr.mxu0 0.0
        %1828 = vmatpush1.msra.mxu0 0.0
        %1829 = vmatprep.subr.mxu0 0.0
        %1830 = vmatpush1.msra.mxu0 0.0
        %1831 = vmatprep.subr.mxu0 0.0
        %1832 = vmatpush1.msra.mxu0 0.0
        %1833 = vmatprep.subr.mxu0 0.0
        %1834 = vmatpush1.msra.mxu0 0.0
        %1835 = vmatprep.subr.mxu0 0.0
        %1836 = vmatpush1.msra.mxu0 0.0
        %1837 = vmatprep.subr.mxu0 0.0
        %1838 = vmatpush1.msra.mxu0 0.0
        %1839 = vmatprep.subr.mxu0 0.0
        %1840 = vmatpush1.msra.mxu0 0.0
        %1841 = vmatprep.mubr.f32.mxu0 0.0
        %1842 = vmatmul.mubr.f32.gmra.mrb[0].mxu0 %v1317
        %v1843 = vpop.f32.mrb[0].mxu0
        %v1844 = vadd.f32 0.0, %v1843
        %v1845 = vpop.f32.mrb[0].mxu0
        %1846 = vmatprep.mubr.f32.mxu0 0.0
        %1847 = vmatmul.mubr.f32.gmra.mrb[0].mxu0 %v1323
        %v1848 = vpop.f32.mrb[0].mxu0
        %v1849 = vadd.f32 0.0, %v1848
        %v1850 = vpop.f32.mrb[0].mxu0
        %1851 = vdwg.mxu0
        %1852 = vmatprep.subr.mxu0 0.0
        %1853 = vmatpush1.msra.mxu0 %v501
        %1854 = vmatprep.subr.mxu0 0.0
        %1855 = vmatpush1.msra.mxu0 %v502
        %1856 = vmatprep.subr.mxu0 0.0
        %1857 = vmatpush1.msra.mxu0 %v503
        %1858 = vmatprep.subr.mxu0 0.0
        %1859 = vmatpush1.msra.mxu0 %v504
        %1860 = vmatprep.subr.mxu0 0.0
        %1861 = vmatpush1.msra.mxu0 %v505
        %1862 = vmatprep.subr.mxu0 0.0
        %1863 = vmatpush1.msra.mxu0 %v506
        %1864 = vmatprep.subr.mxu0 0.0
        %1865 = vmatpush1.msra.mxu0 %v507
        %1866 = vmatprep.subr.mxu0 0.0
        %1867 = vmatpush1.msra.mxu0 %v508
        %1868 = vmatprep.subr.mxu0 0.0
        %1869 = vmatpush1.msra.mxu0 %v509
        %1870 = vmatprep.subr.mxu0 0.0
        %1871 = vmatpush1.msra.mxu0 %v510
        %1872 = vmatprep.subr.mxu0 0.0
        %1873 = vmatpush1.msra.mxu0 %v511
        %1874 = vmatprep.subr.mxu0 0.0
        %1875 = vmatpush1.msra.mxu0 %v512
        %1876 = vmatprep.subr.mxu0 0.0
        %1877 = vmatpush1.msra.mxu0 %v513
        %1878 = vmatprep.subr.mxu0 0.0
        %1879 = vmatpush1.msra.mxu0 %v514
        %1880 = vmatprep.subr.mxu0 0.0
        %1881 = vmatpush1.msra.mxu0 %v515
        %1882 = vmatprep.subr.mxu0 0.0
        %1883 = vmatpush1.msra.mxu0 %v516
        %1884 = vmatprep.subr.mxu0 0.0
        %1885 = vmatpush1.msra.mxu0 0.0
        %1886 = vmatprep.subr.mxu0 0.0
        %1887 = vmatpush1.msra.mxu0 0.0
        %1888 = vmatprep.subr.mxu0 0.0
        %1889 = vmatpush1.msra.mxu0 0.0
        %1890 = vmatprep.subr.mxu0 0.0
        %1891 = vmatpush1.msra.mxu0 0.0
        %1892 = vmatprep.subr.mxu0 0.0
        %1893 = vmatpush1.msra.mxu0 0.0
        %1894 = vmatprep.subr.mxu0 0.0
        %1895 = vmatpush1.msra.mxu0 0.0
        %1896 = vmatprep.subr.mxu0 0.0
        %1897 = vmatpush1.msra.mxu0 0.0
        %1898 = vmatprep.subr.mxu0 0.0
        %1899 = vmatpush1.msra.mxu0 0.0
        %1900 = vmatprep.subr.mxu0 0.0
        %1901 = vmatpush1.msra.mxu0 0.0
        %1902 = vmatprep.subr.mxu0 0.0
        %1903 = vmatpush1.msra.mxu0 0.0
        %1904 = vmatprep.subr.mxu0 0.0
        %1905 = vmatpush1.msra.mxu0 0.0
        %1906 = vmatprep.subr.mxu0 0.0
        %1907 = vmatpush1.msra.mxu0 0.0
        %1908 = vmatprep.subr.mxu0 0.0
        %1909 = vmatpush1.msra.mxu0 0.0
        %1910 = vmatprep.subr.mxu0 0.0
        %1911 = vmatpush1.msra.mxu0 0.0
        %1912 = vmatprep.subr.mxu0 0.0
        %1913 = vmatpush1.msra.mxu0 0.0
        %1914 = vmatprep.subr.mxu0 0.0
        %1915 = vmatpush1.msra.mxu0 0.0
        %1916 = vmatprep.mubr.f32.mxu0 0.0
        %1917 = vmatmul.mubr.f32.gmra.mrb[0].mxu0 %v1392
        %v1918 = vpop.f32.mrb[0].mxu0
        %v1919 = vadd.f32 0.0, %v1918
        %v1920 = vpop.f32.mrb[0].mxu0
        %1921 = vmatprep.mubr.f32.mxu0 0.0
        %1922 = vmatmul.mubr.f32.gmra.mrb[0].mxu0 %v1398
        %v1923 = vpop.f32.mrb[0].mxu0
        %v1924 = vadd.f32 0.0, %v1923
        %v1925 = vpop.f32.mrb[0].mxu0
        %1926 = vdwg.mxu0
        %1927 = vmatprep.subr.mxu0 0.0
        %1928 = vmatpush1.msra.mxu0 %v501
        %1929 = vmatprep.subr.mxu0 0.0
        %1930 = vmatpush1.msra.mxu0 %v502
        %1931 = vmatprep.subr.mxu0 0.0
        %1932 = vmatpush1.msra.mxu0 %v503
        %1933 = vmatprep.subr.mxu0 0.0
        %1934 = vmatpush1.msra.mxu0 %v504
        %1935 = vmatprep.subr.mxu0 0.0
        %1936 = vmatpush1.msra.mxu0 %v505
        %1937 = vmatprep.subr.mxu0 0.0
        %1938 = vmatpush1.msra.mxu0 %v506
        %1939 = vmatprep.subr.mxu0 0.0
        %1940 = vmatpush1.msra.mxu0 %v507
        %1941 = vmatprep.subr.mxu0 0.0
        %1942 = vmatpush1.msra.mxu0 %v508
        %1943 = vmatprep.subr.mxu0 0.0
        %1944 = vmatpush1.msra.mxu0 %v509
        %1945 = vmatprep.subr.mxu0 0.0
        %1946 = vmatpush1.msra.mxu0 %v510
        %1947 = vmatprep.subr.mxu0 0.0
        %1948 = vmatpush1.msra.mxu0 %v511
        %1949 = vmatprep.subr.mxu0 0.0
        %1950 = vmatpush1.msra.mxu0 %v512
        %1951 = vmatprep.subr.mxu0 0.0
        %1952 = vmatpush1.msra.mxu0 %v513
        %1953 = vmatprep.subr.mxu0 0.0
        %1954 = vmatpush1.msra.mxu0 %v514
        %1955 = vmatprep.subr.mxu0 0.0
        %1956 = vmatpush1.msra.mxu0 %v515
        %1957 = vmatprep.subr.mxu0 0.0
        %1958 = vmatpush1.msra.mxu0 %v516
        %1959 = vmatprep.subr.mxu0 0.0
        %1960 = vmatpush1.msra.mxu0 0.0
        %1961 = vmatprep.subr.mxu0 0.0
        %1962 = vmatpush1.msra.mxu0 0.0
        %1963 = vmatprep.subr.mxu0 0.0
        %1964 = vmatpush1.msra.mxu0 0.0
        %1965 = vmatprep.subr.mxu0 0.0
        %1966 = vmatpush1.msra.mxu0 0.0
        %1967 = vmatprep.subr.mxu0 0.0
        %1968 = vmatpush1.msra.mxu0 0.0
        %1969 = vmatprep.subr.mxu0 0.0
        %1970 = vmatpush1.msra.mxu0 0.0
        %1971 = vmatprep.subr.mxu0 0.0
        %1972 = vmatpush1.msra.mxu0 0.0
        %1973 = vmatprep.subr.mxu0 0.0
        %1974 = vmatpush1.msra.mxu0 0.0
        %1975 = vmatprep.subr.mxu0 0.0
        %1976 = vmatpush1.msra.mxu0 0.0
        %1977 = vmatprep.subr.mxu0 0.0
        %1978 = vmatpush1.msra.mxu0 0.0
        %1979 = vmatprep.subr.mxu0 0.0
        %1980 = vmatpush1.msra.mxu0 0.0
        %1981 = vmatprep.subr.mxu0 0.0
        %1982 = vmatpush1.msra.mxu0 0.0
        %1983 = vmatprep.subr.mxu0 0.0
        %1984 = vmatpush1.msra.mxu0 0.0
        %1985 = vmatprep.subr.mxu0 0.0
        %1986 = vmatpush1.msra.mxu0 0.0
        %1987 = vmatprep.subr.mxu0 0.0
        %1988 = vmatpush1.msra.mxu0 0.0
        %1989 = vmatprep.subr.mxu0 0.0
        %1990 = vmatpush1.msra.mxu0 0.0
        %1991 = vmatprep.mubr.f32.mxu0 0.0
        %1992 = vmatmul.mubr.f32.gmra.mrb[0].mxu0 %v1394
        %v1993 = vpop.f32.mrb[0].mxu0
        %v1994 = vadd.f32 0.0, %v1993
        %v1995 = vpop.f32.mrb[0].mxu0
        %1996 = vmatprep.mubr.f32.mxu0 0.0
        %1997 = vmatmul.mubr.f32.gmra.mrb[0].mxu0 %v1400
        %v1998 = vpop.f32.mrb[0].mxu0
        %v1999 = vadd.f32 0.0, %v1998
        %v2000 = vpop.f32.mrb[0].mxu0
        %2001 = vdwg.mxu0
        %v2002 = vmul.f32 %v1469, %v1469
        %v2003 = vmul.f32 %v1474, %v1474
        %v2004 = vsub.f32 %v1544, %v2002
        %v2005 = vsub.f32 %v1549, %v2003
        %v2006 = vlaneseq
        %v2007 = vand.u32 %v2006, 127
        %vm2008 = vcmp.lt.s32.totalorder %v2007, 16
        %v2009 = vmul.f32 %v1619, %v1619
        %v2010 = vmul.f32 %v1624, %v1624
        %v2011 = vmul.f32 %v1619, %v1469
        %v2012 = vmul.f32 %v1624, %v1474
        %v2013 = vsub.f32 %v1694, %v2009
        %v2014 = vsub.f32 %v1699, %v2010
        %v2015 = vsub.f32 %v1769, %v2011
        %v2016 = vsub.f32 %v1774, %v2012
        %v2017 = vmul.f32 %v2011, 2.0
        %v2018 = vmul.f32 %v2012, 2.0
        %v2019 = vadd.f32 %v2017, 0.0001
        %v2020 = vadd.f32 %v2018, 0.0001
        %v2021 = vmul.f32 %v2015, 2.0
        %v2022 = vmul.f32 %v2016, 2.0
        %v2023 = vadd.f32 %v2021, 0.0009
        %v2024 = vadd.f32 %v2022, 0.0009
        %v2025 = vmul.f32 %v2019, %v2023
        %v2026 = vmul.f32 %v2020, %v2024
        %v2027 = vadd.f32 %v2009, %v2002
        %v2028 = vadd.f32 %v2010, %v2003
        %v2029 = vadd.f32 %v2027, 0.0001
        %v2030 = vadd.f32 %v2028, 0.0001
        %v2031 = vadd.f32 %v2013, %v2004
        %v2032 = vadd.f32 %v2014, %v2005
        %v2033 = vadd.f32 %v2031, 0.0009
        %v2034 = vadd.f32 %v2032, 0.0009
        %v2035 = vmul.f32 %v2029, %v2033
        %v2036 = vmul.f32 %v2030, %v2034
        %v2037 = vrcp.pop %v2035
        %v2038 = vrcp.pop %v2036
        %v2039 = vmul.f32 %v2035, %v2037
        %v2040 = vmul.f32 %v2036, %v2038
        %v2041 = vsub.f32 2.0, %v2039
        %v2042 = vsub.f32 2.0, %v2040
        %v2043 = vmul.f32 %v2037, %v2041
        %v2044 = vmul.f32 %v2038, %v2042
        %v2045 = vmul.f32 %v2025, %v2043
        %v2046 = vmul.f32 %v2026, %v2044
        %v2047 = vsel %vm2008, %v2045, 0.0
        %v2048 = vsel %vm2008, %v2046, 0.0
        %v2049 = vadd.f32 %v2047, %v2048
        %2050 = vadd.xlane.f32.xlu0 %v2049
        %v2051 = vpop.xlane.xlu0 %2050
        %v2052 = vrot.slane %v2051, 4
        %v2053 = vadd.f32 %v2051, %v2052
        %v2054 = vrot.slane %v2053, 2
        %v2055 = vadd.f32 %v2053, %v2054
        %v2056 = vrot.slane %v2055, 1
        %v2057 = vadd.f32 %v2055, %v2056
        %s2058 = vtos %v2057
        %v2059 = vmul.f32 %v1844, %v1844
        %v2060 = vmul.f32 %v1849, %v1849
        %v2061 = vmul.f32 %v1844, %v1469
        %v2062 = vmul.f32 %v1849, %v1474
        %v2063 = vsub.f32 %v1919, %v2059
        %v2064 = vsub.f32 %v1924, %v2060
        %v2065 = vsub.f32 %v1994, %v2061
        %v2066 = vsub.f32 %v1999, %v2062
        %v2067 = vmul.f32 %v2061, 2.0
        %v2068 = vmul.f32 %v2062, 2.0
        %v2069 = vadd.f32 %v2067, 0.0001
        %v2070 = vadd.f32 %v2068, 0.0001
        %v2071 = vmul.f32 %v2065, 2.0
        %v2072 = vmul.f32 %v2066, 2.0
        %v2073 = vadd.f32 %v2071, 0.0009
        %v2074 = vadd.f32 %v2072, 0.0009
        %v2075 = vmul.f32 %v2069, %v2073
        %v2076 = vmul.f32 %v2070, %v2074
        %v2077 = vadd.f32 %v2059, %v2002
        %v2078 = vadd.f32 %v2060, %v2003
        %v2079 = vadd.f32 %v2077, 0.0001
        %v2080 = vadd.f32 %v2078, 0.0001
        %v2081 = vadd.f32 %v2063, %v2004
        %v2082 = vadd.f32 %v2064, %v2005
        %v2083 = vadd.f32 %v2081, 0.0009
        %v2084 = vadd.f32 %v2082, 0.0009
        %v2085 = vmul.f32 %v2079, %v2083
        %v2086 = vmul.f32 %v2080, %v2084
        %v2087 = vrcp.pop %v2085
        %v2088 = vrcp.pop %v2086
        %v2089 = vmul.f32 %v2085, %v2087
        %v2090 = vmul.f32 %v2086, %v2088
        %v2091 = vsub.f32 2.0, %v2089
        %v2092 = vsub.f32 2.0, %v2090
        %v2093 = vmul.f32 %v2087, %v2091
        %v2094 = vmul.f32 %v2088, %v2092
        %v2095 = vmul.f32 %v2075, %v2093
        %v2096 = vmul.f32 %v2076, %v2094
        %v2097 = vsel %vm2008, %v2095, 0.0
        %v2098 = vsel %vm2008, %v2096, 0.0
        %v2099 = vadd.f32 %v2097, %v2098
        %2100 = vadd.xlane.f32.xlu0 %v2099
        %v2101 = vpop.xlane.xlu0 %2100
        %v2102 = vrot.slane %v2101, 4
        %v2103 = vadd.f32 %v2101, %v2102
        %v2104 = vrot.slane %v2103, 2
        %v2105 = vadd.f32 %v2103, %v2104
        %v2106 = vrot.slane %v2105, 1
        %v2107 = vadd.f32 %v2105, %v2106
        %s2108 = vtos %v2107
        %vm2109 = vcmp.eq.s32.totalorder %v2007, 0
        %vm2110 = vcmp.eq.s32.totalorder %v2007, 1
        %vm2111 = vcmp.eq.s32.totalorder %v2007, 2
        %vm2112 = vcmp.eq.s32.totalorder %v2007, 3
        %v2113 = vstv %s2108
        %v2114 = vsel %vm2112, %v2113, 0.0
        %v2115 = vstv %s2058
        %v2116 = vsel %vm2111, %v2115, %v2114
        %v2117 = vstv %s1077
        %v2118 = vsel %vm2110, %v2117, %v2116
        %v2119 = vstv %s1076
        %v2120 = vsel %vm2109, %v2119, %v2118
        %2121 = vst [vmem:[%s500] sm:$0xff] %v2120
        %s2122 = sand.u32 %s244, 1
        %s2123 = scalar_lea.sflag [#allocation4], %s2122
        %s2124 = sand.u32 %s244, 1
        %s2125 = smul.addr %s2124, 8
        %s2126 = scalar_lea.vmem [#allocation16], %s2125
        // Predicated region
        $region89: #{tpu_custom_call.1} parent=55 // pred_check
          %p2127 = pneg %p254
        $region90: #{tpu_custom_call.1} parent=55 // pred_check_branch
          %2129 = sbr.rel (%p2127) target = $region92
        $region91: #{tpu_custom_call.1} parent=55 // pred_region
          %s2131 = ssub.s32 128, 128
          %2132 = vsyncadd %s2123, %s2131
          %s2133 = smul.addr %s32, 128
          %s2134 = scalar_lea.hbm %s9, %s2133
          %s2136 = sshll.u32 %s2126, 4
          %s2137 = int_to_ptr.vmem [resolvable:$true] %s2136
          %2139 = dma.vmem_to_hbm [thread:$0]  %s2137, 128, %s2134, %s2123
        $region92: #{tpu_custom_call.1} parent=55 // pred_fallthru
          _
      $region56: #{tpu_custom_call.1} parent=5 // pred_fallthru
        _
      %p2140 = scmp.le.s32.totalorder 2, %s27
      // Predicated region
      $region93: #{tpu_custom_call.1} parent=5 // pred_check
        %p2141 = pneg %p2140
      $region94: #{tpu_custom_call.1} parent=5 // pred_check_branch
        %2143 = sbr.rel (%p2141) target = $region96
      $region95: #{tpu_custom_call.1} parent=5 // pred_region
        %s2144 = ssub.s32 %s27, 2
        // Predicated region
        $region97: #{tpu_custom_call.1} parent=95 // pred_check
          %p2145 = pneg %p260
        $region98: #{tpu_custom_call.1} parent=95 // pred_check_branch
          %2147 = sbr.rel (%p2145) target = $region100
        $region99: #{tpu_custom_call.1} parent=95 // pred_region
          %s2148 = sand.u32 %s245, 1
          %s2149 = scalar_lea.sflag [#allocation4], %s2148
          %s2150 = sand.u32 %s245, 1
          %s2151 = smul.addr %s2150, 8
          %s2152 = scalar_lea.vmem [#allocation16], %s2151
          %2153 = dma.done %s2149, 128
        $region100: #{tpu_custom_call.1} parent=95 // pred_fallthru
          _
      $region96: #{tpu_custom_call.1} parent=5 // pred_fallthru
        _
    $region6: #{tpu_custom_call.1} parent=1 // loop_footer
      %s31 = sadd.s32 1, %s27
    $region7: #{tpu_custom_call.1} parent=1 // loop_footer_branch
      %26 = sbr.rel target = $region3
    $region8: #{tpu_custom_call.1} parent=1 // loop_exit
      _
    %2154 = vsyncpa [#allocation3], 1
    %s2155 = scalar_lea.sflag [#allocation3], 1
    %2156 = vsyncpa %s2155, 1
    %2157 = vsyncpa [#allocation6], 1
    %s2158 = scalar_lea.sflag [#allocation6], 1
    %2159 = vsyncpa %s2158, 1
    %2160 = vsyncpa [#allocation9], 1
    %2161 = vsyncpa [#allocation12], 1
    %2162 = vsyncpa [#allocation15], 1
    %2163 = vsyncpa [#allocation4], 1
    %s2164 = scalar_lea.sflag [#allocation4], 1
    %2165 = vsyncpa %s2164, 1

</llo_original>
